<compile_context>
chip_gen: v7x
topology: tpu7x:2x2x1
jax: 0.10.0
libtpu: 0.0.40
codegen_flags: <defaults>
</compile_context>

<pallas_src>
import functools

import numpy as np

import jax
import jax.numpy as jnp
from jax.experimental import pallas as pl
from jax.experimental.pallas import tpu as pltpu

BN_EPS = 1e-5
GEN_FEATURES = 7
LANE = 128


def _fullspec(shape):
    """Full-array BlockSpec for the trivial grid=(1,)."""
    zeros = (0,) * len(shape)
    return pl.BlockSpec(shape, lambda i: zeros)


# ----------------------------------------------------------------------------
# Single fused kernel: depth x [ConvT(k2,s2) + BN(train) + ReLU] followed by
# ConvT(k4,s2,p3) + Tanh, everything VMEM-resident.
# ----------------------------------------------------------------------------
def _generator_kernel(*refs, depth, inv_counts):
    # refs = (x, [wb_i, pm_i, gamma_i, beta_i] * depth, t_out, o)
    x_ref = refs[0]
    t_ref = refs[1 + 4 * depth]
    o_ref = refs[2 + 4 * depth]

    x = x_ref[...]                                    # (N, K0) f32
    for i in range(depth):
        wb = refs[1 + 4 * i][...]                     # (K_in, K_out)  bf16 block-diag ConvT
        pm = refs[2 + 4 * i][...]                     # (K_out, K_out) f32 0/1 fold+broadcast
        gamma = refs[3 + 4 * i][...]                  # (1, K_out)     f32 tiled BN weight
        beta = refs[4 + 4 * i][...]                   # (1, K_out)     f32 tiled BN bias

        # ConvTranspose2d(k=2, s=2, bias=False): one MXU matmul, bf16 in / f32 acc.
        y = jnp.dot(x.astype(jnp.bfloat16), wb,
                    preferred_element_type=jnp.float32)          # (N, K_out)

        # BatchNorm2d (training mode, batch statistics).  Rows are reduced
        # first; the per-channel fold over pixel groups and the broadcast back
        # to (1, K_out) are one tiny 0/1 matmul -> full-vreg ops only, no lane
        # slicing / concatenation.  Variance is centered (two-pass).
        inv_n = inv_counts[i]
        mean = jnp.dot(jnp.sum(y, axis=0, keepdims=True), pm,
                       preferred_element_type=jnp.float32) * inv_n
        yc = y - mean
        var = jnp.dot(jnp.sum(yc * yc, axis=0, keepdims=True), pm,
                      preferred_element_type=jnp.float32) * inv_n
        scale = gamma * jax.lax.rsqrt(var + BN_EPS)
        x = jnp.maximum(yc * scale + beta, 0.0)                   # affine + ReLU (f32 VPU)

    # Output ConvTranspose2d(k=4, s=2, p=3, bias=False) + Tanh.  Overlap-add,
    # padding crop, spatial un-interleave and NCHW flattening are folded into
    # the precomputed T matrix: one matmul, tanh fused into the lane-dense
    # (multiple-of-128) store.
    y = jnp.dot(x.astype(jnp.bfloat16), t_ref[...],
                preferred_element_type=jnp.float32)
    o_ref[...] = jnp.tanh(y)


# ----------------------------------------------------------------------------
# Parameter init (mirrors the PyTorch module + init_params)
# ----------------------------------------------------------------------------
def init_generator_params(key, latent_dim, channels, depth):
    layer_channels = [latent_dim] + [(depth - i) * GEN_FEATURES for i in range(depth)]
    params = {"blocks": []}
    for i in range(len(layer_channels) - 1):
        cin, cout = layer_channels[i], layer_channels[i + 1]
        key, k1, k2 = jax.random.split(key, 3)
        params["blocks"].append({
            # ConvTranspose2d weight (in_ch, out_ch, kH, kW) ~ N(0, 0.02)
            "w": 0.02 * jax.random.normal(k1, (cin, cout, 2, 2), jnp.float32),
            # Reference init_params: BN weight ~ N(0, 0.02), BN bias = 0.
            "gamma": 0.02 * jax.random.normal(k2, (cout,), jnp.float32),
            "beta": jnp.zeros((cout,), jnp.float32),
        })
    key, k3 = jax.random.split(key)
    params["w_out"] = 0.02 * jax.random.normal(
        k3, (layer_channels[-1], channels, 4, 4), jnp.float32)
    return params


# ----------------------------------------------------------------------------
# One-time weight preparation (hoisted out of the per-step forward)
# ----------------------------------------------------------------------------
def prepare_generator(params, h0=1, w0=1):
    """Build the matmul-form weights used by the fused kernel.

    Activation layout inside the kernel: (N, K) with columns ordered
    (pixel-group p, channel c).  Each ConvT(k2,s2) block maps p -> p*4 + kh*2
    + kw, so p bit-encodes (i0, j0, kh_1, kw_1, ..., kh_d, kw_d).
    """
    depth = len(params["blocks"])
    blocks = []
    p_groups = h0 * w0
    for blk in params["blocks"]:
        w = blk["w"]
        cin, cout = w.shape[0], w.shape[1]
        # Small ConvT matrix, columns ordered (kh, kw, oc).
        small = jnp.transpose(w, (0, 2, 3, 1)).reshape(cin, 4 * cout)
        wb = small if p_groups == 1 else jnp.kron(
            jnp.eye(p_groups, dtype=jnp.float32), small)
        p_out = p_groups * 4
        # Fold-over-groups + broadcast-back matrix (0/1), per output channel.
        pm = jnp.kron(jnp.ones((p_out, p_out), jnp.float32),
                      jnp.eye(cout, dtype=jnp.float32))
        gamma_t = jnp.tile(blk["gamma"].reshape(1, cout), (1, p_out)).astype(jnp.float32)
        beta_t = jnp.tile(blk["beta"].reshape(1, cout), (1, p_out)).astype(jnp.float32)
        blocks.append({"wb": wb.astype(jnp.bfloat16), "pm": pm,
                       "gamma": gamma_t, "beta": beta_t, "p_out": p_out})
        p_groups = p_out

    # ---- Output-layer matrix T: ConvT(k=4, s=2, p=3) as a dense matmul ----
    w_out = params["w_out"]                               # (Cin, Cout, 4, 4)
    cin, cout = w_out.shape[0], w_out.shape[1]
    Hsp, Wsp = h0 * 2 ** depth, w0 * 2 ** depth           # penultimate spatial size
    Ho, Wo = 2 * Hsp - 4, 2 * Wsp - 4                     # output size (k4, s2, p3)
    OHf, OWf = 2 * Hsp + 2, 2 * Wsp + 2                   # uncropped transposed-conv size

    a_idx = 2 * np.arange(Hsp)[None, :] + np.arange(4)[:, None]   # (4, H)
    b_idx = 2 * np.arange(Wsp)[None, :] + np.arange(4)[:, None]   # (4, W)
    A = jax.nn.one_hot(a_idx, OHf, dtype=jnp.float32)             # (4, H, OHf)
    B = jax.nn.one_hot(b_idx, OWf, dtype=jnp.float32)             # (4, W, OWf)
    # t_full[i, j, n, o, p, q] = sum_{kh,kw} w_out[n,o,kh,kw] [p==2i+kh][q==2j+kw]
    t_full = jnp.einsum('nokl,kip,ljq->ijnopq', w_out, A, B)
    t_crop = t_full[:, :, :, :, 3:3 + Ho, 3:3 + Wo]                # (H, W, Cin, Cout, Ho, Wo)

    # Row order must match the kernel's column order (p, c); pixel-group index
    # p bit-encodes (i0, j0, kh_1, kw_1, ..., kh_d, kw_d) -> spatial (h, w).
    p_final = h0 * w0 * 4 ** depth
    h_of_p = np.zeros(p_final, np.int32)
    w_of_p = np.zeros(p_final, np.int32)
    for p in range(p_final):
        bits = p
        khs, kws = [], []
        for _ in range(depth):
            kws.append(bits & 1); bits >>= 1
            khs.append(bits & 1); bits >>= 1
        p0 = bits
        i0, j0 = p0 // w0, p0 % w0
        h = i0
        for kh in reversed(khs):
            h = 2 * h + kh
        ww = j0
        for kw in reversed(kws):
            ww = 2 * ww + kw
        h_of_p[p], w_of_p[p] = h, ww

    t_rows = t_crop[h_of_p, w_of_p]                                # (P, Cin, Cout, Ho, Wo)
    out_cols = cout * Ho * Wo                                      # columns = (oc, ho, wo)
    t_mat = t_rows.reshape(p_final * cin, out_cols)
    out_pad = ((out_cols + LANE - 1) // LANE) * LANE               # lane-dense store
    if out_pad > out_cols:
        t_mat = jnp.pad(t_mat, ((0, 0), (0, out_pad - out_cols)))

    return {"depth": depth, "h0": h0, "w0": w0, "blocks": blocks,
            "t_mat": t_mat.astype(jnp.bfloat16), "channels": cout,
            "Ho": Ho, "Wo": Wo, "out_cols": out_cols, "out_pad": out_pad}


# ----------------------------------------------------------------------------
# Forward: flatten z, one pallas_call, crop + reshape.
# ----------------------------------------------------------------------------
def generator_forward(prepped, z):
    N, C0, H0, W0 = z.shape
    assert (H0, W0) == (prepped["h0"], prepped["w0"])
    depth = prepped["depth"]
    blocks = prepped["blocks"]

    # Per-sample columns ordered (pixel, channel).
    x0 = jnp.transpose(z, (0, 2, 3, 1)).reshape(N, H0 * W0 * C0).astype(jnp.float32)

    # BN counts are static per trace (pixels per channel after each block).
    inv_counts = tuple(1.0 / (N * b["p_out"]) for b in blocks)

    args = [x0]
    in_specs = [_fullspec(x0.shape)]
    for b in blocks:
        for name in ("wb", "pm", "gamma", "beta"):
            args.append(b[name])
            in_specs.append(_fullspec(b[name].shape))
    args.append(prepped["t_mat"])
    in_specs.append(_fullspec(prepped["t_mat"].shape))

    out_pad = prepped["out_pad"]
    kernel = functools.partial(_generator_kernel, depth=depth, inv_counts=inv_counts)
    # Single full-array invocation: total VMEM footprint is ~3 MiB at this
    # config, far below every generation's scoped default, so no M-tiling /
    # multi-core grid is needed here (add a "parallel" row grid if N grows).
    out = pl.pallas_call(
        kernel,
        out_shape=jax.ShapeDtypeStruct((N, out_pad), jnp.float32),
        grid=(1,),
        in_specs=in_specs,
        out_specs=_fullspec((N, out_pad)),
        compiler_params=pltpu.CompilerParams(dimension_semantics=("arbitrary",)),
    )(*args)

    Ho, Wo, ch = prepped["Ho"], prepped["Wo"], prepped["channels"]
    return out[:, :prepped["out_cols"]].reshape(N, ch, Ho, Wo)


# ----------------------------------------------------------------------------
# Pure-JAX f32 reference of the PyTorch module (training-mode BN), for checks.
# ----------------------------------------------------------------------------
def _reference_forward(params, z):
    hi = jax.lax.Precision.HIGHEST
    x = z.astype(jnp.float32)
    for blk in params["blocks"]:
        w, g, b = blk["w"], blk["gamma"], blk["beta"]
        # ConvTranspose2d(k=2, s=2, bias=False)
        y = jnp.einsum('ncij,cokl->noikjl', x, w, precision=hi)
        n, o, h, kh, wsp, kw = y.shape
        y = y.reshape(n, o, h * kh, wsp * kw)
        # BatchNorm2d training forward (biased batch variance) + ReLU
        mean = y.mean(axis=(0, 2, 3), keepdims=True)
        var = ((y - mean) ** 2).mean(axis=(0, 2, 3), keepdims=True)
        y = (y - mean) * jax.lax.rsqrt(var + BN_EPS)
        x = jnp.maximum(y * g.reshape(1, -1, 1, 1) + b.reshape(1, -1, 1, 1), 0.0)
    # Output ConvTranspose2d(k=4, s=2, p=3, bias=False) + Tanh
    w = params["w_out"]
    n, _, H, W = x.shape
    co = w.shape[1]
    full = jnp.zeros((n, co, 2 * H + 2, 2 * W + 2), jnp.float32)
    for kh in range(4):
        for kw in range(4):
            contrib = jnp.einsum('nchw,co->nohw', x, w[:, :, kh, kw], precision=hi)
            full = full.at[:, :, kh:kh + 2 * H:2, kw:kw + 2 * W:2].add(contrib)
    Ho, Wo = 2 * H - 4, 2 * W - 4
    return jnp.tanh(full[:, :, 3:3 + Ho, 3:3 + Wo])


if __name__ == "__main__":
    latent_dim, channels, depth = 32, 3, 3
    batch = 2
    key = jax.random.PRNGKey(0)
    pkey, zkey = jax.random.split(key)
    params = init_generator_params(pkey, latent_dim, channels, depth)
    z = jax.random.normal(zkey, (batch, latent_dim, 1, 1), jnp.float32)

    prepped = prepare_generator(params, h0=1, w0=1)      # hoisted weight prep
    out = generator_forward(prepped, z)
    out = jax.block_until_ready(out)

    # spatial: 1 -> 2 -> 4 -> 8 (blocks), then 2*8 - 4 = 12 (output layer)
    expected = (batch, channels, 2 ** depth * 2 - 4, 2 ** depth * 2 - 4)
    assert out.shape == expected, (out.shape, expected)
    assert bool(jnp.all(jnp.isfinite(out)))

    # Correctness cross-check against the f32 reference.  Tolerance is loose
    # because the kernel feeds the MXU bf16 operands (f32 accumulation), per
    # the performance review.
    ref = np.asarray(_reference_forward(params, z))
    np.testing.assert_allclose(np.asarray(out), ref, rtol=0.1, atol=2e-4)

    print("KERNEL_OK")
</pallas_src>

<mosaic_0001>
module attributes {stable_mosaic.version = 11 : i64} {
  func.func @_generator_kernel(%arg0: i32, %arg1: memref<2x32xf32, #tpu.memory_space<vmem>>, %arg2: memref<32x84xbf16, #tpu.memory_space<vmem>>, %arg3: memref<84x84xf32, #tpu.memory_space<vmem>>, %arg4: memref<1x84xf32, #tpu.memory_space<vmem>>, %arg5: memref<1x84xf32, #tpu.memory_space<vmem>>, %arg6: memref<84x224xbf16, #tpu.memory_space<vmem>>, %arg7: memref<224x224xf32, #tpu.memory_space<vmem>>, %arg8: memref<1x224xf32, #tpu.memory_space<vmem>>, %arg9: memref<1x224xf32, #tpu.memory_space<vmem>>, %arg10: memref<224x448xbf16, #tpu.memory_space<vmem>>, %arg11: memref<448x448xf32, #tpu.memory_space<vmem>>, %arg12: memref<1x448xf32, #tpu.memory_space<vmem>>, %arg13: memref<1x448xf32, #tpu.memory_space<vmem>>, %arg14: memref<448x512xbf16, #tpu.memory_space<vmem>>, %arg15: memref<2x512xf32, #tpu.memory_space<vmem>>) attributes {dimension_semantics = [#tpu.dimension_semantics<arbitrary>], iteration_bounds = array<i64: 1>, scalar_prefetch = 0 : i64, scratch_operands = 0 : i64, tpu.core_type = #tpu.core_type<tc>, window_params = [{pipeline_mode = #tpu.pipeline_mode<synchronous>, transform_indices = @transform_0, window_bounds = array<i64: 2, 32>}, {pipeline_mode = #tpu.pipeline_mode<synchronous>, transform_indices = @transform_1, window_bounds = array<i64: 32, 84>}, {pipeline_mode = #tpu.pipeline_mode<synchronous>, transform_indices = @transform_2, window_bounds = array<i64: 84, 84>}, {pipeline_mode = #tpu.pipeline_mode<synchronous>, transform_indices = @transform_3, window_bounds = array<i64: 1, 84>}, {pipeline_mode = #tpu.pipeline_mode<synchronous>, transform_indices = @transform_4, window_bounds = array<i64: 1, 84>}, {pipeline_mode = #tpu.pipeline_mode<synchronous>, transform_indices = @transform_5, window_bounds = array<i64: 84, 224>}, {pipeline_mode = #tpu.pipeline_mode<synchronous>, transform_indices = @transform_6, window_bounds = array<i64: 224, 224>}, {pipeline_mode = #tpu.pipeline_mode<synchronous>, transform_indices = @transform_7, window_bounds = array<i64: 1, 224>}, {pipeline_mode = #tpu.pipeline_mode<synchronous>, transform_indices = @transform_8, window_bounds = array<i64: 1, 224>}, {pipeline_mode = #tpu.pipeline_mode<synchronous>, transform_indices = @transform_9, window_bounds = array<i64: 224, 448>}, {pipeline_mode = #tpu.pipeline_mode<synchronous>, transform_indices = @transform_10, window_bounds = array<i64: 448, 448>}, {pipeline_mode = #tpu.pipeline_mode<synchronous>, transform_indices = @transform_11, window_bounds = array<i64: 1, 448>}, {pipeline_mode = #tpu.pipeline_mode<synchronous>, transform_indices = @transform_12, window_bounds = array<i64: 1, 448>}, {pipeline_mode = #tpu.pipeline_mode<synchronous>, transform_indices = @transform_13, window_bounds = array<i64: 448, 512>}, {pipeline_mode = #tpu.pipeline_mode<synchronous>, transform_indices = @transform_14, window_bounds = array<i64: 2, 512>}]} {
    %c0 = arith.constant 0 : index
    %c0_0 = arith.constant 0 : index
    %0 = vector.load %arg1[%c0, %c0_0] : memref<2x32xf32, #tpu.memory_space<vmem>>, vector<2x32xf32>
    %c0_1 = arith.constant 0 : index
    %c0_2 = arith.constant 0 : index
    %1 = vector.load %arg2[%c0_1, %c0_2] : memref<32x84xbf16, #tpu.memory_space<vmem>>, vector<32x84xbf16>
    %c0_3 = arith.constant 0 : index
    %c0_4 = arith.constant 0 : index
    %2 = vector.load %arg3[%c0_3, %c0_4] : memref<84x84xf32, #tpu.memory_space<vmem>>, vector<84x84xf32>
    %c0_5 = arith.constant 0 : index
    %c0_6 = arith.constant 0 : index
    %3 = vector.load %arg4[%c0_5, %c0_6] : memref<1x84xf32, #tpu.memory_space<vmem>>, vector<1x84xf32>
    %c0_7 = arith.constant 0 : index
    %c0_8 = arith.constant 0 : index
    %4 = vector.load %arg5[%c0_7, %c0_8] : memref<1x84xf32, #tpu.memory_space<vmem>>, vector<1x84xf32>
    %5 = arith.truncf %0 : vector<2x32xf32> to vector<2x32xbf16>
    %cst = arith.constant dense<0.000000e+00> : vector<2x84xf32>
    %6 = tpu.matmul %5, %1, %cst {dimension_numbers = #tpu.dot_dimension_numbers<[1], [0], [0], [1], [0, 0, 1, 1], [], []>} : vector<2x32xbf16>, vector<32x84xbf16>, vector<2x84xf32> -> vector<2x84xf32>
    %cst_9 = arith.constant dense<0.000000e+00> : vector<84xf32>
    %7 = vector.multi_reduction <add>, %6, %cst_9 [0] : vector<2x84xf32> to vector<84xf32>
    %8 = vector.shape_cast %7 : vector<84xf32> to vector<1x84xf32>
    %cst_10 = arith.constant dense<0.000000e+00> : vector<1x84xf32>
    %9 = tpu.matmul %8, %2, %cst_10 {dimension_numbers = #tpu.dot_dimension_numbers<[1], [0], [0], [1], [0, 0, 1, 1], [], []>} : vector<1x84xf32>, vector<84x84xf32>, vector<1x84xf32> -> vector<1x84xf32>
    %cst_11 = arith.constant 1.250000e-01 : f32
    %10 = vector.broadcast %cst_11 : f32 to vector<1x84xf32>
    %11 = arith.mulf %9, %10 : vector<1x84xf32>
    %12 = vector.broadcast %11 : vector<1x84xf32> to vector<2x84xf32>
    %13 = arith.subf %6, %12 : vector<2x84xf32>
    %14 = arith.mulf %13, %13 : vector<2x84xf32>
    %cst_12 = arith.constant dense<0.000000e+00> : vector<84xf32>
    %15 = vector.multi_reduction <add>, %14, %cst_12 [0] : vector<2x84xf32> to vector<84xf32>
    %16 = vector.shape_cast %15 : vector<84xf32> to vector<1x84xf32>
    %cst_13 = arith.constant dense<0.000000e+00> : vector<1x84xf32>
    %17 = tpu.matmul %16, %2, %cst_13 {dimension_numbers = #tpu.dot_dimension_numbers<[1], [0], [0], [1], [0, 0, 1, 1], [], []>} : vector<1x84xf32>, vector<84x84xf32>, vector<1x84xf32> -> vector<1x84xf32>
    %cst_14 = arith.constant 1.250000e-01 : f32
    %18 = vector.broadcast %cst_14 : f32 to vector<1x84xf32>
    %19 = arith.mulf %17, %18 : vector<1x84xf32>
    %cst_15 = arith.constant 9.99999974E-6 : f32
    %20 = vector.broadcast %cst_15 : f32 to vector<1x84xf32>
    %21 = arith.addf %19, %20 : vector<1x84xf32>
    %22 = math.rsqrt %21 : vector<1x84xf32>
    %23 = arith.mulf %3, %22 : vector<1x84xf32>
    %24 = vector.broadcast %23 : vector<1x84xf32> to vector<2x84xf32>
    %25 = arith.mulf %13, %24 : vector<2x84xf32>
    %26 = vector.broadcast %4 : vector<1x84xf32> to vector<2x84xf32>
    %27 = arith.addf %25, %26 : vector<2x84xf32>
    %cst_16 = arith.constant 0.000000e+00 : f32
    %28 = vector.broadcast %cst_16 : f32 to vector<2x84xf32>
    %29 = arith.maximumf %27, %28 : vector<2x84xf32>
    %c0_17 = arith.constant 0 : index
    %c0_18 = arith.constant 0 : index
    %30 = vector.load %arg6[%c0_17, %c0_18] : memref<84x224xbf16, #tpu.memory_space<vmem>>, vector<84x224xbf16>
    %c0_19 = arith.constant 0 : index
    %c0_20 = arith.constant 0 : index
    %31 = vector.load %arg7[%c0_19, %c0_20] : memref<224x224xf32, #tpu.memory_space<vmem>>, vector<224x224xf32>
    %c0_21 = arith.constant 0 : index
    %c0_22 = arith.constant 0 : index
    %32 = vector.load %arg8[%c0_21, %c0_22] : memref<1x224xf32, #tpu.memory_space<vmem>>, vector<1x224xf32>
    %c0_23 = arith.constant 0 : index
    %c0_24 = arith.constant 0 : index
    %33 = vector.load %arg9[%c0_23, %c0_24] : memref<1x224xf32, #tpu.memory_space<vmem>>, vector<1x224xf32>
    %34 = arith.truncf %29 : vector<2x84xf32> to vector<2x84xbf16>
    %cst_25 = arith.constant dense<0.000000e+00> : vector<2x224xf32>
    %35 = tpu.matmul %34, %30, %cst_25 {dimension_numbers = #tpu.dot_dimension_numbers<[1], [0], [0], [1], [0, 0, 1, 1], [], []>} : vector<2x84xbf16>, vector<84x224xbf16>, vector<2x224xf32> -> vector<2x224xf32>
    %cst_26 = arith.constant dense<0.000000e+00> : vector<224xf32>
    %36 = vector.multi_reduction <add>, %35, %cst_26 [0] : vector<2x224xf32> to vector<224xf32>
    %37 = vector.shape_cast %36 : vector<224xf32> to vector<1x224xf32>
    %cst_27 = arith.constant dense<0.000000e+00> : vector<1x224xf32>
    %38 = tpu.matmul %37, %31, %cst_27 {dimension_numbers = #tpu.dot_dimension_numbers<[1], [0], [0], [1], [0, 0, 1, 1], [], []>} : vector<1x224xf32>, vector<224x224xf32>, vector<1x224xf32> -> vector<1x224xf32>
    %cst_28 = arith.constant 3.125000e-02 : f32
    %39 = vector.broadcast %cst_28 : f32 to vector<1x224xf32>
    %40 = arith.mulf %38, %39 : vector<1x224xf32>
    %41 = vector.broadcast %40 : vector<1x224xf32> to vector<2x224xf32>
    %42 = arith.subf %35, %41 : vector<2x224xf32>
    %43 = arith.mulf %42, %42 : vector<2x224xf32>
    %cst_29 = arith.constant dense<0.000000e+00> : vector<224xf32>
    %44 = vector.multi_reduction <add>, %43, %cst_29 [0] : vector<2x224xf32> to vector<224xf32>
    %45 = vector.shape_cast %44 : vector<224xf32> to vector<1x224xf32>
    %cst_30 = arith.constant dense<0.000000e+00> : vector<1x224xf32>
    %46 = tpu.matmul %45, %31, %cst_30 {dimension_numbers = #tpu.dot_dimension_numbers<[1], [0], [0], [1], [0, 0, 1, 1], [], []>} : vector<1x224xf32>, vector<224x224xf32>, vector<1x224xf32> -> vector<1x224xf32>
    %cst_31 = arith.constant 3.125000e-02 : f32
    %47 = vector.broadcast %cst_31 : f32 to vector<1x224xf32>
    %48 = arith.mulf %46, %47 : vector<1x224xf32>
    %cst_32 = arith.constant 9.99999974E-6 : f32
    %49 = vector.broadcast %cst_32 : f32 to vector<1x224xf32>
    %50 = arith.addf %48, %49 : vector<1x224xf32>
    %51 = math.rsqrt %50 : vector<1x224xf32>
    %52 = arith.mulf %32, %51 : vector<1x224xf32>
    %53 = vector.broadcast %52 : vector<1x224xf32> to vector<2x224xf32>
    %54 = arith.mulf %42, %53 : vector<2x224xf32>
    %55 = vector.broadcast %33 : vector<1x224xf32> to vector<2x224xf32>
    %56 = arith.addf %54, %55 : vector<2x224xf32>
    %cst_33 = arith.constant 0.000000e+00 : f32
    %57 = vector.broadcast %cst_33 : f32 to vector<2x224xf32>
    %58 = arith.maximumf %56, %57 : vector<2x224xf32>
    %c0_34 = arith.constant 0 : index
    %c0_35 = arith.constant 0 : index
    %59 = vector.load %arg10[%c0_34, %c0_35] : memref<224x448xbf16, #tpu.memory_space<vmem>>, vector<224x448xbf16>
    %c0_36 = arith.constant 0 : index
    %c0_37 = arith.constant 0 : index
    %60 = vector.load %arg11[%c0_36, %c0_37] : memref<448x448xf32, #tpu.memory_space<vmem>>, vector<448x448xf32>
    %c0_38 = arith.constant 0 : index
    %c0_39 = arith.constant 0 : index
    %61 = vector.load %arg12[%c0_38, %c0_39] : memref<1x448xf32, #tpu.memory_space<vmem>>, vector<1x448xf32>
    %c0_40 = arith.constant 0 : index
    %c0_41 = arith.constant 0 : index
    %62 = vector.load %arg13[%c0_40, %c0_41] : memref<1x448xf32, #tpu.memory_space<vmem>>, vector<1x448xf32>
    %63 = arith.truncf %58 : vector<2x224xf32> to vector<2x224xbf16>
    %cst_42 = arith.constant dense<0.000000e+00> : vector<2x448xf32>
    %64 = tpu.matmul %63, %59, %cst_42 {dimension_numbers = #tpu.dot_dimension_numbers<[1], [0], [0], [1], [0, 0, 1, 1], [], []>} : vector<2x224xbf16>, vector<224x448xbf16>, vector<2x448xf32> -> vector<2x448xf32>
    %cst_43 = arith.constant dense<0.000000e+00> : vector<448xf32>
    %65 = vector.multi_reduction <add>, %64, %cst_43 [0] : vector<2x448xf32> to vector<448xf32>
    %66 = vector.shape_cast %65 : vector<448xf32> to vector<1x448xf32>
    %cst_44 = arith.constant dense<0.000000e+00> : vector<1x448xf32>
    %67 = tpu.matmul %66, %60, %cst_44 {dimension_numbers = #tpu.dot_dimension_numbers<[1], [0], [0], [1], [0, 0, 1, 1], [], []>} : vector<1x448xf32>, vector<448x448xf32>, vector<1x448xf32> -> vector<1x448xf32>
    %cst_45 = arith.constant 7.812500e-03 : f32
    %68 = vector.broadcast %cst_45 : f32 to vector<1x448xf32>
    %69 = arith.mulf %67, %68 : vector<1x448xf32>
    %70 = vector.broadcast %69 : vector<1x448xf32> to vector<2x448xf32>
    %71 = arith.subf %64, %70 : vector<2x448xf32>
    %72 = arith.mulf %71, %71 : vector<2x448xf32>
    %cst_46 = arith.constant dense<0.000000e+00> : vector<448xf32>
    %73 = vector.multi_reduction <add>, %72, %cst_46 [0] : vector<2x448xf32> to vector<448xf32>
    %74 = vector.shape_cast %73 : vector<448xf32> to vector<1x448xf32>
    %cst_47 = arith.constant dense<0.000000e+00> : vector<1x448xf32>
    %75 = tpu.matmul %74, %60, %cst_47 {dimension_numbers = #tpu.dot_dimension_numbers<[1], [0], [0], [1], [0, 0, 1, 1], [], []>} : vector<1x448xf32>, vector<448x448xf32>, vector<1x448xf32> -> vector<1x448xf32>
    %cst_48 = arith.constant 7.812500e-03 : f32
    %76 = vector.broadcast %cst_48 : f32 to vector<1x448xf32>
    %77 = arith.mulf %75, %76 : vector<1x448xf32>
    %cst_49 = arith.constant 9.99999974E-6 : f32
    %78 = vector.broadcast %cst_49 : f32 to vector<1x448xf32>
    %79 = arith.addf %77, %78 : vector<1x448xf32>
    %80 = math.rsqrt %79 : vector<1x448xf32>
    %81 = arith.mulf %61, %80 : vector<1x448xf32>
    %82 = vector.broadcast %81 : vector<1x448xf32> to vector<2x448xf32>
    %83 = arith.mulf %71, %82 : vector<2x448xf32>
    %84 = vector.broadcast %62 : vector<1x448xf32> to vector<2x448xf32>
    %85 = arith.addf %83, %84 : vector<2x448xf32>
    %cst_50 = arith.constant 0.000000e+00 : f32
    %86 = vector.broadcast %cst_50 : f32 to vector<2x448xf32>
    %87 = arith.maximumf %85, %86 : vector<2x448xf32>
    %88 = arith.truncf %87 : vector<2x448xf32> to vector<2x448xbf16>
    %c0_51 = arith.constant 0 : index
    %c0_52 = arith.constant 0 : index
    %89 = vector.load %arg14[%c0_51, %c0_52] : memref<448x512xbf16, #tpu.memory_space<vmem>>, vector<448x512xbf16>
    %cst_53 = arith.constant dense<0.000000e+00> : vector<2x512xf32>
    %90 = tpu.matmul %88, %89, %cst_53 {dimension_numbers = #tpu.dot_dimension_numbers<[1], [0], [0], [1], [0, 0, 1, 1], [], []>} : vector<2x448xbf16>, vector<448x512xbf16>, vector<2x512xf32> -> vector<2x512xf32>
    %91 = math.tanh %90 : vector<2x512xf32>
    %c0_54 = arith.constant 0 : index
    %c0_55 = arith.constant 0 : index
    %92 = vector.load %arg15[%c0_54, %c0_55] : memref<2x512xf32, #tpu.memory_space<vmem>>, vector<2x512xf32>
    tpu.vector_store %arg15[%c0_54, %c0_55], %91 {strides = array<i32>} : memref<2x512xf32, #tpu.memory_space<vmem>>, vector<2x512xf32>,
    return
  }
  func.func @transform_0(%arg0: i32) -> (i32, i32) {
    %c0_i32 = arith.constant 0 : i32
    %c0_i32_0 = arith.constant 0 : i32
    %c0_i32_1 = arith.constant 0 : i32
    return %c0_i32, %c0_i32_0 : i32, i32
  }
  func.func @transform_1(%arg0: i32) -> (i32, i32) {
    %c0_i32 = arith.constant 0 : i32
    %c0_i32_0 = arith.constant 0 : i32
    %c0_i32_1 = arith.constant 0 : i32
    return %c0_i32, %c0_i32_0 : i32, i32
  }
  func.func @transform_2(%arg0: i32) -> (i32, i32) {
    %c0_i32 = arith.constant 0 : i32
    %c0_i32_0 = arith.constant 0 : i32
    %c0_i32_1 = arith.constant 0 : i32
    return %c0_i32, %c0_i32_0 : i32, i32
  }
  func.func @transform_3(%arg0: i32) -> (i32, i32) {
    %c0_i32 = arith.constant 0 : i32
    %c0_i32_0 = arith.constant 0 : i32
    %c0_i32_1 = arith.constant 0 : i32
    return %c0_i32, %c0_i32_0 : i32, i32
  }
  func.func @transform_4(%arg0: i32) -> (i32, i32) {
    %c0_i32 = arith.constant 0 : i32
    %c0_i32_0 = arith.constant 0 : i32
    %c0_i32_1 = arith.constant 0 : i32
    return %c0_i32, %c0_i32_0 : i32, i32
  }
  func.func @transform_5(%arg0: i32) -> (i32, i32) {
    %c0_i32 = arith.constant 0 : i32
    %c0_i32_0 = arith.constant 0 : i32
    %c0_i32_1 = arith.constant 0 : i32
    return %c0_i32, %c0_i32_0 : i32, i32
  }
  func.func @transform_6(%arg0: i32) -> (i32, i32) {
    %c0_i32 = arith.constant 0 : i32
    %c0_i32_0 = arith.constant 0 : i32
    %c0_i32_1 = arith.constant 0 : i32
    return %c0_i32, %c0_i32_0 : i32, i32
  }
  func.func @transform_7(%arg0: i32) -> (i32, i32) {
    %c0_i32 = arith.constant 0 : i32
    %c0_i32_0 = arith.constant 0 : i32
    %c0_i32_1 = arith.constant 0 : i32
    return %c0_i32, %c0_i32_0 : i32, i32
  }
  func.func @transform_8(%arg0: i32) -> (i32, i32) {
    %c0_i32 = arith.constant 0 : i32
    %c0_i32_0 = arith.constant 0 : i32
    %c0_i32_1 = arith.constant 0 : i32
    return %c0_i32, %c0_i32_0 : i32, i32
  }
  func.func @transform_9(%arg0: i32) -> (i32, i32) {
    %c0_i32 = arith.constant 0 : i32
    %c0_i32_0 = arith.constant 0 : i32
    %c0_i32_1 = arith.constant 0 : i32
    return %c0_i32, %c0_i32_0 : i32, i32
  }
  func.func @transform_10(%arg0: i32) -> (i32, i32) {
    %c0_i32 = arith.constant 0 : i32
    %c0_i32_0 = arith.constant 0 : i32
    %c0_i32_1 = arith.constant 0 : i32
    return %c0_i32, %c0_i32_0 : i32, i32
  }
  func.func @transform_11(%arg0: i32) -> (i32, i32) {
    %c0_i32 = arith.constant 0 : i32
    %c0_i32_0 = arith.constant 0 : i32
    %c0_i32_1 = arith.constant 0 : i32
    return %c0_i32, %c0_i32_0 : i32, i32
  }
  func.func @transform_12(%arg0: i32) -> (i32, i32) {
    %c0_i32 = arith.constant 0 : i32
    %c0_i32_0 = arith.constant 0 : i32
    %c0_i32_1 = arith.constant 0 : i32
    return %c0_i32, %c0_i32_0 : i32, i32
  }
  func.func @transform_13(%arg0: i32) -> (i32, i32) {
    %c0_i32 = arith.constant 0 : i32
    %c0_i32_0 = arith.constant 0 : i32
    %c0_i32_1 = arith.constant 0 : i32
    return %c0_i32, %c0_i32_0 : i32, i32
  }
  func.func @transform_14(%arg0: i32) -> (i32, i32) {
    %c0_i32 = arith.constant 0 : i32
    %c0_i32_0 = arith.constant 0 : i32
    %c0_i32_1 = arith.constant 0 : i32
    return %c0_i32, %c0_i32_0 : i32, i32
  }
}

</mosaic_0001>

<llo_original>
// kernel: tpu_custom_call.1
$region0: #{tpu_custom_call.1}
  #allocation0 [shape = 'u32[]', space=smem, size = 0x4, offset = 0x4, fixed_abs, tag = 'smem constant byte address 0x4 - core index']
  #allocation1 [shape = 'u32[144,128]{1,0:T(1,128)}', space=vmem, size = 0x12000, scoped, tag = 'internal scratch']
  %s0 = inlined_call_operand.hbm [shape: f32[2,32], index: 0, kind: input, shape index: {}]
  %s1 = inlined_call_operand.hbm [shape: bf16[32,84], index: 1, kind: input, shape index: {}]
  %s2 = inlined_call_operand.hbm [shape: f32[84,84], index: 2, kind: input, shape index: {}]
  %s3 = inlined_call_operand.vmem [shape: f32[1,84], index: 3, kind: input, shape index: {}]
  %s4 = inlined_call_operand.vmem [shape: f32[1,84], index: 4, kind: input, shape index: {}]
  %s5 = inlined_call_operand.hbm [shape: bf16[84,224], index: 5, kind: input, shape index: {}]
  %s6 = inlined_call_operand.hbm [shape: f32[224,224], index: 6, kind: input, shape index: {}]
  %s7 = inlined_call_operand.vmem [shape: f32[1,224], index: 7, kind: input, shape index: {}]
  %s8 = inlined_call_operand.vmem [shape: f32[1,224], index: 8, kind: input, shape index: {}]
  %s9 = inlined_call_operand.hbm [shape: bf16[224,448], index: 9, kind: input, shape index: {}]
  %s10 = inlined_call_operand.hbm [shape: f32[448,448], index: 10, kind: input, shape index: {}]
  %s11 = inlined_call_operand.vmem [shape: f32[1,448], index: 11, kind: input, shape index: {}]
  %s12 = inlined_call_operand.vmem [shape: f32[1,448], index: 12, kind: input, shape index: {}]
  %s13 = inlined_call_operand.hbm [shape: bf16[448,512], index: 13, kind: input, shape index: {}]
  %s14 = inlined_call_operand.hbm [shape: f32[2,512], index: 14, kind: output, shape index: {}]
  %s15 = sld [smem:[#allocation0]]
  $region98: #{tpu_custom_call.1} parent=0
    _
  %s17 = ssub.s32 1, %s15
  %s18 = scalar_select 0, %s17, %s15
  $region1: #{tpu_custom_call.1} parent=0
    #allocation2 [shape = 'u8[1024]{0}', space=vmem, size = 0x400, scoped, tag = 'input window, operand 0, single buffered']
    #allocation3 [shape = 's32[1]{0}', space=sflag, size = 0x4, scoped, tag = 'scoped memory for tpu_custom_call.1']
    #allocation4 [shape = 's32[1]{0}', space=sflag, size = 0x4, scoped, tag = 'scoped memory for tpu_custom_call.1']
    #allocation5 [shape = 'u8[8192]{0}', space=vmem, size = 0x2000, scoped, tag = 'input window, operand 1, single buffered']
    #allocation6 [shape = 's32[1]{0}', space=sflag, size = 0x4, scoped, tag = 'scoped memory for tpu_custom_call.1']
    #allocation7 [shape = 'u8[45056]{0}', space=vmem, size = 0xb000, scoped, tag = 'input window, operand 2, single buffered']
    #allocation8 [shape = 'u8[45056]{0}', space=vmem, size = 0xb000, scoped, tag = 'input window, operand 5, single buffered']
    #allocation9 [shape = 's32[1]{0}', space=sflag, size = 0x4, scoped, tag = 'scoped memory for tpu_custom_call.1']
    #allocation10 [shape = 'u8[229376]{0}', space=vmem, size = 0x38000, scoped, tag = 'input window, operand 6, single buffered']
    #allocation11 [shape = 'u8[229376]{0}', space=vmem, size = 0x38000, scoped, tag = 'input window, operand 9, single buffered']
    #allocation12 [shape = 's32[1]{0}', space=sflag, size = 0x4, scoped, tag = 'scoped memory for tpu_custom_call.1']
    #allocation13 [shape = 'u8[917504]{0}', space=vmem, size = 0xe0000, scoped, tag = 'input window, operand 10, single buffered']
    #allocation14 [shape = 'u8[458752]{0}', space=vmem, size = 0x70000, scoped, tag = 'input window, operand 13, single buffered']
    #allocation15 [shape = 's32[1]{0}', space=sflag, size = 0x4, scoped, tag = 'scoped memory for tpu_custom_call.1']
    #allocation16 [shape = 'u8[4096]{0}', space=vmem, size = 0x1000, scoped, tag = 'output window, operand 0, single buffered']
    %19 = vsyncpa [#allocation3], 0
    %20 = vsyncpa [#allocation6], 0
    %21 = vsyncpa [#allocation9], 0
    %22 = vsyncpa [#allocation12], 0
    %23 = vsyncpa [#allocation15], 0
    %24 = vsyncpa [#allocation4], 0
    // Predicated region
    $region2: #{tpu_custom_call.1} parent=1 // pred_check
      _
    $region3: #{tpu_custom_call.1} parent=1 // pred_check_branch
      %26 = sbr.rel (0) target = $region5
    $region4: #{tpu_custom_call.1} parent=1 // pred_region
      %s28 = ssub.s32 32, 32
      %29 = vsyncadd [#allocation3], %s28
      %s31 = sshll.u32 [#allocation2], 4
      %s32 = int_to_ptr.vmem [resolvable:$true] %s31
      %34 = dma.hbm_to_vmem [thread:$0]  %s0, 32, %s32, [#allocation3]
    $region5: #{tpu_custom_call.1} parent=1 // pred_fallthru
      _
    // Predicated region
    $region6: #{tpu_custom_call.1} parent=1 // pred_check
      _
    $region7: #{tpu_custom_call.1} parent=1 // pred_check_branch
      %36 = sbr.rel (0) target = $region9
    $region8: #{tpu_custom_call.1} parent=1 // pred_region
      %s38 = ssub.s32 256, 256
      %39 = vsyncadd [#allocation6], %s38
      %s40 = sshll.u32 [#allocation5], 4
      %s41 = int_to_ptr.vmem [resolvable:$true] %s40
      %46 = dma.hbm_to_vmem [thread:$0]  %s1, 256, %s41, [#allocation6], 64, 64, 4
    $region9: #{tpu_custom_call.1} parent=1 // pred_fallthru
      _
    // Predicated region
    $region10: #{tpu_custom_call.1} parent=1 // pred_check
      _
    $region11: #{tpu_custom_call.1} parent=1 // pred_check_branch
      %48 = sbr.rel (0) target = $region13
    $region12: #{tpu_custom_call.1} parent=1 // pred_region
      %s50 = ssub.s32 1408, 1408
      %51 = vsyncadd [#allocation6], %s50
      %s52 = sshll.u32 [#allocation7], 4
      %s53 = int_to_ptr.vmem [resolvable:$true] %s52
      %58 = dma.hbm_to_vmem [thread:$0]  %s2, 1408, %s53, [#allocation6], 128, 128, 8
    $region13: #{tpu_custom_call.1} parent=1 // pred_fallthru
      _
    // Predicated region
    $region14: #{tpu_custom_call.1} parent=1 // pred_check
      _
    $region15: #{tpu_custom_call.1} parent=1 // pred_check_branch
      %60 = sbr.rel (0) target = $region17
    $region16: #{tpu_custom_call.1} parent=1 // pred_region
      _
    $region17: #{tpu_custom_call.1} parent=1 // pred_fallthru
      _
    // Predicated region
    $region18: #{tpu_custom_call.1} parent=1 // pred_check
      _
    $region19: #{tpu_custom_call.1} parent=1 // pred_check_branch
      %62 = sbr.rel (0) target = $region21
    $region20: #{tpu_custom_call.1} parent=1 // pred_region
      _
    $region21: #{tpu_custom_call.1} parent=1 // pred_fallthru
      _
    // Predicated region
    $region22: #{tpu_custom_call.1} parent=1 // pred_check
      _
    $region23: #{tpu_custom_call.1} parent=1 // pred_check_branch
      %64 = sbr.rel (0) target = $region25
    $region24: #{tpu_custom_call.1} parent=1 // pred_region
      %s66 = ssub.s32 1408, 1408
      %67 = vsyncadd [#allocation9], %s66
      %s68 = sshll.u32 [#allocation8], 4
      %s69 = int_to_ptr.vmem [resolvable:$true] %s68
      %74 = dma.hbm_to_vmem [thread:$0]  %s5, 1408, %s69, [#allocation9], 128, 128, 8
    $region25: #{tpu_custom_call.1} parent=1 // pred_fallthru
      _
    // Predicated region
    $region26: #{tpu_custom_call.1} parent=1 // pred_check
      _
    $region27: #{tpu_custom_call.1} parent=1 // pred_check_branch
      %76 = sbr.rel (0) target = $region29
    $region28: #{tpu_custom_call.1} parent=1 // pred_region
      %s78 = ssub.s32 7168, 7168
      %79 = vsyncadd [#allocation9], %s78
      %s80 = sshll.u32 [#allocation10], 4
      %s81 = int_to_ptr.vmem [resolvable:$true] %s80
      %86 = dma.hbm_to_vmem [thread:$0]  %s6, 7168, %s81, [#allocation9], 256, 256, 16
    $region29: #{tpu_custom_call.1} parent=1 // pred_fallthru
      _
    // Predicated region
    $region30: #{tpu_custom_call.1} parent=1 // pred_check
      _
    $region31: #{tpu_custom_call.1} parent=1 // pred_check_branch
      %88 = sbr.rel (0) target = $region33
    $region32: #{tpu_custom_call.1} parent=1 // pred_region
      _
    $region33: #{tpu_custom_call.1} parent=1 // pred_fallthru
      _
    // Predicated region
    $region34: #{tpu_custom_call.1} parent=1 // pred_check
      _
    $region35: #{tpu_custom_call.1} parent=1 // pred_check_branch
      %90 = sbr.rel (0) target = $region37
    $region36: #{tpu_custom_call.1} parent=1 // pred_region
      _
    $region37: #{tpu_custom_call.1} parent=1 // pred_fallthru
      _
    // Predicated region
    $region38: #{tpu_custom_call.1} parent=1 // pred_check
      _
    $region39: #{tpu_custom_call.1} parent=1 // pred_check_branch
      %92 = sbr.rel (0) target = $region41
    $region40: #{tpu_custom_call.1} parent=1 // pred_region
      %s94 = ssub.s32 7168, 7168
      %95 = vsyncadd [#allocation12], %s94
      %s96 = sshll.u32 [#allocation11], 4
      %s97 = int_to_ptr.vmem [resolvable:$true] %s96
      %102 = dma.hbm_to_vmem [thread:$0]  %s9, 7168, %s97, [#allocation12], 256, 256, 16
    $region41: #{tpu_custom_call.1} parent=1 // pred_fallthru
      _
    // Predicated region
    $region42: #{tpu_custom_call.1} parent=1 // pred_check
      _
    $region43: #{tpu_custom_call.1} parent=1 // pred_check_branch
      %104 = sbr.rel (0) target = $region45
    $region44: #{tpu_custom_call.1} parent=1 // pred_region
      %s106 = ssub.s32 28672, 28672
      %107 = vsyncadd [#allocation12], %s106
      %s108 = sshll.u32 [#allocation13], 4
      %s109 = int_to_ptr.vmem [resolvable:$true] %s108
      %114 = dma.hbm_to_vmem [thread:$0]  %s10, 28672, %s109, [#allocation12], 512, 512, 32
    $region45: #{tpu_custom_call.1} parent=1 // pred_fallthru
      _
    // Predicated region
    $region46: #{tpu_custom_call.1} parent=1 // pred_check
      _
    $region47: #{tpu_custom_call.1} parent=1 // pred_check_branch
      %116 = sbr.rel (0) target = $region49
    $region48: #{tpu_custom_call.1} parent=1 // pred_region
      _
    $region49: #{tpu_custom_call.1} parent=1 // pred_fallthru
      _
    // Predicated region
    $region50: #{tpu_custom_call.1} parent=1 // pred_check
      _
    $region51: #{tpu_custom_call.1} parent=1 // pred_check_branch
      %118 = sbr.rel (0) target = $region53
    $region52: #{tpu_custom_call.1} parent=1 // pred_region
      _
    $region53: #{tpu_custom_call.1} parent=1 // pred_fallthru
      _
    // Predicated region
    $region54: #{tpu_custom_call.1} parent=1 // pred_check
      _
    $region55: #{tpu_custom_call.1} parent=1 // pred_check_branch
      %120 = sbr.rel (0) target = $region57
    $region56: #{tpu_custom_call.1} parent=1 // pred_region
      %s122 = ssub.s32 14336, 14336
      %123 = vsyncadd [#allocation15], %s122
      %s124 = sshll.u32 [#allocation14], 4
      %s125 = int_to_ptr.vmem [resolvable:$true] %s124
      %130 = dma.hbm_to_vmem [thread:$0]  %s13, 14336, %s125, [#allocation15], 256, 256, 16
    $region57: #{tpu_custom_call.1} parent=1 // pred_fallthru
      _
    // Predicated region
    $region58: #{tpu_custom_call.1} parent=1 // pred_check
      _
    $region59: #{tpu_custom_call.1} parent=1 // pred_check_branch
      %132 = sbr.rel (0) target = $region61
    $region60: #{tpu_custom_call.1} parent=1 // pred_region
      %133 = dma.done [#allocation3], 32
    $region61: #{tpu_custom_call.1} parent=1 // pred_fallthru
      _
    // Predicated region
    $region62: #{tpu_custom_call.1} parent=1 // pred_check
      _
    $region63: #{tpu_custom_call.1} parent=1 // pred_check_branch
      %135 = sbr.rel (0) target = $region65
    $region64: #{tpu_custom_call.1} parent=1 // pred_region
      %136 = dma.done [#allocation6], 256
    $region65: #{tpu_custom_call.1} parent=1 // pred_fallthru
      _
    // Predicated region
    $region66: #{tpu_custom_call.1} parent=1 // pred_check
      _
    $region67: #{tpu_custom_call.1} parent=1 // pred_check_branch
      %138 = sbr.rel (0) target = $region69
    $region68: #{tpu_custom_call.1} parent=1 // pred_region
      %139 = dma.done [#allocation6], 1408
    $region69: #{tpu_custom_call.1} parent=1 // pred_fallthru
      _
    // Predicated region
    $region70: #{tpu_custom_call.1} parent=1 // pred_check
      _
    $region71: #{tpu_custom_call.1} parent=1 // pred_check_branch
      %141 = sbr.rel (0) target = $region73
    $region72: #{tpu_custom_call.1} parent=1 // pred_region
      %142 = dma.done [#allocation9], 1408
    $region73: #{tpu_custom_call.1} parent=1 // pred_fallthru
      _
    // Predicated region
    $region74: #{tpu_custom_call.1} parent=1 // pred_check
      _
    $region75: #{tpu_custom_call.1} parent=1 // pred_check_branch
      %144 = sbr.rel (0) target = $region77
    $region76: #{tpu_custom_call.1} parent=1 // pred_region
      %145 = dma.done [#allocation9], 7168
    $region77: #{tpu_custom_call.1} parent=1 // pred_fallthru
      _
    // Predicated region
    $region78: #{tpu_custom_call.1} parent=1 // pred_check
      _
    $region79: #{tpu_custom_call.1} parent=1 // pred_check_branch
      %147 = sbr.rel (0) target = $region81
    $region80: #{tpu_custom_call.1} parent=1 // pred_region
      %148 = dma.done [#allocation12], 7168
    $region81: #{tpu_custom_call.1} parent=1 // pred_fallthru
      _
    // Predicated region
    $region82: #{tpu_custom_call.1} parent=1 // pred_check
      _
    $region83: #{tpu_custom_call.1} parent=1 // pred_check_branch
      %150 = sbr.rel (0) target = $region85
    $region84: #{tpu_custom_call.1} parent=1 // pred_region
      %151 = dma.done [#allocation12], 28672
    $region85: #{tpu_custom_call.1} parent=1 // pred_fallthru
      _
    // Predicated region
    $region86: #{tpu_custom_call.1} parent=1 // pred_check
      _
    $region87: #{tpu_custom_call.1} parent=1 // pred_check_branch
      %153 = sbr.rel (0) target = $region89
    $region88: #{tpu_custom_call.1} parent=1 // pred_region
      %154 = dma.done [#allocation15], 14336
    $region89: #{tpu_custom_call.1} parent=1 // pred_fallthru
      _
    %v156 = vld [vmem:[#allocation2] sm:$0x3]
    %v157 = vld [vmem:[#allocation5] sm:$0xf]
    %v158 = vld [vmem:[#allocation5 + $0x4] sm:$0xf]
    %v159 = vld [vmem:[#allocation5 + $0x8] sm:$0xf]
    %v160 = vld [vmem:[#allocation5 + $0xc] sm:$0xf]
    %v161 = vld [vmem:[#allocation7] sm:$0xff]
    %v162 = vld [vmem:[#allocation7 + $0x8] sm:$0xff]
    %v163 = vld [vmem:[#allocation7 + $0x10] sm:$0xff]
    %v164 = vld [vmem:[#allocation7 + $0x18] sm:$0xff]
    %v165 = vld [vmem:[#allocation7 + $0x20] sm:$0xff]
    %v166 = vld [vmem:[#allocation7 + $0x28] sm:$0xff]
    %v167 = vld [vmem:[#allocation7 + $0x30] sm:$0xff]
    %v168 = vld [vmem:[#allocation7 + $0x38] sm:$0xff]
    %v169 = vld [vmem:[#allocation7 + $0x40] sm:$0xff]
    %v170 = vld [vmem:[#allocation7 + $0x48] sm:$0xff]
    %v171 = vld [vmem:[#allocation7 + $0x50] sm:$0xf]
    %v172 = vld [vmem:[%s3] sm:$0x1]
    %v173 = vld [vmem:[%s4] sm:$0x1]
    %v174 = vpack.c.bf16 %v156, %v156
    %v179 = vunpack.c.l.b16 %v157
    %v180 = vunpack.c.l.b16 %v158
    %v181 = vunpack.c.l.b16 %v159
    %v182 = vunpack.c.l.b16 %v160
    %v183 = vpack.c.b16 %v180, %v179
    %v184 = vpack.c.b16 %v182, %v181
    %vm187 = vcmask 261120
    %v189 = vsel %vm187, %v174, 0
    %191 = vmatprep.subr.bf16.mxu0 0
    %192 = vmatpush1.bf16.msra.mxu0 %v183
    %193 = vmatprep.subr.bf16.mxu0 0
    %194 = vmatpush1.bf16.msra.mxu0 %v184
    %195 = vmatprep.subr.bf16.mxu0 0
    %196 = vmatpush1.bf16.msra.mxu0 0
    %197 = vmatprep.subr.bf16.mxu0 0
    %198 = vmatpush1.bf16.msra.mxu0 0
    %199 = vmatprep.subr.bf16.mxu0 0
    %200 = vmatpush1.bf16.msra.mxu0 0
    %201 = vmatprep.subr.bf16.mxu0 0
    %202 = vmatpush1.bf16.msra.mxu0 0
    %203 = vmatprep.subr.bf16.mxu0 0
    %204 = vmatpush1.bf16.msra.mxu0 0
    %205 = vmatprep.subr.bf16.mxu0 0
    %206 = vmatpush1.bf16.msra.mxu0 0
    %207 = vmatprep.subr.bf16.mxu0 0
    %208 = vmatpush1.bf16.msra.mxu0 0
    %209 = vmatprep.subr.bf16.mxu0 0
    %210 = vmatpush1.bf16.msra.mxu0 0
    %211 = vmatprep.subr.bf16.mxu0 0
    %212 = vmatpush1.bf16.msra.mxu0 0
    %213 = vmatprep.subr.bf16.mxu0 0
    %214 = vmatpush1.bf16.msra.mxu0 0
    %215 = vmatprep.subr.bf16.mxu0 0
    %216 = vmatpush1.bf16.msra.mxu0 0
    %217 = vmatprep.subr.bf16.mxu0 0
    %218 = vmatpush1.bf16.msra.mxu0 0
    %219 = vmatprep.subr.bf16.mxu0 0
    %220 = vmatpush1.bf16.msra.mxu0 0
    %221 = vmatprep.subr.bf16.mxu0 0
    %222 = vmatpush1.bf16.msra.mxu0 0
    %223 = vmatprep.mubr.bf16.mxu0 0
    %224 = vmatmul.mubr.bf16.gmra.mrb[0].mxu0 %v189
    %v225 = vpop.f32.mrb[0].mxu0
    %v226 = vadd.f32 0.0, %v225
    %v227 = vpop.f32.mrb[0].mxu0
    %v228 = vpop.f32.mrb[0].mxu0
    %v229 = vpop.f32.mrb[0].mxu0
    %230 = vdwg.mxu0
    %vm231 = vcmask 680960
    %v232 = vsel %vm231, %v226, 0.0
    %v233 = vrot.slane %v232, 4
    %v234 = vadd.f32 %v232, %v233
    %v235 = vrot.slane %v234, 2
    %v236 = vadd.f32 %v234, %v235
    %v237 = vrot.slane %v236, 1
    %v238 = vadd.f32 %v236, %v237
    %vm239 = vcmask 687104
    %v241 = vsel %vm239, %v238, 0
    %vm243 = vcmask 1043456
    %v245 = vsel %vm243, %v171, 0
    %247 = vmatprep.subr.mxu0 0.0
    %248 = vmatpush1.msra.mxu0 %v161
    %249 = vmatprep.subr.mxu0 0.0
    %250 = vmatpush1.msra.mxu0 %v162
    %251 = vmatprep.subr.mxu0 0.0
    %252 = vmatpush1.msra.mxu0 %v163
    %253 = vmatprep.subr.mxu0 0.0
    %254 = vmatpush1.msra.mxu0 %v164
    %255 = vmatprep.subr.mxu0 0.0
    %256 = vmatpush1.msra.mxu0 %v165
    %257 = vmatprep.subr.mxu0 0.0
    %258 = vmatpush1.msra.mxu0 %v166
    %259 = vmatprep.subr.mxu0 0.0
    %260 = vmatpush1.msra.mxu0 %v167
    %261 = vmatprep.subr.mxu0 0.0
    %262 = vmatpush1.msra.mxu0 %v168
    %263 = vmatprep.subr.mxu0 0.0
    %264 = vmatpush1.msra.mxu0 %v169
    %265 = vmatprep.subr.mxu0 0.0
    %266 = vmatpush1.msra.mxu0 %v170
    %267 = vmatprep.subr.mxu0 0.0
    %268 = vmatpush1.msra.mxu0 %v245
    %269 = vmatprep.subr.mxu0 0.0
    %270 = vmatpush1.msra.mxu0 0.0
    %271 = vmatprep.subr.mxu0 0.0
    %272 = vmatpush1.msra.mxu0 0.0
    %273 = vmatprep.subr.mxu0 0.0
    %274 = vmatpush1.msra.mxu0 0.0
    %275 = vmatprep.subr.mxu0 0.0
    %276 = vmatpush1.msra.mxu0 0.0
    %277 = vmatprep.subr.mxu0 0.0
    %278 = vmatpush1.msra.mxu0 0.0
    %279 = vmatprep.subr.mxu0 0.0
    %280 = vmatpush1.msra.mxu0 0.0
    %281 = vmatprep.subr.mxu0 0.0
    %282 = vmatpush1.msra.mxu0 0.0
    %283 = vmatprep.subr.mxu0 0.0
    %284 = vmatpush1.msra.mxu0 0.0
    %285 = vmatprep.subr.mxu0 0.0
    %286 = vmatpush1.msra.mxu0 0.0
    %287 = vmatprep.subr.mxu0 0.0
    %288 = vmatpush1.msra.mxu0 0.0
    %289 = vmatprep.subr.mxu0 0.0
    %290 = vmatpush1.msra.mxu0 0.0
    %291 = vmatprep.subr.mxu0 0.0
    %292 = vmatpush1.msra.mxu0 0.0
    %293 = vmatprep.subr.mxu0 0.0
    %294 = vmatpush1.msra.mxu0 0.0
    %295 = vmatprep.subr.mxu0 0.0
    %296 = vmatpush1.msra.mxu0 0.0
    %297 = vmatprep.subr.mxu0 0.0
    %298 = vmatpush1.msra.mxu0 0.0
    %299 = vmatprep.subr.mxu0 0.0
    %300 = vmatpush1.msra.mxu0 0.0
    %301 = vmatprep.subr.mxu0 0.0
    %302 = vmatpush1.msra.mxu0 0.0
    %303 = vmatprep.subr.mxu0 0.0
    %304 = vmatpush1.msra.mxu0 0.0
    %305 = vmatprep.subr.mxu0 0.0
    %306 = vmatpush1.msra.mxu0 0.0
    %307 = vmatprep.subr.mxu0 0.0
    %308 = vmatpush1.msra.mxu0 0.0
    %309 = vmatprep.subr.mxu0 0.0
    %310 = vmatpush1.msra.mxu0 0.0
    %311 = vmatprep.mubr.f32.mxu0 0.0
    %312 = vmatmul.mubr.f32.gmra.mrb[0].mxu0 %v241
    %v313 = vpop.f32.mrb[0].mxu0
    %v314 = vadd.f32 0.0, %v313
    %v315 = vpop.f32.mrb[0].mxu0
    %316 = vdwg.mxu0
    %v317 = vmul.f32 %v314, 0.125
    %v318 = vlaneseq
    %v319 = vshrl.u32 %v318, 7
    %v320 = vsub.s32 0, %v319
    %v321 = vrot.slane %v317, %v320
    %v322 = vsub.f32 %v226, %v321
    %v323 = vmul.f32 %v322, %v322
    %v324 = vsel %vm231, %v323, 0.0
    %v325 = vrot.slane %v324, 4
    %v326 = vadd.f32 %v324, %v325
    %v327 = vrot.slane %v326, 2
    %v328 = vadd.f32 %v326, %v327
    %v329 = vrot.slane %v328, 1
    %v330 = vadd.f32 %v328, %v329
    %v332 = vsel %vm239, %v330, 0
    %334 = vmatprep.subr.mxu0 0.0
    %335 = vmatpush1.msra.mxu0 %v161
    %336 = vmatprep.subr.mxu0 0.0
    %337 = vmatpush1.msra.mxu0 %v162
    %338 = vmatprep.subr.mxu0 0.0
    %339 = vmatpush1.msra.mxu0 %v163
    %340 = vmatprep.subr.mxu0 0.0
    %341 = vmatpush1.msra.mxu0 %v164
    %342 = vmatprep.subr.mxu0 0.0
    %343 = vmatpush1.msra.mxu0 %v165
    %344 = vmatprep.subr.mxu0 0.0
    %345 = vmatpush1.msra.mxu0 %v166
    %346 = vmatprep.subr.mxu0 0.0
    %347 = vmatpush1.msra.mxu0 %v167
    %348 = vmatprep.subr.mxu0 0.0
    %349 = vmatpush1.msra.mxu0 %v168
    %350 = vmatprep.subr.mxu0 0.0
    %351 = vmatpush1.msra.mxu0 %v169
    %352 = vmatprep.subr.mxu0 0.0
    %353 = vmatpush1.msra.mxu0 %v170
    %354 = vmatprep.subr.mxu0 0.0
    %355 = vmatpush1.msra.mxu0 %v245
    %356 = vmatprep.subr.mxu0 0.0
    %357 = vmatpush1.msra.mxu0 0.0
    %358 = vmatprep.subr.mxu0 0.0
    %359 = vmatpush1.msra.mxu0 0.0
    %360 = vmatprep.subr.mxu0 0.0
    %361 = vmatpush1.msra.mxu0 0.0
    %362 = vmatprep.subr.mxu0 0.0
    %363 = vmatpush1.msra.mxu0 0.0
    %364 = vmatprep.subr.mxu0 0.0
    %365 = vmatpush1.msra.mxu0 0.0
    %366 = vmatprep.subr.mxu0 0.0
    %367 = vmatpush1.msra.mxu0 0.0
    %368 = vmatprep.subr.mxu0 0.0
    %369 = vmatpush1.msra.mxu0 0.0
    %370 = vmatprep.subr.mxu0 0.0
    %371 = vmatpush1.msra.mxu0 0.0
    %372 = vmatprep.subr.mxu0 0.0
    %373 = vmatpush1.msra.mxu0 0.0
    %374 = vmatprep.subr.mxu0 0.0
    %375 = vmatpush1.msra.mxu0 0.0
    %376 = vmatprep.subr.mxu0 0.0
    %377 = vmatpush1.msra.mxu0 0.0
    %378 = vmatprep.subr.mxu0 0.0
    %379 = vmatpush1.msra.mxu0 0.0
    %380 = vmatprep.subr.mxu0 0.0
    %381 = vmatpush1.msra.mxu0 0.0
    %382 = vmatprep.subr.mxu0 0.0
    %383 = vmatpush1.msra.mxu0 0.0
    %384 = vmatprep.subr.mxu0 0.0
    %385 = vmatpush1.msra.mxu0 0.0
    %386 = vmatprep.subr.mxu0 0.0
    %387 = vmatpush1.msra.mxu0 0.0
    %388 = vmatprep.subr.mxu0 0.0
    %389 = vmatpush1.msra.mxu0 0.0
    %390 = vmatprep.subr.mxu0 0.0
    %391 = vmatpush1.msra.mxu0 0.0
    %392 = vmatprep.subr.mxu0 0.0
    %393 = vmatpush1.msra.mxu0 0.0
    %394 = vmatprep.subr.mxu0 0.0
    %395 = vmatpush1.msra.mxu0 0.0
    %396 = vmatprep.subr.mxu0 0.0
    %397 = vmatpush1.msra.mxu0 0.0
    %398 = vmatprep.mubr.f32.mxu0 0.0
    %399 = vmatmul.mubr.f32.gmra.mrb[0].mxu0 %v332
    %v400 = vpop.f32.mrb[0].mxu0
    %v401 = vadd.f32 0.0, %v400
    %v402 = vpop.f32.mrb[0].mxu0
    %403 = vdwg.mxu0
    %v404 = vmul.f32 %v401, 0.125
    %v405 = vadd.f32 %v404, 1e-05
    %v406 = vrsqrt.pop %v405
    %v407 = vmul.f32 %v172, %v406
    %v409 = vlaneseq
    %v410 = vshrl.u32 %v409, 7
    %v411 = vsub.s32 0, %v410
    %v412 = vrot.slane %v407, %v411
    %v414 = vmul.f32 %v322, %v412
    %v416 = vlaneseq
    %v417 = vshrl.u32 %v416, 7
    %v418 = vsub.s32 0, %v417
    %v419 = vrot.slane %v173, %v418
    %v421 = vadd.f32 %v414, %v419
    %v422 = vmax.f32 %v421, 0.0
    %v423 = vld [vmem:[#allocation8] sm:$0xff]
    %v424 = vld [vmem:[#allocation8 + $0x8] sm:$0xff]
    %v425 = vld [vmem:[#allocation8 + $0x10] sm:$0xff]
    %v426 = vld [vmem:[#allocation8 + $0x18] sm:$0xff]
    %v427 = vld [vmem:[#allocation8 + $0x20] sm:$0xff]
    %v428 = vld [vmem:[#allocation8 + $0x28] sm:$0xff]
    %v429 = vld [vmem:[#allocation8 + $0x30] sm:$0xff]
    %v430 = vld [vmem:[#allocation8 + $0x38] sm:$0xff]
    %v431 = vld [vmem:[#allocation8 + $0x40] sm:$0xff]
    %v432 = vld [vmem:[#allocation8 + $0x48] sm:$0xff]
    %v433 = vld [vmem:[#allocation8 + $0x50] sm:$0x33]
    %v434 = vld [vmem:[#allocation10] sm:$0xff]
    %v435 = vld [vmem:[#allocation10 + $0x8] sm:$0xff]
    %v436 = vld [vmem:[#allocation10 + $0x10] sm:$0xff]
    %v437 = vld [vmem:[#allocation10 + $0x18] sm:$0xff]
    %v438 = vld [vmem:[#allocation10 + $0x20] sm:$0xff]
    %v439 = vld [vmem:[#allocation10 + $0x28] sm:$0xff]
    %v440 = vld [vmem:[#allocation10 + $0x30] sm:$0xff]
    %v441 = vld [vmem:[#allocation10 + $0x38] sm:$0xff]
    %v442 = vld [vmem:[#allocation10 + $0x40] sm:$0xff]
    %v443 = vld [vmem:[#allocation10 + $0x48] sm:$0xff]
    %v444 = vld [vmem:[#allocation10 + $0x50] sm:$0xff]
    %v445 = vld [vmem:[#allocation10 + $0x58] sm:$0xff]
    %v446 = vld [vmem:[#allocation10 + $0x60] sm:$0xff]
    %v447 = vld [vmem:[#allocation10 + $0x68] sm:$0xff]
    %v448 = vld [vmem:[#allocation10 + $0x70] sm:$0xff]
    %v449 = vld [vmem:[#allocation10 + $0x78] sm:$0xff]
    %v450 = vld [vmem:[#allocation10 + $0x80] sm:$0xff]
    %v451 = vld [vmem:[#allocation10 + $0x88] sm:$0xff]
    %v452 = vld [vmem:[#allocation10 + $0x90] sm:$0xff]
    %v453 = vld [vmem:[#allocation10 + $0x98] sm:$0xff]
    %v454 = vld [vmem:[#allocation10 + $0xa0] sm:$0xff]
    %v455 = vld [vmem:[#allocation10 + $0xa8] sm:$0xff]
    %v456 = vld [vmem:[#allocation10 + $0xb0] sm:$0xff]
    %v457 = vld [vmem:[#allocation10 + $0xb8] sm:$0xff]
    %v458 = vld [vmem:[#allocation10 + $0xc0] sm:$0xff]
    %v459 = vld [vmem:[#allocation10 + $0xc8] sm:$0xff]
    %v460 = vld [vmem:[#allocation10 + $0xd0] sm:$0xff]
    %v461 = vld [vmem:[#allocation10 + $0xd8] sm:$0xff]
    %v462 = vld [vmem:[#allocation10 + $0xe0] sm:$0xff]
    %v463 = vld [vmem:[#allocation10 + $0xe8] sm:$0xff]
    %v464 = vld [vmem:[#allocation10 + $0xf0] sm:$0xff]
    %v465 = vld [vmem:[#allocation10 + $0xf8] sm:$0xff]
    %v466 = vld [vmem:[#allocation10 + $0x100] sm:$0xff]
    %v467 = vld [vmem:[#allocation10 + $0x108] sm:$0xff]
    %v468 = vld [vmem:[#allocation10 + $0x110] sm:$0xff]
    %v469 = vld [vmem:[#allocation10 + $0x118] sm:$0xff]
    %v470 = vld [vmem:[#allocation10 + $0x120] sm:$0xff]
    %v471 = vld [vmem:[#allocation10 + $0x128] sm:$0xff]
    %v472 = vld [vmem:[#allocation10 + $0x130] sm:$0xff]
    %v473 = vld [vmem:[#allocation10 + $0x138] sm:$0xff]
    %v474 = vld [vmem:[#allocation10 + $0x140] sm:$0xff]
    %v475 = vld [vmem:[#allocation10 + $0x148] sm:$0xff]
    %v476 = vld [vmem:[#allocation10 + $0x150] sm:$0xff]
    %v477 = vld [vmem:[#allocation10 + $0x158] sm:$0xff]
    %v478 = vld [vmem:[#allocation10 + $0x160] sm:$0xff]
    %v479 = vld [vmem:[#allocation10 + $0x168] sm:$0xff]
    %v480 = vld [vmem:[#allocation10 + $0x170] sm:$0xff]
    %v481 = vld [vmem:[#allocation10 + $0x178] sm:$0xff]
    %v482 = vld [vmem:[#allocation10 + $0x180] sm:$0xff]
    %v483 = vld [vmem:[#allocation10 + $0x188] sm:$0xff]
    %v484 = vld [vmem:[#allocation10 + $0x190] sm:$0xff]
    %v485 = vld [vmem:[#allocation10 + $0x198] sm:$0xff]
    %v486 = vld [vmem:[#allocation10 + $0x1a0] sm:$0xff]
    %v487 = vld [vmem:[#allocation10 + $0x1a8] sm:$0xff]
    %v488 = vld [vmem:[#allocation10 + $0x1b0] sm:$0xff]
    %v489 = vld [vmem:[#allocation10 + $0x1b8] sm:$0xff]
    %v490 = vld [vmem:[%s7] sm:$0x3]
    %v491 = vld [vmem:[%s8] sm:$0x3]
    %v492 = vpack.c.bf16 %v422, %v422
    %v504 = vunpack.c.l.b16 %v423
    %v505 = vunpack.c.h.b16 %v423
    %v506 = vunpack.c.l.b16 %v424
    %v507 = vunpack.c.h.b16 %v424
    %v508 = vunpack.c.l.b16 %v425
    %v509 = vunpack.c.h.b16 %v425
    %v510 = vunpack.c.l.b16 %v426
    %v511 = vunpack.c.h.b16 %v426
    %v512 = vunpack.c.l.b16 %v427
    %v513 = vunpack.c.h.b16 %v427
    %v514 = vunpack.c.l.b16 %v428
    %v515 = vunpack.c.h.b16 %v428
    %v516 = vunpack.c.l.b16 %v429
    %v517 = vunpack.c.h.b16 %v429
    %v518 = vunpack.c.l.b16 %v430
    %v519 = vunpack.c.h.b16 %v430
    %v520 = vunpack.c.l.b16 %v431
    %v521 = vunpack.c.h.b16 %v431
    %v522 = vunpack.c.l.b16 %v432
    %v523 = vunpack.c.h.b16 %v432
    %v524 = vunpack.c.l.b16 %v433
    %v525 = vunpack.c.h.b16 %v433
    %v526 = vpack.c.b16 %v506, %v504
    %v527 = vpack.c.b16 %v507, %v505
    %v528 = vpack.c.b16 %v510, %v508
    %v529 = vpack.c.b16 %v511, %v509
    %v530 = vpack.c.b16 %v514, %v512
    %v531 = vpack.c.b16 %v515, %v513
    %v532 = vpack.c.b16 %v518, %v516
    %v533 = vpack.c.b16 %v519, %v517
    %v534 = vpack.c.b16 %v522, %v520
    %v535 = vpack.c.b16 %v523, %v521
    %v536 = vpack.c.b16 %v524, %v524
    %v537 = vpack.c.b16 %v525, %v525
    %v549 = vsel %vm239, %v492, 0
    %vm551 = vcmask 1041408
    %v553 = vsel %vm551, %v536, 0
    %v556 = vsel %vm551, %v537, 0
    %558 = vmatprep.subr.bf16.mxu0 %v527
    %559 = vmatpush1.bf16.msra.mxu0 %v526
    %560 = vmatprep.subr.bf16.mxu0 %v529
    %561 = vmatpush1.bf16.msra.mxu0 %v528
    %562 = vmatprep.subr.bf16.mxu0 %v531
    %563 = vmatpush1.bf16.msra.mxu0 %v530
    %564 = vmatprep.subr.bf16.mxu0 %v533
    %565 = vmatpush1.bf16.msra.mxu0 %v532
    %566 = vmatprep.subr.bf16.mxu0 %v535
    %567 = vmatpush1.bf16.msra.mxu0 %v534
    %568 = vmatprep.subr.bf16.mxu0 %v556
    %569 = vmatpush1.bf16.msra.mxu0 %v553
    %570 = vmatprep.subr.bf16.mxu0 0
    %571 = vmatpush1.bf16.msra.mxu0 0
    %572 = vmatprep.subr.bf16.mxu0 0
    %573 = vmatpush1.bf16.msra.mxu0 0
    %574 = vmatprep.subr.bf16.mxu0 0
    %575 = vmatpush1.bf16.msra.mxu0 0
    %576 = vmatprep.subr.bf16.mxu0 0
    %577 = vmatpush1.bf16.msra.mxu0 0
    %578 = vmatprep.subr.bf16.mxu0 0
    %579 = vmatpush1.bf16.msra.mxu0 0
    %580 = vmatprep.subr.bf16.mxu0 0
    %581 = vmatpush1.bf16.msra.mxu0 0
    %582 = vmatprep.subr.bf16.mxu0 0
    %583 = vmatpush1.bf16.msra.mxu0 0
    %584 = vmatprep.subr.bf16.mxu0 0
    %585 = vmatpush1.bf16.msra.mxu0 0
    %586 = vmatprep.subr.bf16.mxu0 0
    %587 = vmatpush1.bf16.msra.mxu0 0
    %588 = vmatprep.subr.bf16.mxu0 0
    %589 = vmatpush1.bf16.msra.mxu0 0
    %590 = vmatprep.mubr.bf16.mxu0 0
    %591 = vmatmul.mubr.bf16.gmra.mrb[0].mxu0 %v549
    %v592 = vpop.f32.mrb[0].mxu0
    %v593 = vadd.f32 0.0, %v592
    %v594 = vpop.f32.mrb[0].mxu0
    %v595 = vadd.f32 0.0, %v594
    %v596 = vpop.f32.mrb[0].mxu0
    %v597 = vpop.f32.mrb[0].mxu0
    %598 = vdwg.mxu0
    %v599 = vsel %vm551, %v593, 0.0
    %v600 = vrot.slane %v599, 4
    %v601 = vadd.f32 %v599, %v600
    %v602 = vrot.slane %v601, 2
    %v603 = vadd.f32 %v601, %v602
    %v604 = vrot.slane %v603, 1
    %v605 = vadd.f32 %v603, %v604
    %vm606 = vcmask 779264
    %v607 = vsel %vm606, %v595, 0.0
    %v608 = vrot.slane %v607, 4
    %v609 = vadd.f32 %v607, %v608
    %v610 = vrot.slane %v609, 2
    %v611 = vadd.f32 %v609, %v610
    %v612 = vrot.slane %v611, 1
    %v613 = vadd.f32 %v611, %v612
    %vm614 = vcmask 785408
    %v616 = vsel %vm614, %v613, 0
    %618 = vmatprep.subr.mxu0 %v435
    %619 = vmatpush1.msra.mxu0 %v434
    %620 = vmatprep.subr.mxu0 %v437
    %621 = vmatpush1.msra.mxu0 %v436
    %622 = vmatprep.subr.mxu0 %v439
    %623 = vmatpush1.msra.mxu0 %v438
    %624 = vmatprep.subr.mxu0 %v441
    %625 = vmatpush1.msra.mxu0 %v440
    %626 = vmatprep.subr.mxu0 %v443
    %627 = vmatpush1.msra.mxu0 %v442
    %628 = vmatprep.subr.mxu0 %v445
    %629 = vmatpush1.msra.mxu0 %v444
    %630 = vmatprep.subr.mxu0 %v447
    %631 = vmatpush1.msra.mxu0 %v446
    %632 = vmatprep.subr.mxu0 %v449
    %633 = vmatpush1.msra.mxu0 %v448
    %634 = vmatprep.subr.mxu0 %v451
    %635 = vmatpush1.msra.mxu0 %v450
    %636 = vmatprep.subr.mxu0 %v453
    %637 = vmatpush1.msra.mxu0 %v452
    %638 = vmatprep.subr.mxu0 %v455
    %639 = vmatpush1.msra.mxu0 %v454
    %640 = vmatprep.subr.mxu0 %v457
    %641 = vmatpush1.msra.mxu0 %v456
    %642 = vmatprep.subr.mxu0 %v459
    %643 = vmatpush1.msra.mxu0 %v458
    %644 = vmatprep.subr.mxu0 %v461
    %645 = vmatpush1.msra.mxu0 %v460
    %646 = vmatprep.subr.mxu0 %v463
    %647 = vmatpush1.msra.mxu0 %v462
    %648 = vmatprep.subr.mxu0 %v465
    %649 = vmatpush1.msra.mxu0 %v464
    %650 = vmatprep.subr.mxu0 %v467
    %651 = vmatpush1.msra.mxu0 %v466
    %652 = vmatprep.subr.mxu0 %v469
    %653 = vmatpush1.msra.mxu0 %v468
    %654 = vmatprep.subr.mxu0 %v471
    %655 = vmatpush1.msra.mxu0 %v470
    %656 = vmatprep.subr.mxu0 %v473
    %657 = vmatpush1.msra.mxu0 %v472
    %658 = vmatprep.subr.mxu0 %v475
    %659 = vmatpush1.msra.mxu0 %v474
    %660 = vmatprep.subr.mxu0 %v477
    %661 = vmatpush1.msra.mxu0 %v476
    %662 = vmatprep.subr.mxu0 %v479
    %663 = vmatpush1.msra.mxu0 %v478
    %664 = vmatprep.subr.mxu0 %v481
    %665 = vmatpush1.msra.mxu0 %v480
    %666 = vmatprep.subr.mxu0 %v483
    %667 = vmatpush1.msra.mxu0 %v482
    %668 = vmatprep.subr.mxu0 %v485
    %669 = vmatpush1.msra.mxu0 %v484
    %670 = vmatprep.subr.mxu0 %v487
    %671 = vmatpush1.msra.mxu0 %v486
    %672 = vmatprep.subr.mxu0 %v489
    %673 = vmatpush1.msra.mxu0 %v488
    %674 = vmatprep.subr.mxu0 0.0
    %675 = vmatpush1.msra.mxu0 0.0
    %676 = vmatprep.subr.mxu0 0.0
    %677 = vmatpush1.msra.mxu0 0.0
    %678 = vmatprep.subr.mxu0 0.0
    %679 = vmatpush1.msra.mxu0 0.0
    %680 = vmatprep.subr.mxu0 0.0
    %681 = vmatpush1.msra.mxu0 0.0
    %682 = vmatprep.mubr.f32.mxu0 %v616
    %683 = vmatmul.mubr.f32.gmra.mrb[0].mxu0 %v605
    %v684 = vpop.f32.mrb[0].mxu0
    %v685 = vadd.f32 0.0, %v684
    %v686 = vpop.f32.mrb[0].mxu0
    %v687 = vadd.f32 0.0, %v686
    %688 = vdwg.mxu0
    %v689 = vmul.f32 %v685, 0.03125
    %v690 = vmul.f32 %v687, 0.03125
    %v691 = vlaneseq
    %v692 = vshrl.u32 %v691, 7
    %v693 = vsub.s32 0, %v692
    %v694 = vrot.slane %v689, %v693
    %v695 = vlaneseq
    %v696 = vshrl.u32 %v695, 7
    %v697 = vsub.s32 0, %v696
    %v698 = vrot.slane %v690, %v697
    %v699 = vsub.f32 %v593, %v694
    %v700 = vsub.f32 %v595, %v698
    %v701 = vmul.f32 %v699, %v699
    %v702 = vmul.f32 %v700, %v700
    %v703 = vsel %vm551, %v701, 0.0
    %v704 = vrot.slane %v703, 4
    %v705 = vadd.f32 %v703, %v704
    %v706 = vrot.slane %v705, 2
    %v707 = vadd.f32 %v705, %v706
    %v708 = vrot.slane %v707, 1
    %v709 = vadd.f32 %v707, %v708
    %v710 = vsel %vm606, %v702, 0.0
    %v711 = vrot.slane %v710, 4
    %v712 = vadd.f32 %v710, %v711
    %v713 = vrot.slane %v712, 2
    %v714 = vadd.f32 %v712, %v713
    %v715 = vrot.slane %v714, 1
    %v716 = vadd.f32 %v714, %v715
    %v718 = vsel %vm614, %v716, 0
    %720 = vmatprep.subr.mxu0 %v435
    %721 = vmatpush1.msra.mxu0 %v434
    %722 = vmatprep.subr.mxu0 %v437
    %723 = vmatpush1.msra.mxu0 %v436
    %724 = vmatprep.subr.mxu0 %v439
    %725 = vmatpush1.msra.mxu0 %v438
    %726 = vmatprep.subr.mxu0 %v441
    %727 = vmatpush1.msra.mxu0 %v440
    %728 = vmatprep.subr.mxu0 %v443
    %729 = vmatpush1.msra.mxu0 %v442
    %730 = vmatprep.subr.mxu0 %v445
    %731 = vmatpush1.msra.mxu0 %v444
    %732 = vmatprep.subr.mxu0 %v447
    %733 = vmatpush1.msra.mxu0 %v446
    %734 = vmatprep.subr.mxu0 %v449
    %735 = vmatpush1.msra.mxu0 %v448
    %736 = vmatprep.subr.mxu0 %v451
    %737 = vmatpush1.msra.mxu0 %v450
    %738 = vmatprep.subr.mxu0 %v453
    %739 = vmatpush1.msra.mxu0 %v452
    %740 = vmatprep.subr.mxu0 %v455
    %741 = vmatpush1.msra.mxu0 %v454
    %742 = vmatprep.subr.mxu0 %v457
    %743 = vmatpush1.msra.mxu0 %v456
    %744 = vmatprep.subr.mxu0 %v459
    %745 = vmatpush1.msra.mxu0 %v458
    %746 = vmatprep.subr.mxu0 %v461
    %747 = vmatpush1.msra.mxu0 %v460
    %748 = vmatprep.subr.mxu0 %v463
    %749 = vmatpush1.msra.mxu0 %v462
    %750 = vmatprep.subr.mxu0 %v465
    %751 = vmatpush1.msra.mxu0 %v464
    %752 = vmatprep.subr.mxu0 %v467
    %753 = vmatpush1.msra.mxu0 %v466
    %754 = vmatprep.subr.mxu0 %v469
    %755 = vmatpush1.msra.mxu0 %v468
    %756 = vmatprep.subr.mxu0 %v471
    %757 = vmatpush1.msra.mxu0 %v470
    %758 = vmatprep.subr.mxu0 %v473
    %759 = vmatpush1.msra.mxu0 %v472
    %760 = vmatprep.subr.mxu0 %v475
    %761 = vmatpush1.msra.mxu0 %v474
    %762 = vmatprep.subr.mxu0 %v477
    %763 = vmatpush1.msra.mxu0 %v476
    %764 = vmatprep.subr.mxu0 %v479
    %765 = vmatpush1.msra.mxu0 %v478
    %766 = vmatprep.subr.mxu0 %v481
    %767 = vmatpush1.msra.mxu0 %v480
    %768 = vmatprep.subr.mxu0 %v483
    %769 = vmatpush1.msra.mxu0 %v482
    %770 = vmatprep.subr.mxu0 %v485
    %771 = vmatpush1.msra.mxu0 %v484
    %772 = vmatprep.subr.mxu0 %v487
    %773 = vmatpush1.msra.mxu0 %v486
    %774 = vmatprep.subr.mxu0 %v489
    %775 = vmatpush1.msra.mxu0 %v488
    %776 = vmatprep.subr.mxu0 0.0
    %777 = vmatpush1.msra.mxu0 0.0
    %778 = vmatprep.subr.mxu0 0.0
    %779 = vmatpush1.msra.mxu0 0.0
    %780 = vmatprep.subr.mxu0 0.0
    %781 = vmatpush1.msra.mxu0 0.0
    %782 = vmatprep.subr.mxu0 0.0
    %783 = vmatpush1.msra.mxu0 0.0
    %784 = vmatprep.mubr.f32.mxu0 %v718
    %785 = vmatmul.mubr.f32.gmra.mrb[0].mxu0 %v709
    %v786 = vpop.f32.mrb[0].mxu0
    %v787 = vadd.f32 0.0, %v786
    %v788 = vpop.f32.mrb[0].mxu0
    %v789 = vadd.f32 0.0, %v788
    %790 = vdwg.mxu0
    %v791 = vmul.f32 %v787, 0.03125
    %v792 = vmul.f32 %v789, 0.03125
    %v793 = vadd.f32 %v791, 1e-05
    %v794 = vadd.f32 %v792, 1e-05
    %v795 = vrsqrt.pop %v793
    %v796 = vrsqrt.pop %v794
    %v799 = vcombine.low %v795, %v796
    %v801 = vunpack.c.l.s4 1966171168
    %v802 = vunpack.c.0.s8 %v801
    %v803 = vlaneseq
    %v804 = vshrl.u32 %v803, 7
    %v805 = vsub.s32 %v802, %v804
    %v806 = vrot.slane %v799, %v805
    %v808 = vunpack.c.l.s4 1966171168
    %v809 = vunpack.c.0.s8 %v808
    %v810 = vlaneseq
    %v811 = vshrl.u32 %v810, 7
    %v812 = vsub.s32 %v809, %v811
    %v813 = vrot.slane %v806, %v812
    %v815 = vmul.f32 %v490, %v813
    %v817 = vlaneseq
    %v818 = vshrl.u32 %v817, 7
    %v819 = vsub.s32 0, %v818
    %v820 = vrot.slane %v815, %v819
    %v821 = vlaneseq
    %v822 = vshrl.u32 %v821, 7
    %v823 = vsub.s32 1, %v822
    %v824 = vrot.slane %v815, %v823
    %v827 = vmul.f32 %v699, %v820
    %v828 = vmul.f32 %v700, %v824
    %v830 = vlaneseq
    %v831 = vshrl.u32 %v830, 7
    %v832 = vsub.s32 0, %v831
    %v833 = vrot.slane %v491, %v832
    %v834 = vlaneseq
    %v835 = vshrl.u32 %v834, 7
    %v836 = vsub.s32 1, %v835
    %v837 = vrot.slane %v491, %v836
    %v840 = vadd.f32 %v827, %v833
    %v841 = vadd.f32 %v828, %v837
    %v842 = vmax.f32 %v840, 0.0
    %v843 = vmax.f32 %v841, 0.0
    %v844 = vld [vmem:[#allocation11] sm:$0xff]
    %v845 = vld [vmem:[#allocation11 + $0x8] sm:$0xff]
    %v846 = vld [vmem:[#allocation11 + $0x10] sm:$0xff]
    %v847 = vld [vmem:[#allocation11 + $0x18] sm:$0xff]
    %v848 = vld [vmem:[#allocation11 + $0x20] sm:$0xff]
    %v849 = vld [vmem:[#allocation11 + $0x28] sm:$0xff]
    %v850 = vld [vmem:[#allocation11 + $0x30] sm:$0xff]
    %v851 = vld [vmem:[#allocation11 + $0x38] sm:$0xff]
    %v852 = vld [vmem:[#allocation11 + $0x40] sm:$0xff]
    %v853 = vld [vmem:[#allocation11 + $0x48] sm:$0xff]
    %v854 = vld [vmem:[#allocation11 + $0x50] sm:$0xff]
    %v855 = vld [vmem:[#allocation11 + $0x58] sm:$0xff]
    %v856 = vld [vmem:[#allocation11 + $0x60] sm:$0xff]
    %v857 = vld [vmem:[#allocation11 + $0x68] sm:$0xff]
    %v858 = vld [vmem:[#allocation11 + $0x70] sm:$0xff]
    %v859 = vld [vmem:[#allocation11 + $0x78] sm:$0xff]
    %v860 = vld [vmem:[#allocation11 + $0x80] sm:$0xff]
    %v861 = vld [vmem:[#allocation11 + $0x88] sm:$0xff]
    %v862 = vld [vmem:[#allocation11 + $0x90] sm:$0xff]
    %v863 = vld [vmem:[#allocation11 + $0x98] sm:$0xff]
    %v864 = vld [vmem:[#allocation11 + $0xa0] sm:$0xff]
    %v865 = vld [vmem:[#allocation11 + $0xa8] sm:$0xff]
    %v866 = vld [vmem:[#allocation11 + $0xb0] sm:$0xff]
    %v867 = vld [vmem:[#allocation11 + $0xb8] sm:$0xff]
    %v868 = vld [vmem:[#allocation11 + $0xc0] sm:$0xff]
    %v869 = vld [vmem:[#allocation11 + $0xc8] sm:$0xff]
    %v870 = vld [vmem:[#allocation11 + $0xd0] sm:$0xff]
    %v871 = vld [vmem:[#allocation11 + $0xd8] sm:$0xff]
    %v872 = vld [vmem:[#allocation11 + $0xe0] sm:$0xff]
    %v873 = vld [vmem:[#allocation11 + $0xe8] sm:$0xff]
    %v874 = vld [vmem:[#allocation11 + $0xf0] sm:$0xff]
    %v875 = vld [vmem:[#allocation11 + $0xf8] sm:$0xff]
    %v876 = vld [vmem:[#allocation11 + $0x100] sm:$0xff]
    %v877 = vld [vmem:[#allocation11 + $0x108] sm:$0xff]
    %v878 = vld [vmem:[#allocation11 + $0x110] sm:$0xff]
    %v879 = vld [vmem:[#allocation11 + $0x118] sm:$0xff]
    %v880 = vld [vmem:[#allocation11 + $0x120] sm:$0xff]
    %v881 = vld [vmem:[#allocation11 + $0x128] sm:$0xff]
    %v882 = vld [vmem:[#allocation11 + $0x130] sm:$0xff]
    %v883 = vld [vmem:[#allocation11 + $0x138] sm:$0xff]
    %v884 = vld [vmem:[#allocation11 + $0x140] sm:$0xff]
    %v885 = vld [vmem:[#allocation11 + $0x148] sm:$0xff]
    %v886 = vld [vmem:[#allocation11 + $0x150] sm:$0xff]
    %v887 = vld [vmem:[#allocation11 + $0x158] sm:$0xff]
    %v888 = vld [vmem:[#allocation11 + $0x160] sm:$0xff]
    %v889 = vld [vmem:[#allocation11 + $0x168] sm:$0xff]
    %v890 = vld [vmem:[#allocation11 + $0x170] sm:$0xff]
    %v891 = vld [vmem:[#allocation11 + $0x178] sm:$0xff]
    %v892 = vld [vmem:[#allocation11 + $0x180] sm:$0xff]
    %v893 = vld [vmem:[#allocation11 + $0x188] sm:$0xff]
    %v894 = vld [vmem:[#allocation11 + $0x190] sm:$0xff]
    %v895 = vld [vmem:[#allocation11 + $0x198] sm:$0xff]
    %v896 = vld [vmem:[#allocation11 + $0x1a0] sm:$0xff]
    %v897 = vld [vmem:[#allocation11 + $0x1a8] sm:$0xff]
    %v898 = vld [vmem:[#allocation11 + $0x1b0] sm:$0xff]
    %v899 = vld [vmem:[#allocation11 + $0x1b8] sm:$0xff]
    %v900 = vld [vmem:[#allocation13] sm:$0xff]
    %v901 = vld [vmem:[#allocation13 + $0x8] sm:$0xff]
    %v902 = vld [vmem:[#allocation13 + $0x10] sm:$0xff]
    %v903 = vld [vmem:[#allocation13 + $0x18] sm:$0xff]
    %v904 = vld [vmem:[#allocation13 + $0x20] sm:$0xff]
    %v905 = vld [vmem:[#allocation13 + $0x28] sm:$0xff]
    %v906 = vld [vmem:[#allocation13 + $0x30] sm:$0xff]
    %v907 = vld [vmem:[#allocation13 + $0x38] sm:$0xff]
    %v908 = vld [vmem:[#allocation13 + $0x40] sm:$0xff]
    %v909 = vld [vmem:[#allocation13 + $0x48] sm:$0xff]
    %v910 = vld [vmem:[#allocation13 + $0x50] sm:$0xff]
    %v911 = vld [vmem:[#allocation13 + $0x58] sm:$0xff]
    %v912 = vld [vmem:[#allocation13 + $0x60] sm:$0xff]
    %v913 = vld [vmem:[#allocation13 + $0x68] sm:$0xff]
    %v914 = vld [vmem:[#allocation13 + $0x70] sm:$0xff]
    %v915 = vld [vmem:[#allocation13 + $0x78] sm:$0xff]
    %v916 = vld [vmem:[#allocation13 + $0x80] sm:$0xff]
    %v917 = vld [vmem:[#allocation13 + $0x88] sm:$0xff]
    %v918 = vld [vmem:[#allocation13 + $0x90] sm:$0xff]
    %v919 = vld [vmem:[#allocation13 + $0x98] sm:$0xff]
    %v920 = vld [vmem:[#allocation13 + $0xa0] sm:$0xff]
    %v921 = vld [vmem:[#allocation13 + $0xa8] sm:$0xff]
    %v922 = vld [vmem:[#allocation13 + $0xb0] sm:$0xff]
    %v923 = vld [vmem:[#allocation13 + $0xb8] sm:$0xff]
    %v924 = vld [vmem:[#allocation13 + $0xc0] sm:$0xff]
    %v925 = vld [vmem:[#allocation13 + $0xc8] sm:$0xff]
    %v926 = vld [vmem:[#allocation13 + $0xd0] sm:$0xff]
    %v927 = vld [vmem:[#allocation13 + $0xd8] sm:$0xff]
    %v928 = vld [vmem:[#allocation13 + $0xe0] sm:$0xff]
    %v929 = vld [vmem:[#allocation13 + $0xe8] sm:$0xff]
    %v930 = vld [vmem:[#allocation13 + $0xf0] sm:$0xff]
    %v931 = vld [vmem:[#allocation13 + $0xf8] sm:$0xff]
    %v932 = vld [vmem:[#allocation13 + $0x100] sm:$0xff]
    %v933 = vld [vmem:[#allocation13 + $0x108] sm:$0xff]
    %v934 = vld [vmem:[#allocation13 + $0x110] sm:$0xff]
    %v935 = vld [vmem:[#allocation13 + $0x118] sm:$0xff]
    %v936 = vld [vmem:[#allocation13 + $0x120] sm:$0xff]
    %v937 = vld [vmem:[#allocation13 + $0x128] sm:$0xff]
    %v938 = vld [vmem:[#allocation13 + $0x130] sm:$0xff]
    %v939 = vld [vmem:[#allocation13 + $0x138] sm:$0xff]
    %v940 = vld [vmem:[#allocation13 + $0x140] sm:$0xff]
    %v941 = vld [vmem:[#allocation13 + $0x148] sm:$0xff]
    %v942 = vld [vmem:[#allocation13 + $0x150] sm:$0xff]
    %v943 = vld [vmem:[#allocation13 + $0x158] sm:$0xff]
    %v944 = vld [vmem:[#allocation13 + $0x160] sm:$0xff]
    %v945 = vld [vmem:[#allocation13 + $0x168] sm:$0xff]
    %v946 = vld [vmem:[#allocation13 + $0x170] sm:$0xff]
    %v947 = vld [vmem:[#allocation13 + $0x178] sm:$0xff]
    %v948 = vld [vmem:[#allocation13 + $0x180] sm:$0xff]
    %v949 = vld [vmem:[#allocation13 + $0x188] sm:$0xff]
    %v950 = vld [vmem:[#allocation13 + $0x190] sm:$0xff]
    %v951 = vld [vmem:[#allocation13 + $0x198] sm:$0xff]
    %v952 = vld [vmem:[#allocation13 + $0x1a0] sm:$0xff]
    %v953 = vld [vmem:[#allocation13 + $0x1a8] sm:$0xff]
    %v954 = vld [vmem:[#allocation13 + $0x1b0] sm:$0xff]
    %v955 = vld [vmem:[#allocation13 + $0x1b8] sm:$0xff]
    %v956 = vld [vmem:[#allocation13 + $0x1c0] sm:$0xff]
    %v957 = vld [vmem:[#allocation13 + $0x1c8] sm:$0xff]
    %v958 = vld [vmem:[#allocation13 + $0x1d0] sm:$0xff]
    %v959 = vld [vmem:[#allocation13 + $0x1d8] sm:$0xff]
    %v960 = vld [vmem:[#allocation13 + $0x1e0] sm:$0xff]
    %v961 = vld [vmem:[#allocation13 + $0x1e8] sm:$0xff]
    %v962 = vld [vmem:[#allocation13 + $0x1f0] sm:$0xff]
    %v963 = vld [vmem:[#allocation13 + $0x1f8] sm:$0xff]
    %v964 = vld [vmem:[#allocation13 + $0x200] sm:$0xff]
    %v965 = vld [vmem:[#allocation13 + $0x208] sm:$0xff]
    %v966 = vld [vmem:[#allocation13 + $0x210] sm:$0xff]
    %v967 = vld [vmem:[#allocation13 + $0x218] sm:$0xff]
    %v968 = vld [vmem:[#allocation13 + $0x220] sm:$0xff]
    %v969 = vld [vmem:[#allocation13 + $0x228] sm:$0xff]
    %v970 = vld [vmem:[#allocation13 + $0x230] sm:$0xff]
    %v971 = vld [vmem:[#allocation13 + $0x238] sm:$0xff]
    %v972 = vld [vmem:[#allocation13 + $0x240] sm:$0xff]
    %v973 = vld [vmem:[#allocation13 + $0x248] sm:$0xff]
    %v974 = vld [vmem:[#allocation13 + $0x250] sm:$0xff]
    %v975 = vld [vmem:[#allocation13 + $0x258] sm:$0xff]
    %v976 = vld [vmem:[#allocation13 + $0x260] sm:$0xff]
    %v977 = vld [vmem:[#allocation13 + $0x268] sm:$0xff]
    %v978 = vld [vmem:[#allocation13 + $0x270] sm:$0xff]
    %v979 = vld [vmem:[#allocation13 + $0x278] sm:$0xff]
    %v980 = vld [vmem:[#allocation13 + $0x280] sm:$0xff]
    %v981 = vld [vmem:[#allocation13 + $0x288] sm:$0xff]
    %v982 = vld [vmem:[#allocation13 + $0x290] sm:$0xff]
    %v983 = vld [vmem:[#allocation13 + $0x298] sm:$0xff]
    %v984 = vld [vmem:[#allocation13 + $0x2a0] sm:$0xff]
    %v985 = vld [vmem:[#allocation13 + $0x2a8] sm:$0xff]
    %v986 = vld [vmem:[#allocation13 + $0x2b0] sm:$0xff]
    %v987 = vld [vmem:[#allocation13 + $0x2b8] sm:$0xff]
    %v988 = vld [vmem:[#allocation13 + $0x2c0] sm:$0xff]
    %v989 = vld [vmem:[#allocation13 + $0x2c8] sm:$0xff]
    %v990 = vld [vmem:[#allocation13 + $0x2d0] sm:$0xff]
    %v991 = vld [vmem:[#allocation13 + $0x2d8] sm:$0xff]
    %v992 = vld [vmem:[#allocation13 + $0x2e0] sm:$0xff]
    %v993 = vld [vmem:[#allocation13 + $0x2e8] sm:$0xff]
    %v994 = vld [vmem:[#allocation13 + $0x2f0] sm:$0xff]
    %v995 = vld [vmem:[#allocation13 + $0x2f8] sm:$0xff]
    %v996 = vld [vmem:[#allocation13 + $0x300] sm:$0xff]
    %v997 = vld [vmem:[#allocation13 + $0x308] sm:$0xff]
    %v998 = vld [vmem:[#allocation13 + $0x310] sm:$0xff]
    %v999 = vld [vmem:[#allocation13 + $0x318] sm:$0xff]
    %v1000 = vld [vmem:[#allocation13 + $0x320] sm:$0xff]
    %v1001 = vld [vmem:[#allocation13 + $0x328] sm:$0xff]
    %v1002 = vld [vmem:[#allocation13 + $0x330] sm:$0xff]
    %v1003 = vld [vmem:[#allocation13 + $0x338] sm:$0xff]
    %v1004 = vld [vmem:[#allocation13 + $0x340] sm:$0xff]
    %v1005 = vld [vmem:[#allocation13 + $0x348] sm:$0xff]
    %v1006 = vld [vmem:[#allocation13 + $0x350] sm:$0xff]
    %v1007 = vld [vmem:[#allocation13 + $0x358] sm:$0xff]
    %v1008 = vld [vmem:[#allocation13 + $0x360] sm:$0xff]
    %v1009 = vld [vmem:[#allocation13 + $0x368] sm:$0xff]
    %v1010 = vld [vmem:[#allocation13 + $0x370] sm:$0xff]
    %v1011 = vld [vmem:[#allocation13 + $0x378] sm:$0xff]
    %v1012 = vld [vmem:[#allocation13 + $0x380] sm:$0xff]
    %v1013 = vld [vmem:[#allocation13 + $0x388] sm:$0xff]
    %v1014 = vld [vmem:[#allocation13 + $0x390] sm:$0xff]
    %v1015 = vld [vmem:[#allocation13 + $0x398] sm:$0xff]
    %v1016 = vld [vmem:[#allocation13 + $0x3a0] sm:$0xff]
    %v1017 = vld [vmem:[#allocation13 + $0x3a8] sm:$0xff]
    %v1018 = vld [vmem:[#allocation13 + $0x3b0] sm:$0xff]
    %v1019 = vld [vmem:[#allocation13 + $0x3b8] sm:$0xff]
    %v1020 = vld [vmem:[#allocation13 + $0x3c0] sm:$0xff]
    %v1021 = vld [vmem:[#allocation13 + $0x3c8] sm:$0xff]
    %v1022 = vld [vmem:[#allocation13 + $0x3d0] sm:$0xff]
    %v1023 = vld [vmem:[#allocation13 + $0x3d8] sm:$0xff]
    %v1024 = vld [vmem:[#allocation13 + $0x3e0] sm:$0xff]
    %v1025 = vld [vmem:[#allocation13 + $0x3e8] sm:$0xff]
    %v1026 = vld [vmem:[#allocation13 + $0x3f0] sm:$0xff]
    %v1027 = vld [vmem:[#allocation13 + $0x3f8] sm:$0xff]
    %v1028 = vld [vmem:[#allocation13 + $0x400] sm:$0xff]
    %v1029 = vld [vmem:[#allocation13 + $0x408] sm:$0xff]
    %v1030 = vld [vmem:[#allocation13 + $0x410] sm:$0xff]
    %v1031 = vld [vmem:[#allocation13 + $0x418] sm:$0xff]
    %v1032 = vld [vmem:[#allocation13 + $0x420] sm:$0xff]
    %v1033 = vld [vmem:[#allocation13 + $0x428] sm:$0xff]
    %v1034 = vld [vmem:[#allocation13 + $0x430] sm:$0xff]
    %v1035 = vld [vmem:[#allocation13 + $0x438] sm:$0xff]
    %v1036 = vld [vmem:[#allocation13 + $0x440] sm:$0xff]
    %v1037 = vld [vmem:[#allocation13 + $0x448] sm:$0xff]
    %v1038 = vld [vmem:[#allocation13 + $0x450] sm:$0xff]
    %v1039 = vld [vmem:[#allocation13 + $0x458] sm:$0xff]
    %v1040 = vld [vmem:[#allocation13 + $0x460] sm:$0xff]
    %v1041 = vld [vmem:[#allocation13 + $0x468] sm:$0xff]
    %v1042 = vld [vmem:[#allocation13 + $0x470] sm:$0xff]
    %v1043 = vld [vmem:[#allocation13 + $0x478] sm:$0xff]
    %v1044 = vld [vmem:[#allocation13 + $0x480] sm:$0xff]
    %v1045 = vld [vmem:[#allocation13 + $0x488] sm:$0xff]
    %v1046 = vld [vmem:[#allocation13 + $0x490] sm:$0xff]
    %v1047 = vld [vmem:[#allocation13 + $0x498] sm:$0xff]
    %v1048 = vld [vmem:[#allocation13 + $0x4a0] sm:$0xff]
    %v1049 = vld [vmem:[#allocation13 + $0x4a8] sm:$0xff]
    %v1050 = vld [vmem:[#allocation13 + $0x4b0] sm:$0xff]
    %v1051 = vld [vmem:[#allocation13 + $0x4b8] sm:$0xff]
    %v1052 = vld [vmem:[#allocation13 + $0x4c0] sm:$0xff]
    %v1053 = vld [vmem:[#allocation13 + $0x4c8] sm:$0xff]
    %v1054 = vld [vmem:[#allocation13 + $0x4d0] sm:$0xff]
    %v1055 = vld [vmem:[#allocation13 + $0x4d8] sm:$0xff]
    %v1056 = vld [vmem:[#allocation13 + $0x4e0] sm:$0xff]
    %v1057 = vld [vmem:[#allocation13 + $0x4e8] sm:$0xff]
    %v1058 = vld [vmem:[#allocation13 + $0x4f0] sm:$0xff]
    %v1059 = vld [vmem:[#allocation13 + $0x4f8] sm:$0xff]
    %v1060 = vld [vmem:[#allocation13 + $0x500] sm:$0xff]
    %v1061 = vld [vmem:[#allocation13 + $0x508] sm:$0xff]
    %v1062 = vld [vmem:[#allocation13 + $0x510] sm:$0xff]
    %v1063 = vld [vmem:[#allocation13 + $0x518] sm:$0xff]
    %v1064 = vld [vmem:[#allocation13 + $0x520] sm:$0xff]
    %v1065 = vld [vmem:[#allocation13 + $0x528] sm:$0xff]
    %v1066 = vld [vmem:[#allocation13 + $0x530] sm:$0xff]
    %v1067 = vld [vmem:[#allocation13 + $0x538] sm:$0xff]
    %v1068 = vld [vmem:[#allocation13 + $0x540] sm:$0xff]
    %v1069 = vld [vmem:[#allocation13 + $0x548] sm:$0xff]
    %v1070 = vld [vmem:[#allocation13 + $0x550] sm:$0xff]
    %v1071 = vld [vmem:[#allocation13 + $0x558] sm:$0xff]
    %v1072 = vld [vmem:[#allocation13 + $0x560] sm:$0xff]
    %v1073 = vld [vmem:[#allocation13 + $0x568] sm:$0xff]
    %v1074 = vld [vmem:[#allocation13 + $0x570] sm:$0xff]
    %v1075 = vld [vmem:[#allocation13 + $0x578] sm:$0xff]
    %v1076 = vld [vmem:[#allocation13 + $0x580] sm:$0xff]
    %v1077 = vld [vmem:[#allocation13 + $0x588] sm:$0xff]
    %v1078 = vld [vmem:[#allocation13 + $0x590] sm:$0xff]
    %v1079 = vld [vmem:[#allocation13 + $0x598] sm:$0xff]
    %v1080 = vld [vmem:[#allocation13 + $0x5a0] sm:$0xff]
    %v1081 = vld [vmem:[#allocation13 + $0x5a8] sm:$0xff]
    %v1082 = vld [vmem:[#allocation13 + $0x5b0] sm:$0xff]
    %v1083 = vld [vmem:[#allocation13 + $0x5b8] sm:$0xff]
    %v1084 = vld [vmem:[#allocation13 + $0x5c0] sm:$0xff]
    %v1085 = vld [vmem:[#allocation13 + $0x5c8] sm:$0xff]
    %v1086 = vld [vmem:[#allocation13 + $0x5d0] sm:$0xff]
    %v1087 = vld [vmem:[#allocation13 + $0x5d8] sm:$0xff]
    %v1088 = vld [vmem:[#allocation13 + $0x5e0] sm:$0xff]
    %v1089 = vld [vmem:[#allocation13 + $0x5e8] sm:$0xff]
    %v1090 = vld [vmem:[#allocation13 + $0x5f0] sm:$0xff]
    %v1091 = vld [vmem:[#allocation13 + $0x5f8] sm:$0xff]
    %v1092 = vld [vmem:[#allocation13 + $0x600] sm:$0xff]
    %v1093 = vld [vmem:[#allocation13 + $0x608] sm:$0xff]
    %v1094 = vld [vmem:[#allocation13 + $0x610] sm:$0xff]
    %v1095 = vld [vmem:[#allocation13 + $0x618] sm:$0xff]
    %v1096 = vld [vmem:[#allocation13 + $0x620] sm:$0xff]
    %v1097 = vld [vmem:[#allocation13 + $0x628] sm:$0xff]
    %v1098 = vld [vmem:[#allocation13 + $0x630] sm:$0xff]
    %v1099 = vld [vmem:[#allocation13 + $0x638] sm:$0xff]
    %v1100 = vld [vmem:[#allocation13 + $0x640] sm:$0xff]
    %v1101 = vld [vmem:[#allocation13 + $0x648] sm:$0xff]
    %v1102 = vld [vmem:[#allocation13 + $0x650] sm:$0xff]
    %v1103 = vld [vmem:[#allocation13 + $0x658] sm:$0xff]
    %v1104 = vld [vmem:[#allocation13 + $0x660] sm:$0xff]
    %v1105 = vld [vmem:[#allocation13 + $0x668] sm:$0xff]
    %v1106 = vld [vmem:[#allocation13 + $0x670] sm:$0xff]
    %v1107 = vld [vmem:[#allocation13 + $0x678] sm:$0xff]
    %v1108 = vld [vmem:[#allocation13 + $0x680] sm:$0xff]
    %v1109 = vld [vmem:[#allocation13 + $0x688] sm:$0xff]
    %v1110 = vld [vmem:[#allocation13 + $0x690] sm:$0xff]
    %v1111 = vld [vmem:[#allocation13 + $0x698] sm:$0xff]
    %v1112 = vld [vmem:[#allocation13 + $0x6a0] sm:$0xff]
    %v1113 = vld [vmem:[#allocation13 + $0x6a8] sm:$0xff]
    %v1114 = vld [vmem:[#allocation13 + $0x6b0] sm:$0xff]
    %v1115 = vld [vmem:[#allocation13 + $0x6b8] sm:$0xff]
    %v1116 = vld [vmem:[#allocation13 + $0x6c0] sm:$0xff]
    %v1117 = vld [vmem:[#allocation13 + $0x6c8] sm:$0xff]
    %v1118 = vld [vmem:[#allocation13 + $0x6d0] sm:$0xff]
    %v1119 = vld [vmem:[#allocation13 + $0x6d8] sm:$0xff]
    %v1120 = vld [vmem:[#allocation13 + $0x6e0] sm:$0xff]
    %v1121 = vld [vmem:[#allocation13 + $0x6e8] sm:$0xff]
    %v1122 = vld [vmem:[#allocation13 + $0x6f0] sm:$0xff]
    %v1123 = vld [vmem:[#allocation13 + $0x6f8] sm:$0xff]
    %v1124 = vld [vmem:[%s11] sm:$0xf]
    %v1125 = vld [vmem:[%s12] sm:$0xf]
    %v1126 = vpack.c.bf16 %v842, %v842
    %v1127 = vpack.c.bf16 %v843, %v843
    %v1184 = vunpack.c.l.b16 %v844
    %v1185 = vunpack.c.h.b16 %v844
    %v1186 = vunpack.c.l.b16 %v845
    %v1187 = vunpack.c.h.b16 %v845
    %v1188 = vunpack.c.l.b16 %v846
    %v1189 = vunpack.c.h.b16 %v846
    %v1190 = vunpack.c.l.b16 %v847
    %v1191 = vunpack.c.h.b16 %v847
    %v1192 = vunpack.c.l.b16 %v848
    %v1193 = vunpack.c.h.b16 %v848
    %v1194 = vunpack.c.l.b16 %v849
    %v1195 = vunpack.c.h.b16 %v849
    %v1196 = vunpack.c.l.b16 %v850
    %v1197 = vunpack.c.h.b16 %v850
    %v1198 = vunpack.c.l.b16 %v851
    %v1199 = vunpack.c.h.b16 %v851
    %v1200 = vunpack.c.l.b16 %v852
    %v1201 = vunpack.c.h.b16 %v852
    %v1202 = vunpack.c.l.b16 %v853
    %v1203 = vunpack.c.h.b16 %v853
    %v1204 = vunpack.c.l.b16 %v854
    %v1205 = vunpack.c.h.b16 %v854
    %v1206 = vunpack.c.l.b16 %v855
    %v1207 = vunpack.c.h.b16 %v855
    %v1208 = vunpack.c.l.b16 %v856
    %v1209 = vunpack.c.h.b16 %v856
    %v1210 = vunpack.c.l.b16 %v857
    %v1211 = vunpack.c.h.b16 %v857
    %v1212 = vunpack.c.l.b16 %v858
    %v1213 = vunpack.c.h.b16 %v858
    %v1214 = vunpack.c.l.b16 %v859
    %v1215 = vunpack.c.h.b16 %v859
    %v1216 = vunpack.c.l.b16 %v860
    %v1217 = vunpack.c.h.b16 %v860
    %v1218 = vunpack.c.l.b16 %v861
    %v1219 = vunpack.c.h.b16 %v861
    %v1220 = vunpack.c.l.b16 %v862
    %v1221 = vunpack.c.h.b16 %v862
    %v1222 = vunpack.c.l.b16 %v863
    %v1223 = vunpack.c.h.b16 %v863
    %v1224 = vunpack.c.l.b16 %v864
    %v1225 = vunpack.c.h.b16 %v864
    %v1226 = vunpack.c.l.b16 %v865
    %v1227 = vunpack.c.h.b16 %v865
    %v1228 = vunpack.c.l.b16 %v866
    %v1229 = vunpack.c.h.b16 %v866
    %v1230 = vunpack.c.l.b16 %v867
    %v1231 = vunpack.c.h.b16 %v867
    %v1232 = vunpack.c.l.b16 %v868
    %v1233 = vunpack.c.h.b16 %v868
    %v1234 = vunpack.c.l.b16 %v869
    %v1235 = vunpack.c.h.b16 %v869
    %v1236 = vunpack.c.l.b16 %v870
    %v1237 = vunpack.c.h.b16 %v870
    %v1238 = vunpack.c.l.b16 %v871
    %v1239 = vunpack.c.h.b16 %v871
    %v1240 = vunpack.c.l.b16 %v872
    %v1241 = vunpack.c.h.b16 %v872
    %v1242 = vunpack.c.l.b16 %v873
    %v1243 = vunpack.c.h.b16 %v873
    %v1244 = vunpack.c.l.b16 %v874
    %v1245 = vunpack.c.h.b16 %v874
    %v1246 = vunpack.c.l.b16 %v875
    %v1247 = vunpack.c.h.b16 %v875
    %v1248 = vunpack.c.l.b16 %v876
    %v1249 = vunpack.c.h.b16 %v876
    %v1250 = vunpack.c.l.b16 %v877
    %v1251 = vunpack.c.h.b16 %v877
    %v1252 = vunpack.c.l.b16 %v878
    %v1253 = vunpack.c.h.b16 %v878
    %v1254 = vunpack.c.l.b16 %v879
    %v1255 = vunpack.c.h.b16 %v879
    %v1256 = vunpack.c.l.b16 %v880
    %v1257 = vunpack.c.h.b16 %v880
    %v1258 = vunpack.c.l.b16 %v881
    %v1259 = vunpack.c.h.b16 %v881
    %v1260 = vunpack.c.l.b16 %v882
    %v1261 = vunpack.c.h.b16 %v882
    %v1262 = vunpack.c.l.b16 %v883
    %v1263 = vunpack.c.h.b16 %v883
    %v1264 = vunpack.c.l.b16 %v884
    %v1265 = vunpack.c.h.b16 %v884
    %v1266 = vunpack.c.l.b16 %v885
    %v1267 = vunpack.c.h.b16 %v885
    %v1268 = vunpack.c.l.b16 %v886
    %v1269 = vunpack.c.h.b16 %v886
    %v1270 = vunpack.c.l.b16 %v887
    %v1271 = vunpack.c.h.b16 %v887
    %v1272 = vunpack.c.l.b16 %v888
    %v1273 = vunpack.c.h.b16 %v888
    %v1274 = vunpack.c.l.b16 %v889
    %v1275 = vunpack.c.h.b16 %v889
    %v1276 = vunpack.c.l.b16 %v890
    %v1277 = vunpack.c.h.b16 %v890
    %v1278 = vunpack.c.l.b16 %v891
    %v1279 = vunpack.c.h.b16 %v891
    %v1280 = vunpack.c.l.b16 %v892
    %v1281 = vunpack.c.h.b16 %v892
    %v1282 = vunpack.c.l.b16 %v893
    %v1283 = vunpack.c.h.b16 %v893
    %v1284 = vunpack.c.l.b16 %v894
    %v1285 = vunpack.c.h.b16 %v894
    %v1286 = vunpack.c.l.b16 %v895
    %v1287 = vunpack.c.h.b16 %v895
    %v1288 = vunpack.c.l.b16 %v896
    %v1289 = vunpack.c.h.b16 %v896
    %v1290 = vunpack.c.l.b16 %v897
    %v1291 = vunpack.c.h.b16 %v897
    %v1292 = vunpack.c.l.b16 %v898
    %v1293 = vunpack.c.h.b16 %v898
    %v1294 = vunpack.c.l.b16 %v899
    %v1295 = vunpack.c.h.b16 %v899
    %v1296 = vpack.c.b16 %v1188, %v1184
    %v1297 = vpack.c.b16 %v1189, %v1185
    %v1298 = vpack.c.b16 %v1190, %v1186
    %v1299 = vpack.c.b16 %v1191, %v1187
    %v1300 = vpack.c.b16 %v1196, %v1192
    %v1301 = vpack.c.b16 %v1197, %v1193
    %v1302 = vpack.c.b16 %v1198, %v1194
    %v1303 = vpack.c.b16 %v1199, %v1195
    %v1304 = vpack.c.b16 %v1204, %v1200
    %v1305 = vpack.c.b16 %v1205, %v1201
    %v1306 = vpack.c.b16 %v1206, %v1202
    %v1307 = vpack.c.b16 %v1207, %v1203
    %v1308 = vpack.c.b16 %v1212, %v1208
    %v1309 = vpack.c.b16 %v1213, %v1209
    %v1310 = vpack.c.b16 %v1214, %v1210
    %v1311 = vpack.c.b16 %v1215, %v1211
    %v1312 = vpack.c.b16 %v1220, %v1216
    %v1313 = vpack.c.b16 %v1221, %v1217
    %v1314 = vpack.c.b16 %v1222, %v1218
    %v1315 = vpack.c.b16 %v1223, %v1219
    %v1316 = vpack.c.b16 %v1228, %v1224
    %v1317 = vpack.c.b16 %v1229, %v1225
    %v1318 = vpack.c.b16 %v1230, %v1226
    %v1319 = vpack.c.b16 %v1231, %v1227
    %v1320 = vpack.c.b16 %v1236, %v1232
    %v1321 = vpack.c.b16 %v1237, %v1233
    %v1322 = vpack.c.b16 %v1238, %v1234
    %v1323 = vpack.c.b16 %v1239, %v1235
    %v1324 = vpack.c.b16 %v1244, %v1240
    %v1325 = vpack.c.b16 %v1245, %v1241
    %v1326 = vpack.c.b16 %v1246, %v1242
    %v1327 = vpack.c.b16 %v1247, %v1243
    %v1328 = vpack.c.b16 %v1252, %v1248
    %v1329 = vpack.c.b16 %v1253, %v1249
    %v1330 = vpack.c.b16 %v1254, %v1250
    %v1331 = vpack.c.b16 %v1255, %v1251
    %v1332 = vpack.c.b16 %v1260, %v1256
    %v1333 = vpack.c.b16 %v1261, %v1257
    %v1334 = vpack.c.b16 %v1262, %v1258
    %v1335 = vpack.c.b16 %v1263, %v1259
    %v1336 = vpack.c.b16 %v1268, %v1264
    %v1337 = vpack.c.b16 %v1269, %v1265
    %v1338 = vpack.c.b16 %v1270, %v1266
    %v1339 = vpack.c.b16 %v1271, %v1267
    %v1340 = vpack.c.b16 %v1276, %v1272
    %v1341 = vpack.c.b16 %v1277, %v1273
    %v1342 = vpack.c.b16 %v1278, %v1274
    %v1343 = vpack.c.b16 %v1279, %v1275
    %v1344 = vpack.c.b16 %v1284, %v1280
    %v1345 = vpack.c.b16 %v1285, %v1281
    %v1346 = vpack.c.b16 %v1286, %v1282
    %v1347 = vpack.c.b16 %v1287, %v1283
    %v1348 = vpack.c.b16 %v1292, %v1288
    %v1349 = vpack.c.b16 %v1293, %v1289
    %v1350 = vpack.c.b16 %v1294, %v1290
    %v1351 = vpack.c.b16 %v1295, %v1291
    %v1409 = vsel %vm614, %v1127, 0
    %1411 = vmatprep.subr.bf16.mxu0 %v1297
    %1412 = vmatpush1.bf16.msra.mxu0 %v1296
    %1413 = vmatprep.subr.bf16.mxu0 %v1301
    %1414 = vmatpush1.bf16.msra.mxu0 %v1300
    %1415 = vmatprep.subr.bf16.mxu0 %v1305
    %1416 = vmatpush1.bf16.msra.mxu0 %v1304
    %1417 = vmatprep.subr.bf16.mxu0 %v1309
    %1418 = vmatpush1.bf16.msra.mxu0 %v1308
    %1419 = vmatprep.subr.bf16.mxu0 %v1313
    %1420 = vmatpush1.bf16.msra.mxu0 %v1312
    %1421 = vmatprep.subr.bf16.mxu0 %v1317
    %1422 = vmatpush1.bf16.msra.mxu0 %v1316
    %1423 = vmatprep.subr.bf16.mxu0 %v1321
    %1424 = vmatpush1.bf16.msra.mxu0 %v1320
    %1425 = vmatprep.subr.bf16.mxu0 %v1325
    %1426 = vmatpush1.bf16.msra.mxu0 %v1324
    %1427 = vmatprep.subr.bf16.mxu0 %v1329
    %1428 = vmatpush1.bf16.msra.mxu0 %v1328
    %1429 = vmatprep.subr.bf16.mxu0 %v1333
    %1430 = vmatpush1.bf16.msra.mxu0 %v1332
    %1431 = vmatprep.subr.bf16.mxu0 %v1337
    %1432 = vmatpush1.bf16.msra.mxu0 %v1336
    %1433 = vmatprep.subr.bf16.mxu0 %v1341
    %1434 = vmatpush1.bf16.msra.mxu0 %v1340
    %1435 = vmatprep.subr.bf16.mxu0 %v1345
    %1436 = vmatpush1.bf16.msra.mxu0 %v1344
    %1437 = vmatprep.subr.bf16.mxu0 %v1349
    %1438 = vmatpush1.bf16.msra.mxu0 %v1348
    %1439 = vmatprep.subr.bf16.mxu0 0
    %1440 = vmatpush1.bf16.msra.mxu0 0
    %1441 = vmatprep.subr.bf16.mxu0 0
    %1442 = vmatpush1.bf16.msra.mxu0 0
    %1443 = vmatprep.mubr.bf16.mxu0 %v1409
    %1444 = vmatmul.mubr.bf16.gmra.mrb[0].mxu0 %v1126
    %v1445 = vpop.f32.mrb[0].mxu0
    %v1446 = vadd.f32 0.0, %v1445
    %v1447 = vpop.f32.mrb[0].mxu0
    %v1448 = vadd.f32 0.0, %v1447
    %v1449 = vpop.f32.mrb[0].mxu0
    %v1450 = vpop.f32.mrb[0].mxu0
    %1451 = vdwg.mxu0
    %1452 = vmatprep.subr.bf16.mxu0 %v1299
    %1453 = vmatpush1.bf16.msra.mxu0 %v1298
    %1454 = vmatprep.subr.bf16.mxu0 %v1303
    %1455 = vmatpush1.bf16.msra.mxu0 %v1302
    %1456 = vmatprep.subr.bf16.mxu0 %v1307
    %1457 = vmatpush1.bf16.msra.mxu0 %v1306
    %1458 = vmatprep.subr.bf16.mxu0 %v1311
    %1459 = vmatpush1.bf16.msra.mxu0 %v1310
    %1460 = vmatprep.subr.bf16.mxu0 %v1315
    %1461 = vmatpush1.bf16.msra.mxu0 %v1314
    %1462 = vmatprep.subr.bf16.mxu0 %v1319
    %1463 = vmatpush1.bf16.msra.mxu0 %v1318
    %1464 = vmatprep.subr.bf16.mxu0 %v1323
    %1465 = vmatpush1.bf16.msra.mxu0 %v1322
    %1466 = vmatprep.subr.bf16.mxu0 %v1327
    %1467 = vmatpush1.bf16.msra.mxu0 %v1326
    %1468 = vmatprep.subr.bf16.mxu0 %v1331
    %1469 = vmatpush1.bf16.msra.mxu0 %v1330
    %1470 = vmatprep.subr.bf16.mxu0 %v1335
    %1471 = vmatpush1.bf16.msra.mxu0 %v1334
    %1472 = vmatprep.subr.bf16.mxu0 %v1339
    %1473 = vmatpush1.bf16.msra.mxu0 %v1338
    %1474 = vmatprep.subr.bf16.mxu0 %v1343
    %1475 = vmatpush1.bf16.msra.mxu0 %v1342
    %1476 = vmatprep.subr.bf16.mxu0 %v1347
    %1477 = vmatpush1.bf16.msra.mxu0 %v1346
    %1478 = vmatprep.subr.bf16.mxu0 %v1351
    %1479 = vmatpush1.bf16.msra.mxu0 %v1350
    %1480 = vmatprep.subr.bf16.mxu0 0
    %1481 = vmatpush1.bf16.msra.mxu0 0
    %1482 = vmatprep.subr.bf16.mxu0 0
    %1483 = vmatpush1.bf16.msra.mxu0 0
    %1484 = vmatprep.mubr.bf16.mxu0 %v1409
    %1485 = vmatmul.mubr.bf16.gmra.mrb[0].mxu0 %v1126
    %v1486 = vpop.f32.mrb[0].mxu0
    %v1487 = vadd.f32 0.0, %v1486
    %v1488 = vpop.f32.mrb[0].mxu0
    %v1489 = vadd.f32 0.0, %v1488
    %v1490 = vpop.f32.mrb[0].mxu0
    %v1491 = vpop.f32.mrb[0].mxu0
    %1492 = vdwg.mxu0
    %v1493 = vsel %vm551, %v1446, 0.0
    %v1494 = vrot.slane %v1493, 4
    %v1495 = vadd.f32 %v1493, %v1494
    %v1496 = vrot.slane %v1495, 2
    %v1497 = vadd.f32 %v1495, %v1496
    %v1498 = vrot.slane %v1497, 1
    %v1499 = vadd.f32 %v1497, %v1498
    %v1500 = vsel %vm551, %v1448, 0.0
    %v1501 = vrot.slane %v1500, 4
    %v1502 = vadd.f32 %v1500, %v1501
    %v1503 = vrot.slane %v1502, 2
    %v1504 = vadd.f32 %v1502, %v1503
    %v1505 = vrot.slane %v1504, 1
    %v1506 = vadd.f32 %v1504, %v1505
    %v1507 = vsel %vm551, %v1487, 0.0
    %v1508 = vrot.slane %v1507, 4
    %v1509 = vadd.f32 %v1507, %v1508
    %v1510 = vrot.slane %v1509, 2
    %v1511 = vadd.f32 %v1509, %v1510
    %v1512 = vrot.slane %v1511, 1
    %v1513 = vadd.f32 %v1511, %v1512
    %vm1514 = vcmask 517120
    %v1515 = vsel %vm1514, %v1489, 0.0
    %v1516 = vrot.slane %v1515, 4
    %v1517 = vadd.f32 %v1515, %v1516
    %v1518 = vrot.slane %v1517, 2
    %v1519 = vadd.f32 %v1517, %v1518
    %v1520 = vrot.slane %v1519, 1
    %v1521 = vadd.f32 %v1519, %v1520
    %vm1522 = vcmask 523264
    %v1524 = vsel %vm1522, %v1521, 0
    %1526 = vmatprep.subr.mxu0 %v901
    %1527 = vmatpush1.msra.mxu0 %v900
    %1528 = vmatprep.subr.mxu0 %v905
    %1529 = vmatpush1.msra.mxu0 %v904
    %1530 = vmatprep.subr.mxu0 %v909
    %1531 = vmatpush1.msra.mxu0 %v908
    %1532 = vmatprep.subr.mxu0 %v913
    %1533 = vmatpush1.msra.mxu0 %v912
    %1534 = vmatprep.subr.mxu0 %v917
    %1535 = vmatpush1.msra.mxu0 %v916
    %1536 = vmatprep.subr.mxu0 %v921
    %1537 = vmatpush1.msra.mxu0 %v920
    %1538 = vmatprep.subr.mxu0 %v925
    %1539 = vmatpush1.msra.mxu0 %v924
    %1540 = vmatprep.subr.mxu0 %v929
    %1541 = vmatpush1.msra.mxu0 %v928
    %1542 = vmatprep.subr.mxu0 %v933
    %1543 = vmatpush1.msra.mxu0 %v932
    %1544 = vmatprep.subr.mxu0 %v937
    %1545 = vmatpush1.msra.mxu0 %v936
    %1546 = vmatprep.subr.mxu0 %v941
    %1547 = vmatpush1.msra.mxu0 %v940
    %1548 = vmatprep.subr.mxu0 %v945
    %1549 = vmatpush1.msra.mxu0 %v944
    %1550 = vmatprep.subr.mxu0 %v949
    %1551 = vmatpush1.msra.mxu0 %v948
    %1552 = vmatprep.subr.mxu0 %v953
    %1553 = vmatpush1.msra.mxu0 %v952
    %1554 = vmatprep.subr.mxu0 %v957
    %1555 = vmatpush1.msra.mxu0 %v956
    %1556 = vmatprep.subr.mxu0 %v961
    %1557 = vmatpush1.msra.mxu0 %v960
    %1558 = vmatprep.subr.mxu0 %v965
    %1559 = vmatpush1.msra.mxu0 %v964
    %1560 = vmatprep.subr.mxu0 %v969
    %1561 = vmatpush1.msra.mxu0 %v968
    %1562 = vmatprep.subr.mxu0 %v973
    %1563 = vmatpush1.msra.mxu0 %v972
    %1564 = vmatprep.subr.mxu0 %v977
    %1565 = vmatpush1.msra.mxu0 %v976
    %1566 = vmatprep.subr.mxu0 %v981
    %1567 = vmatpush1.msra.mxu0 %v980
    %1568 = vmatprep.subr.mxu0 %v985
    %1569 = vmatpush1.msra.mxu0 %v984
    %1570 = vmatprep.subr.mxu0 %v989
    %1571 = vmatpush1.msra.mxu0 %v988
    %1572 = vmatprep.subr.mxu0 %v993
    %1573 = vmatpush1.msra.mxu0 %v992
    %1574 = vmatprep.subr.mxu0 %v997
    %1575 = vmatpush1.msra.mxu0 %v996
    %1576 = vmatprep.subr.mxu0 %v1001
    %1577 = vmatpush1.msra.mxu0 %v1000
    %1578 = vmatprep.subr.mxu0 %v1005
    %1579 = vmatpush1.msra.mxu0 %v1004
    %1580 = vmatprep.subr.mxu0 %v1009
    %1581 = vmatpush1.msra.mxu0 %v1008
    %1582 = vmatprep.subr.mxu0 %v1013
    %1583 = vmatpush1.msra.mxu0 %v1012
    %1584 = vmatprep.subr.mxu0 %v1017
    %1585 = vmatpush1.msra.mxu0 %v1016
    %1586 = vmatprep.subr.mxu0 %v1021
    %1587 = vmatpush1.msra.mxu0 %v1020
    %1588 = vmatprep.subr.mxu0 %v1025
    %1589 = vmatpush1.msra.mxu0 %v1024
    %1590 = vmatprep.mubr.f32.mxu0 %v1506
    %1591 = vmatmul.mubr.f32.gmra.mrb[0].mxu0 %v1499
    %v1592 = vpop.f32.mrb[0].mxu0
    %v1593 = vadd.f32 0.0, %v1592
    %v1594 = vpop.f32.mrb[0].mxu0
    %v1595 = vadd.f32 0.0, %v1594
    %1596 = vdwg.mxu0
    %1597 = vmatprep.subr.mxu0 %v1029
    %1598 = vmatpush1.msra.mxu0 %v1028
    %1599 = vmatprep.subr.mxu0 %v1033
    %1600 = vmatpush1.msra.mxu0 %v1032
    %1601 = vmatprep.subr.mxu0 %v1037
    %1602 = vmatpush1.msra.mxu0 %v1036
    %1603 = vmatprep.subr.mxu0 %v1041
    %1604 = vmatpush1.msra.mxu0 %v1040
    %1605 = vmatprep.subr.mxu0 %v1045
    %1606 = vmatpush1.msra.mxu0 %v1044
    %1607 = vmatprep.subr.mxu0 %v1049
    %1608 = vmatpush1.msra.mxu0 %v1048
    %1609 = vmatprep.subr.mxu0 %v1053
    %1610 = vmatpush1.msra.mxu0 %v1052
    %1611 = vmatprep.subr.mxu0 %v1057
    %1612 = vmatpush1.msra.mxu0 %v1056
    %1613 = vmatprep.subr.mxu0 %v1061
    %1614 = vmatpush1.msra.mxu0 %v1060
    %1615 = vmatprep.subr.mxu0 %v1065
    %1616 = vmatpush1.msra.mxu0 %v1064
    %1617 = vmatprep.subr.mxu0 %v1069
    %1618 = vmatpush1.msra.mxu0 %v1068
    %1619 = vmatprep.subr.mxu0 %v1073
    %1620 = vmatpush1.msra.mxu0 %v1072
    %1621 = vmatprep.subr.mxu0 %v1077
    %1622 = vmatpush1.msra.mxu0 %v1076
    %1623 = vmatprep.subr.mxu0 %v1081
    %1624 = vmatpush1.msra.mxu0 %v1080
    %1625 = vmatprep.subr.mxu0 %v1085
    %1626 = vmatpush1.msra.mxu0 %v1084
    %1627 = vmatprep.subr.mxu0 %v1089
    %1628 = vmatpush1.msra.mxu0 %v1088
    %1629 = vmatprep.subr.mxu0 %v1093
    %1630 = vmatpush1.msra.mxu0 %v1092
    %1631 = vmatprep.subr.mxu0 %v1097
    %1632 = vmatpush1.msra.mxu0 %v1096
    %1633 = vmatprep.subr.mxu0 %v1101
    %1634 = vmatpush1.msra.mxu0 %v1100
    %1635 = vmatprep.subr.mxu0 %v1105
    %1636 = vmatpush1.msra.mxu0 %v1104
    %1637 = vmatprep.subr.mxu0 %v1109
    %1638 = vmatpush1.msra.mxu0 %v1108
    %1639 = vmatprep.subr.mxu0 %v1113
    %1640 = vmatpush1.msra.mxu0 %v1112
    %1641 = vmatprep.subr.mxu0 %v1117
    %1642 = vmatpush1.msra.mxu0 %v1116
    %1643 = vmatprep.subr.mxu0 %v1121
    %1644 = vmatpush1.msra.mxu0 %v1120
    %1645 = vmatprep.subr.mxu0 0.0
    %1646 = vmatpush1.msra.mxu0 0.0
    %1647 = vmatprep.subr.mxu0 0.0
    %1648 = vmatpush1.msra.mxu0 0.0
    %1649 = vmatprep.subr.mxu0 0.0
    %1650 = vmatpush1.msra.mxu0 0.0
    %1651 = vmatprep.subr.mxu0 0.0
    %1652 = vmatpush1.msra.mxu0 0.0
    %1653 = vmatprep.subr.mxu0 0.0
    %1654 = vmatpush1.msra.mxu0 0.0
    %1655 = vmatprep.subr.mxu0 0.0
    %1656 = vmatpush1.msra.mxu0 0.0
    %1657 = vmatprep.subr.mxu0 0.0
    %1658 = vmatpush1.msra.mxu0 0.0
    %1659 = vmatprep.subr.mxu0 0.0
    %1660 = vmatpush1.msra.mxu0 0.0
    %1661 = vmatprep.mubr.f32.mxu0 %v1524
    %1662 = vmatmul.mubr.f32.gmra.mrb[0].mxu0 %v1513
    %v1663 = vpop.f32.mrb[0].mxu0
    %v1664 = vadd.f32 %v1593, %v1663
    %v1665 = vpop.f32.mrb[0].mxu0
    %v1666 = vadd.f32 %v1595, %v1665
    %1667 = vdwg.mxu0
    %1668 = vmatprep.subr.mxu0 %v903
    %1669 = vmatpush1.msra.mxu0 %v902
    %1670 = vmatprep.subr.mxu0 %v907
    %1671 = vmatpush1.msra.mxu0 %v906
    %1672 = vmatprep.subr.mxu0 %v911
    %1673 = vmatpush1.msra.mxu0 %v910
    %1674 = vmatprep.subr.mxu0 %v915
    %1675 = vmatpush1.msra.mxu0 %v914
    %1676 = vmatprep.subr.mxu0 %v919
    %1677 = vmatpush1.msra.mxu0 %v918
    %1678 = vmatprep.subr.mxu0 %v923
    %1679 = vmatpush1.msra.mxu0 %v922
    %1680 = vmatprep.subr.mxu0 %v927
    %1681 = vmatpush1.msra.mxu0 %v926
    %1682 = vmatprep.subr.mxu0 %v931
    %1683 = vmatpush1.msra.mxu0 %v930
    %1684 = vmatprep.subr.mxu0 %v935
    %1685 = vmatpush1.msra.mxu0 %v934
    %1686 = vmatprep.subr.mxu0 %v939
    %1687 = vmatpush1.msra.mxu0 %v938
    %1688 = vmatprep.subr.mxu0 %v943
    %1689 = vmatpush1.msra.mxu0 %v942
    %1690 = vmatprep.subr.mxu0 %v947
    %1691 = vmatpush1.msra.mxu0 %v946
    %1692 = vmatprep.subr.mxu0 %v951
    %1693 = vmatpush1.msra.mxu0 %v950
    %1694 = vmatprep.subr.mxu0 %v955
    %1695 = vmatpush1.msra.mxu0 %v954
    %1696 = vmatprep.subr.mxu0 %v959
    %1697 = vmatpush1.msra.mxu0 %v958
    %1698 = vmatprep.subr.mxu0 %v963
    %1699 = vmatpush1.msra.mxu0 %v962
    %1700 = vmatprep.subr.mxu0 %v967
    %1701 = vmatpush1.msra.mxu0 %v966
    %1702 = vmatprep.subr.mxu0 %v971
    %1703 = vmatpush1.msra.mxu0 %v970
    %1704 = vmatprep.subr.mxu0 %v975
    %1705 = vmatpush1.msra.mxu0 %v974
    %1706 = vmatprep.subr.mxu0 %v979
    %1707 = vmatpush1.msra.mxu0 %v978
    %1708 = vmatprep.subr.mxu0 %v983
    %1709 = vmatpush1.msra.mxu0 %v982
    %1710 = vmatprep.subr.mxu0 %v987
    %1711 = vmatpush1.msra.mxu0 %v986
    %1712 = vmatprep.subr.mxu0 %v991
    %1713 = vmatpush1.msra.mxu0 %v990
    %1714 = vmatprep.subr.mxu0 %v995
    %1715 = vmatpush1.msra.mxu0 %v994
    %1716 = vmatprep.subr.mxu0 %v999
    %1717 = vmatpush1.msra.mxu0 %v998
    %1718 = vmatprep.subr.mxu0 %v1003
    %1719 = vmatpush1.msra.mxu0 %v1002
    %1720 = vmatprep.subr.mxu0 %v1007
    %1721 = vmatpush1.msra.mxu0 %v1006
    %1722 = vmatprep.subr.mxu0 %v1011
    %1723 = vmatpush1.msra.mxu0 %v1010
    %1724 = vmatprep.subr.mxu0 %v1015
    %1725 = vmatpush1.msra.mxu0 %v1014
    %1726 = vmatprep.subr.mxu0 %v1019
    %1727 = vmatpush1.msra.mxu0 %v1018
    %1728 = vmatprep.subr.mxu0 %v1023
    %1729 = vmatpush1.msra.mxu0 %v1022
    %1730 = vmatprep.subr.mxu0 %v1027
    %1731 = vmatpush1.msra.mxu0 %v1026
    %1732 = vmatprep.mubr.f32.mxu0 %v1506
    %1733 = vmatmul.mubr.f32.gmra.mrb[0].mxu0 %v1499
    %v1734 = vpop.f32.mrb[0].mxu0
    %v1735 = vadd.f32 0.0, %v1734
    %v1736 = vpop.f32.mrb[0].mxu0
    %v1737 = vadd.f32 0.0, %v1736
    %1738 = vdwg.mxu0
    %1739 = vmatprep.subr.mxu0 %v1031
    %1740 = vmatpush1.msra.mxu0 %v1030
    %1741 = vmatprep.subr.mxu0 %v1035
    %1742 = vmatpush1.msra.mxu0 %v1034
    %1743 = vmatprep.subr.mxu0 %v1039
    %1744 = vmatpush1.msra.mxu0 %v1038
    %1745 = vmatprep.subr.mxu0 %v1043
    %1746 = vmatpush1.msra.mxu0 %v1042
    %1747 = vmatprep.subr.mxu0 %v1047
    %1748 = vmatpush1.msra.mxu0 %v1046
    %1749 = vmatprep.subr.mxu0 %v1051
    %1750 = vmatpush1.msra.mxu0 %v1050
    %1751 = vmatprep.subr.mxu0 %v1055
    %1752 = vmatpush1.msra.mxu0 %v1054
    %1753 = vmatprep.subr.mxu0 %v1059
    %1754 = vmatpush1.msra.mxu0 %v1058
    %1755 = vmatprep.subr.mxu0 %v1063
    %1756 = vmatpush1.msra.mxu0 %v1062
    %1757 = vmatprep.subr.mxu0 %v1067
    %1758 = vmatpush1.msra.mxu0 %v1066
    %1759 = vmatprep.subr.mxu0 %v1071
    %1760 = vmatpush1.msra.mxu0 %v1070
    %1761 = vmatprep.subr.mxu0 %v1075
    %1762 = vmatpush1.msra.mxu0 %v1074
    %1763 = vmatprep.subr.mxu0 %v1079
    %1764 = vmatpush1.msra.mxu0 %v1078
    %1765 = vmatprep.subr.mxu0 %v1083
    %1766 = vmatpush1.msra.mxu0 %v1082
    %1767 = vmatprep.subr.mxu0 %v1087
    %1768 = vmatpush1.msra.mxu0 %v1086
    %1769 = vmatprep.subr.mxu0 %v1091
    %1770 = vmatpush1.msra.mxu0 %v1090
    %1771 = vmatprep.subr.mxu0 %v1095
    %1772 = vmatpush1.msra.mxu0 %v1094
    %1773 = vmatprep.subr.mxu0 %v1099
    %1774 = vmatpush1.msra.mxu0 %v1098
    %1775 = vmatprep.subr.mxu0 %v1103
    %1776 = vmatpush1.msra.mxu0 %v1102
    %1777 = vmatprep.subr.mxu0 %v1107
    %1778 = vmatpush1.msra.mxu0 %v1106
    %1779 = vmatprep.subr.mxu0 %v1111
    %1780 = vmatpush1.msra.mxu0 %v1110
    %1781 = vmatprep.subr.mxu0 %v1115
    %1782 = vmatpush1.msra.mxu0 %v1114
    %1783 = vmatprep.subr.mxu0 %v1119
    %1784 = vmatpush1.msra.mxu0 %v1118
    %1785 = vmatprep.subr.mxu0 %v1123
    %1786 = vmatpush1.msra.mxu0 %v1122
    %1787 = vmatprep.subr.mxu0 0.0
    %1788 = vmatpush1.msra.mxu0 0.0
    %1789 = vmatprep.subr.mxu0 0.0
    %1790 = vmatpush1.msra.mxu0 0.0
    %1791 = vmatprep.subr.mxu0 0.0
    %1792 = vmatpush1.msra.mxu0 0.0
    %1793 = vmatprep.subr.mxu0 0.0
    %1794 = vmatpush1.msra.mxu0 0.0
    %1795 = vmatprep.subr.mxu0 0.0
    %1796 = vmatpush1.msra.mxu0 0.0
    %1797 = vmatprep.subr.mxu0 0.0
    %1798 = vmatpush1.msra.mxu0 0.0
    %1799 = vmatprep.subr.mxu0 0.0
    %1800 = vmatpush1.msra.mxu0 0.0
    %1801 = vmatprep.subr.mxu0 0.0
    %1802 = vmatpush1.msra.mxu0 0.0
    %1803 = vmatprep.mubr.f32.mxu0 %v1524
    %1804 = vmatmul.mubr.f32.gmra.mrb[0].mxu0 %v1513
    %v1805 = vpop.f32.mrb[0].mxu0
    %v1806 = vadd.f32 %v1735, %v1805
    %v1807 = vpop.f32.mrb[0].mxu0
    %v1808 = vadd.f32 %v1737, %v1807
    %1809 = vdwg.mxu0
    %v1810 = vmul.f32 %v1664, 0.0078125
    %v1811 = vmul.f32 %v1666, 0.0078125
    %v1812 = vmul.f32 %v1806, 0.0078125
    %v1813 = vmul.f32 %v1808, 0.0078125
    %v1814 = vlaneseq
    %v1815 = vshrl.u32 %v1814, 7
    %v1816 = vsub.s32 0, %v1815
    %v1817 = vrot.slane %v1810, %v1816
    %v1818 = vlaneseq
    %v1819 = vshrl.u32 %v1818, 7
    %v1820 = vsub.s32 0, %v1819
    %v1821 = vrot.slane %v1811, %v1820
    %v1822 = vlaneseq
    %v1823 = vshrl.u32 %v1822, 7
    %v1824 = vsub.s32 0, %v1823
    %v1825 = vrot.slane %v1812, %v1824
    %v1826 = vlaneseq
    %v1827 = vshrl.u32 %v1826, 7
    %v1828 = vsub.s32 0, %v1827
    %v1829 = vrot.slane %v1813, %v1828
    %v1830 = vsub.f32 %v1446, %v1817
    %v1831 = vsub.f32 %v1448, %v1821
    %v1832 = vsub.f32 %v1487, %v1825
    %v1833 = vsub.f32 %v1489, %v1829
    %v1834 = vmul.f32 %v1830, %v1830
    %v1835 = vmul.f32 %v1831, %v1831
    %v1836 = vmul.f32 %v1832, %v1832
    %v1837 = vmul.f32 %v1833, %v1833
    %v1838 = vsel %vm551, %v1834, 0.0
    %v1839 = vrot.slane %v1838, 4
    %v1840 = vadd.f32 %v1838, %v1839
    %v1841 = vrot.slane %v1840, 2
    %v1842 = vadd.f32 %v1840, %v1841
    %v1843 = vrot.slane %v1842, 1
    %v1844 = vadd.f32 %v1842, %v1843
    %v1845 = vsel %vm551, %v1835, 0.0
    %v1846 = vrot.slane %v1845, 4
    %v1847 = vadd.f32 %v1845, %v1846
    %v1848 = vrot.slane %v1847, 2
    %v1849 = vadd.f32 %v1847, %v1848
    %v1850 = vrot.slane %v1849, 1
    %v1851 = vadd.f32 %v1849, %v1850
    %v1852 = vsel %vm551, %v1836, 0.0
    %v1853 = vrot.slane %v1852, 4
    %v1854 = vadd.f32 %v1852, %v1853
    %v1855 = vrot.slane %v1854, 2
    %v1856 = vadd.f32 %v1854, %v1855
    %v1857 = vrot.slane %v1856, 1
    %v1858 = vadd.f32 %v1856, %v1857
    %v1859 = vsel %vm1514, %v1837, 0.0
    %v1860 = vrot.slane %v1859, 4
    %v1861 = vadd.f32 %v1859, %v1860
    %v1862 = vrot.slane %v1861, 2
    %v1863 = vadd.f32 %v1861, %v1862
    %v1864 = vrot.slane %v1863, 1
    %v1865 = vadd.f32 %v1863, %v1864
    %v1867 = vsel %vm1522, %v1865, 0
    %1869 = vmatprep.subr.mxu0 %v901
    %1870 = vmatpush1.msra.mxu0 %v900
    %1871 = vmatprep.subr.mxu0 %v905
    %1872 = vmatpush1.msra.mxu0 %v904
    %1873 = vmatprep.subr.mxu0 %v909
    %1874 = vmatpush1.msra.mxu0 %v908
    %1875 = vmatprep.subr.mxu0 %v913
    %1876 = vmatpush1.msra.mxu0 %v912
    %1877 = vmatprep.subr.mxu0 %v917
    %1878 = vmatpush1.msra.mxu0 %v916
    %1879 = vmatprep.subr.mxu0 %v921
    %1880 = vmatpush1.msra.mxu0 %v920
    %1881 = vmatprep.subr.mxu0 %v925
    %1882 = vmatpush1.msra.mxu0 %v924
    %1883 = vmatprep.subr.mxu0 %v929
    %1884 = vmatpush1.msra.mxu0 %v928
    %1885 = vmatprep.subr.mxu0 %v933
    %1886 = vmatpush1.msra.mxu0 %v932
    %1887 = vmatprep.subr.mxu0 %v937
    %1888 = vmatpush1.msra.mxu0 %v936
    %1889 = vmatprep.subr.mxu0 %v941
    %1890 = vmatpush1.msra.mxu0 %v940
    %1891 = vmatprep.subr.mxu0 %v945
    %1892 = vmatpush1.msra.mxu0 %v944
    %1893 = vmatprep.subr.mxu0 %v949
    %1894 = vmatpush1.msra.mxu0 %v948
    %1895 = vmatprep.subr.mxu0 %v953
    %1896 = vmatpush1.msra.mxu0 %v952
    %1897 = vmatprep.subr.mxu0 %v957
    %1898 = vmatpush1.msra.mxu0 %v956
    %1899 = vmatprep.subr.mxu0 %v961
    %1900 = vmatpush1.msra.mxu0 %v960
    %1901 = vmatprep.subr.mxu0 %v965
    %1902 = vmatpush1.msra.mxu0 %v964
    %1903 = vmatprep.subr.mxu0 %v969
    %1904 = vmatpush1.msra.mxu0 %v968
    %1905 = vmatprep.subr.mxu0 %v973
    %1906 = vmatpush1.msra.mxu0 %v972
    %1907 = vmatprep.subr.mxu0 %v977
    %1908 = vmatpush1.msra.mxu0 %v976
    %1909 = vmatprep.subr.mxu0 %v981
    %1910 = vmatpush1.msra.mxu0 %v980
    %1911 = vmatprep.subr.mxu0 %v985
    %1912 = vmatpush1.msra.mxu0 %v984
    %1913 = vmatprep.subr.mxu0 %v989
    %1914 = vmatpush1.msra.mxu0 %v988
    %1915 = vmatprep.subr.mxu0 %v993
    %1916 = vmatpush1.msra.mxu0 %v992
    %1917 = vmatprep.subr.mxu0 %v997
    %1918 = vmatpush1.msra.mxu0 %v996
    %1919 = vmatprep.subr.mxu0 %v1001
    %1920 = vmatpush1.msra.mxu0 %v1000
    %1921 = vmatprep.subr.mxu0 %v1005
    %1922 = vmatpush1.msra.mxu0 %v1004
    %1923 = vmatprep.subr.mxu0 %v1009
    %1924 = vmatpush1.msra.mxu0 %v1008
    %1925 = vmatprep.subr.mxu0 %v1013
    %1926 = vmatpush1.msra.mxu0 %v1012
    %1927 = vmatprep.subr.mxu0 %v1017
    %1928 = vmatpush1.msra.mxu0 %v1016
    %1929 = vmatprep.subr.mxu0 %v1021
    %1930 = vmatpush1.msra.mxu0 %v1020
    %1931 = vmatprep.subr.mxu0 %v1025
    %1932 = vmatpush1.msra.mxu0 %v1024
    %1933 = vmatprep.mubr.f32.mxu0 %v1851
    %1934 = vmatmul.mubr.f32.gmra.mrb[0].mxu0 %v1844
    %v1935 = vpop.f32.mrb[0].mxu0
    %v1936 = vadd.f32 0.0, %v1935
    %v1937 = vpop.f32.mrb[0].mxu0
    %v1938 = vadd.f32 0.0, %v1937
    %1939 = vdwg.mxu0
    %1940 = vmatprep.subr.mxu0 %v1029
    %1941 = vmatpush1.msra.mxu0 %v1028
    %1942 = vmatprep.subr.mxu0 %v1033
    %1943 = vmatpush1.msra.mxu0 %v1032
    %1944 = vmatprep.subr.mxu0 %v1037
    %1945 = vmatpush1.msra.mxu0 %v1036
    %1946 = vmatprep.subr.mxu0 %v1041
    %1947 = vmatpush1.msra.mxu0 %v1040
    %1948 = vmatprep.subr.mxu0 %v1045
    %1949 = vmatpush1.msra.mxu0 %v1044
    %1950 = vmatprep.subr.mxu0 %v1049
    %1951 = vmatpush1.msra.mxu0 %v1048
    %1952 = vmatprep.subr.mxu0 %v1053
    %1953 = vmatpush1.msra.mxu0 %v1052
    %1954 = vmatprep.subr.mxu0 %v1057
    %1955 = vmatpush1.msra.mxu0 %v1056
    %1956 = vmatprep.subr.mxu0 %v1061
    %1957 = vmatpush1.msra.mxu0 %v1060
    %1958 = vmatprep.subr.mxu0 %v1065
    %1959 = vmatpush1.msra.mxu0 %v1064
    %1960 = vmatprep.subr.mxu0 %v1069
    %1961 = vmatpush1.msra.mxu0 %v1068
    %1962 = vmatprep.subr.mxu0 %v1073
    %1963 = vmatpush1.msra.mxu0 %v1072
    %1964 = vmatprep.subr.mxu0 %v1077
    %1965 = vmatpush1.msra.mxu0 %v1076
    %1966 = vmatprep.subr.mxu0 %v1081
    %1967 = vmatpush1.msra.mxu0 %v1080
    %1968 = vmatprep.subr.mxu0 %v1085
    %1969 = vmatpush1.msra.mxu0 %v1084
    %1970 = vmatprep.subr.mxu0 %v1089
    %1971 = vmatpush1.msra.mxu0 %v1088
    %1972 = vmatprep.subr.mxu0 %v1093
    %1973 = vmatpush1.msra.mxu0 %v1092
    %1974 = vmatprep.subr.mxu0 %v1097
    %1975 = vmatpush1.msra.mxu0 %v1096
    %1976 = vmatprep.subr.mxu0 %v1101
    %1977 = vmatpush1.msra.mxu0 %v1100
    %1978 = vmatprep.subr.mxu0 %v1105
    %1979 = vmatpush1.msra.mxu0 %v1104
    %1980 = vmatprep.subr.mxu0 %v1109
    %1981 = vmatpush1.msra.mxu0 %v1108
    %1982 = vmatprep.subr.mxu0 %v1113
    %1983 = vmatpush1.msra.mxu0 %v1112
    %1984 = vmatprep.subr.mxu0 %v1117
    %1985 = vmatpush1.msra.mxu0 %v1116
    %1986 = vmatprep.subr.mxu0 %v1121
    %1987 = vmatpush1.msra.mxu0 %v1120
    %1988 = vmatprep.subr.mxu0 0.0
    %1989 = vmatpush1.msra.mxu0 0.0
    %1990 = vmatprep.subr.mxu0 0.0
    %1991 = vmatpush1.msra.mxu0 0.0
    %1992 = vmatprep.subr.mxu0 0.0
    %1993 = vmatpush1.msra.mxu0 0.0
    %1994 = vmatprep.subr.mxu0 0.0
    %1995 = vmatpush1.msra.mxu0 0.0
    %1996 = vmatprep.subr.mxu0 0.0
    %1997 = vmatpush1.msra.mxu0 0.0
    %1998 = vmatprep.subr.mxu0 0.0
    %1999 = vmatpush1.msra.mxu0 0.0
    %2000 = vmatprep.subr.mxu0 0.0
    %2001 = vmatpush1.msra.mxu0 0.0
    %2002 = vmatprep.subr.mxu0 0.0
    %2003 = vmatpush1.msra.mxu0 0.0
    %2004 = vmatprep.mubr.f32.mxu0 %v1867
    %2005 = vmatmul.mubr.f32.gmra.mrb[0].mxu0 %v1858
    %v2006 = vpop.f32.mrb[0].mxu0
    %v2007 = vadd.f32 %v1936, %v2006
    %v2008 = vpop.f32.mrb[0].mxu0
    %v2009 = vadd.f32 %v1938, %v2008
    %2010 = vdwg.mxu0
    %2011 = vmatprep.subr.mxu0 %v903
    %2012 = vmatpush1.msra.mxu0 %v902
    %2013 = vmatprep.subr.mxu0 %v907
    %2014 = vmatpush1.msra.mxu0 %v906
    %2015 = vmatprep.subr.mxu0 %v911
    %2016 = vmatpush1.msra.mxu0 %v910
    %2017 = vmatprep.subr.mxu0 %v915
    %2018 = vmatpush1.msra.mxu0 %v914
    %2019 = vmatprep.subr.mxu0 %v919
    %2020 = vmatpush1.msra.mxu0 %v918
    %2021 = vmatprep.subr.mxu0 %v923
    %2022 = vmatpush1.msra.mxu0 %v922
    %2023 = vmatprep.subr.mxu0 %v927
    %2024 = vmatpush1.msra.mxu0 %v926
    %2025 = vmatprep.subr.mxu0 %v931
    %2026 = vmatpush1.msra.mxu0 %v930
    %2027 = vmatprep.subr.mxu0 %v935
    %2028 = vmatpush1.msra.mxu0 %v934
    %2029 = vmatprep.subr.mxu0 %v939
    %2030 = vmatpush1.msra.mxu0 %v938
    %2031 = vmatprep.subr.mxu0 %v943
    %2032 = vmatpush1.msra.mxu0 %v942
    %2033 = vmatprep.subr.mxu0 %v947
    %2034 = vmatpush1.msra.mxu0 %v946
    %2035 = vmatprep.subr.mxu0 %v951
    %2036 = vmatpush1.msra.mxu0 %v950
    %2037 = vmatprep.subr.mxu0 %v955
    %2038 = vmatpush1.msra.mxu0 %v954
    %2039 = vmatprep.subr.mxu0 %v959
    %2040 = vmatpush1.msra.mxu0 %v958
    %2041 = vmatprep.subr.mxu0 %v963
    %2042 = vmatpush1.msra.mxu0 %v962
    %2043 = vmatprep.subr.mxu0 %v967
    %2044 = vmatpush1.msra.mxu0 %v966
    %2045 = vmatprep.subr.mxu0 %v971
    %2046 = vmatpush1.msra.mxu0 %v970
    %2047 = vmatprep.subr.mxu0 %v975
    %2048 = vmatpush1.msra.mxu0 %v974
    %2049 = vmatprep.subr.mxu0 %v979
    %2050 = vmatpush1.msra.mxu0 %v978
    %2051 = vmatprep.subr.mxu0 %v983
    %2052 = vmatpush1.msra.mxu0 %v982
    %2053 = vmatprep.subr.mxu0 %v987
    %2054 = vmatpush1.msra.mxu0 %v986
    %2055 = vmatprep.subr.mxu0 %v991
    %2056 = vmatpush1.msra.mxu0 %v990
    %2057 = vmatprep.subr.mxu0 %v995
    %2058 = vmatpush1.msra.mxu0 %v994
    %2059 = vmatprep.subr.mxu0 %v999
    %2060 = vmatpush1.msra.mxu0 %v998
    %2061 = vmatprep.subr.mxu0 %v1003
    %2062 = vmatpush1.msra.mxu0 %v1002
    %2063 = vmatprep.subr.mxu0 %v1007
    %2064 = vmatpush1.msra.mxu0 %v1006
    %2065 = vmatprep.subr.mxu0 %v1011
    %2066 = vmatpush1.msra.mxu0 %v1010
    %2067 = vmatprep.subr.mxu0 %v1015
    %2068 = vmatpush1.msra.mxu0 %v1014
    %2069 = vmatprep.subr.mxu0 %v1019
    %2070 = vmatpush1.msra.mxu0 %v1018
    %2071 = vmatprep.subr.mxu0 %v1023
    %2072 = vmatpush1.msra.mxu0 %v1022
    %2073 = vmatprep.subr.mxu0 %v1027
    %2074 = vmatpush1.msra.mxu0 %v1026
    %2075 = vmatprep.mubr.f32.mxu0 %v1851
    %2076 = vmatmul.mubr.f32.gmra.mrb[0].mxu0 %v1844
    %v2077 = vpop.f32.mrb[0].mxu0
    %v2078 = vadd.f32 0.0, %v2077
    %v2079 = vpop.f32.mrb[0].mxu0
    %v2080 = vadd.f32 0.0, %v2079
    %2081 = vdwg.mxu0
    %2082 = vmatprep.subr.mxu0 %v1031
    %2083 = vmatpush1.msra.mxu0 %v1030
    %2084 = vmatprep.subr.mxu0 %v1035
    %2085 = vmatpush1.msra.mxu0 %v1034
    %2086 = vmatprep.subr.mxu0 %v1039
    %2087 = vmatpush1.msra.mxu0 %v1038
    %2088 = vmatprep.subr.mxu0 %v1043
    %2089 = vmatpush1.msra.mxu0 %v1042
    %2090 = vmatprep.subr.mxu0 %v1047
    %2091 = vmatpush1.msra.mxu0 %v1046
    %2092 = vmatprep.subr.mxu0 %v1051
    %2093 = vmatpush1.msra.mxu0 %v1050
    %2094 = vmatprep.subr.mxu0 %v1055
    %2095 = vmatpush1.msra.mxu0 %v1054
    %2096 = vmatprep.subr.mxu0 %v1059
    %2097 = vmatpush1.msra.mxu0 %v1058
    %2098 = vmatprep.subr.mxu0 %v1063
    %2099 = vmatpush1.msra.mxu0 %v1062
    %2100 = vmatprep.subr.mxu0 %v1067
    %2101 = vmatpush1.msra.mxu0 %v1066
    %2102 = vmatprep.subr.mxu0 %v1071
    %2103 = vmatpush1.msra.mxu0 %v1070
    %2104 = vmatprep.subr.mxu0 %v1075
    %2105 = vmatpush1.msra.mxu0 %v1074
    %2106 = vmatprep.subr.mxu0 %v1079
    %2107 = vmatpush1.msra.mxu0 %v1078
    %2108 = vmatprep.subr.mxu0 %v1083
    %2109 = vmatpush1.msra.mxu0 %v1082
    %2110 = vmatprep.subr.mxu0 %v1087
    %2111 = vmatpush1.msra.mxu0 %v1086
    %2112 = vmatprep.subr.mxu0 %v1091
    %2113 = vmatpush1.msra.mxu0 %v1090
    %2114 = vmatprep.subr.mxu0 %v1095
    %2115 = vmatpush1.msra.mxu0 %v1094
    %2116 = vmatprep.subr.mxu0 %v1099
    %2117 = vmatpush1.msra.mxu0 %v1098
    %2118 = vmatprep.subr.mxu0 %v1103
    %2119 = vmatpush1.msra.mxu0 %v1102
    %2120 = vmatprep.subr.mxu0 %v1107
    %2121 = vmatpush1.msra.mxu0 %v1106
    %2122 = vmatprep.subr.mxu0 %v1111
    %2123 = vmatpush1.msra.mxu0 %v1110
    %2124 = vmatprep.subr.mxu0 %v1115
    %2125 = vmatpush1.msra.mxu0 %v1114
    %2126 = vmatprep.subr.mxu0 %v1119
    %2127 = vmatpush1.msra.mxu0 %v1118
    %2128 = vmatprep.subr.mxu0 %v1123
    %2129 = vmatpush1.msra.mxu0 %v1122
    %2130 = vmatprep.subr.mxu0 0.0
    %2131 = vmatpush1.msra.mxu0 0.0
    %2132 = vmatprep.subr.mxu0 0.0
    %2133 = vmatpush1.msra.mxu0 0.0
    %2134 = vmatprep.subr.mxu0 0.0
    %2135 = vmatpush1.msra.mxu0 0.0
    %2136 = vmatprep.subr.mxu0 0.0
    %2137 = vmatpush1.msra.mxu0 0.0
    %2138 = vmatprep.subr.mxu0 0.0
    %2139 = vmatpush1.msra.mxu0 0.0
    %2140 = vmatprep.subr.mxu0 0.0
    %2141 = vmatpush1.msra.mxu0 0.0
    %2142 = vmatprep.subr.mxu0 0.0
    %2143 = vmatpush1.msra.mxu0 0.0
    %2144 = vmatprep.subr.mxu0 0.0
    %2145 = vmatpush1.msra.mxu0 0.0
    %2146 = vmatprep.mubr.f32.mxu0 %v1867
    %2147 = vmatmul.mubr.f32.gmra.mrb[0].mxu0 %v1858
    %v2148 = vpop.f32.mrb[0].mxu0
    %v2149 = vadd.f32 %v2078, %v2148
    %v2150 = vpop.f32.mrb[0].mxu0
    %v2151 = vadd.f32 %v2080, %v2150
    %2152 = vdwg.mxu0
    %v2153 = vmul.f32 %v2007, 0.0078125
    %v2154 = vmul.f32 %v2009, 0.0078125
    %v2155 = vmul.f32 %v2149, 0.0078125
    %v2156 = vmul.f32 %v2151, 0.0078125
    %v2157 = vadd.f32 %v2153, 1e-05
    %v2158 = vadd.f32 %v2154, 1e-05
    %v2159 = vadd.f32 %v2155, 1e-05
    %v2160 = vadd.f32 %v2156, 1e-05
    %v2161 = vrsqrt.pop %v2157
    %v2162 = vrsqrt.pop %v2158
    %v2163 = vrsqrt.pop %v2159
    %v2164 = vrsqrt.pop %v2160
    %v2169 = vcombine.low %v2161, %v2162
    %v2170 = vcombine.low %v2163, %v2164
    %v2172 = vunpack.c.l.s4 1966171168
    %v2173 = vunpack.c.0.s8 %v2172
    %v2174 = vlaneseq
    %v2175 = vshrl.u32 %v2174, 7
    %v2176 = vsub.s32 %v2173, %v2175
    %v2177 = vrot.slane %v2169, %v2176
    %v2179 = vunpack.c.l.s4 1966171168
    %v2180 = vunpack.c.0.s8 %v2179
    %v2181 = vlaneseq
    %v2182 = vshrl.u32 %v2181, 7
    %v2183 = vsub.s32 %v2180, %v2182
    %v2184 = vrot.slane %v2170, %v2183
    %v2185 = vcombine.low %v2177, %v2184
    %v2187 = vunpack.c.l.s4 1966171168
    %v2188 = vunpack.c.0.s8 %v2187
    %v2189 = vlaneseq
    %v2190 = vshrl.u32 %v2189, 7
    %v2191 = vsub.s32 %v2188, %v2190
    %v2192 = vrot.slane %v2185, %v2191
    %v2194 = vmul.f32 %v1124, %v2192
    %v2196 = vlaneseq
    %v2197 = vshrl.u32 %v2196, 7
    %v2198 = vsub.s32 0, %v2197
    %v2199 = vrot.slane %v2194, %v2198
    %v2200 = vlaneseq
    %v2201 = vshrl.u32 %v2200, 7
    %v2202 = vsub.s32 1, %v2201
    %v2203 = vrot.slane %v2194, %v2202
    %v2204 = vlaneseq
    %v2205 = vshrl.u32 %v2204, 7
    %v2206 = vsub.s32 2, %v2205
    %v2207 = vrot.slane %v2194, %v2206
    %v2208 = vlaneseq
    %v2209 = vshrl.u32 %v2208, 7
    %v2210 = vsub.s32 3, %v2209
    %v2211 = vrot.slane %v2194, %v2210
    %v2216 = vmul.f32 %v1830, %v2199
    %v2217 = vmul.f32 %v1831, %v2203
    %v2218 = vmul.f32 %v1832, %v2207
    %v2219 = vmul.f32 %v1833, %v2211
    %v2221 = vlaneseq
    %v2222 = vshrl.u32 %v2221, 7
    %v2223 = vsub.s32 0, %v2222
    %v2224 = vrot.slane %v1125, %v2223
    %v2225 = vlaneseq
    %v2226 = vshrl.u32 %v2225, 7
    %v2227 = vsub.s32 1, %v2226
    %v2228 = vrot.slane %v1125, %v2227
    %v2229 = vlaneseq
    %v2230 = vshrl.u32 %v2229, 7
    %v2231 = vsub.s32 2, %v2230
    %v2232 = vrot.slane %v1125, %v2231
    %v2233 = vlaneseq
    %v2234 = vshrl.u32 %v2233, 7
    %v2235 = vsub.s32 3, %v2234
    %v2236 = vrot.slane %v1125, %v2235
    %v2241 = vadd.f32 %v2216, %v2224
    %v2242 = vadd.f32 %v2217, %v2228
    %v2243 = vadd.f32 %v2218, %v2232
    %v2244 = vadd.f32 %v2219, %v2236
    %v2245 = vmax.f32 %v2241, 0.0
    %v2246 = vmax.f32 %v2242, 0.0
    %v2247 = vmax.f32 %v2243, 0.0
    %v2248 = vmax.f32 %v2244, 0.0
    %v2249 = vpack.c.bf16 %v2245, %v2245
    %v2250 = vpack.c.bf16 %v2246, %v2246
    %v2251 = vpack.c.bf16 %v2247, %v2247
    %v2252 = vpack.c.bf16 %v2248, %v2248
    %v2253 = vld [vmem:[#allocation14] sm:$0xff]
    %v2254 = vld [vmem:[#allocation14 + $0x8] sm:$0xff]
    %v2255 = vld [vmem:[#allocation14 + $0x10] sm:$0xff]
    %v2256 = vld [vmem:[#allocation14 + $0x18] sm:$0xff]
    %v2257 = vld [vmem:[#allocation14 + $0x20] sm:$0xff]
    %v2258 = vld [vmem:[#allocation14 + $0x28] sm:$0xff]
    %v2259 = vld [vmem:[#allocation14 + $0x30] sm:$0xff]
    %v2260 = vld [vmem:[#allocation14 + $0x38] sm:$0xff]
    %v2261 = vld [vmem:[#allocation14 + $0x40] sm:$0xff]
    %v2262 = vld [vmem:[#allocation14 + $0x48] sm:$0xff]
    %v2263 = vld [vmem:[#allocation14 + $0x50] sm:$0xff]
    %v2264 = vld [vmem:[#allocation14 + $0x58] sm:$0xff]
    %v2265 = vld [vmem:[#allocation14 + $0x60] sm:$0xff]
    %v2266 = vld [vmem:[#allocation14 + $0x68] sm:$0xff]
    %v2267 = vld [vmem:[#allocation14 + $0x70] sm:$0xff]
    %v2268 = vld [vmem:[#allocation14 + $0x78] sm:$0xff]
    %v2269 = vld [vmem:[#allocation14 + $0x80] sm:$0xff]
    %v2270 = vld [vmem:[#allocation14 + $0x88] sm:$0xff]
    %v2271 = vld [vmem:[#allocation14 + $0x90] sm:$0xff]
    %v2272 = vld [vmem:[#allocation14 + $0x98] sm:$0xff]
    %v2273 = vld [vmem:[#allocation14 + $0xa0] sm:$0xff]
    %v2274 = vld [vmem:[#allocation14 + $0xa8] sm:$0xff]
    %v2275 = vld [vmem:[#allocation14 + $0xb0] sm:$0xff]
    %v2276 = vld [vmem:[#allocation14 + $0xb8] sm:$0xff]
    %v2277 = vld [vmem:[#allocation14 + $0xc0] sm:$0xff]
    %v2278 = vld [vmem:[#allocation14 + $0xc8] sm:$0xff]
    %v2279 = vld [vmem:[#allocation14 + $0xd0] sm:$0xff]
    %v2280 = vld [vmem:[#allocation14 + $0xd8] sm:$0xff]
    %v2281 = vld [vmem:[#allocation14 + $0xe0] sm:$0xff]
    %v2282 = vld [vmem:[#allocation14 + $0xe8] sm:$0xff]
    %v2283 = vld [vmem:[#allocation14 + $0xf0] sm:$0xff]
    %v2284 = vld [vmem:[#allocation14 + $0xf8] sm:$0xff]
    %v2285 = vld [vmem:[#allocation14 + $0x100] sm:$0xff]
    %v2286 = vld [vmem:[#allocation14 + $0x108] sm:$0xff]
    %v2287 = vld [vmem:[#allocation14 + $0x110] sm:$0xff]
    %v2288 = vld [vmem:[#allocation14 + $0x118] sm:$0xff]
    %v2289 = vld [vmem:[#allocation14 + $0x120] sm:$0xff]
    %v2290 = vld [vmem:[#allocation14 + $0x128] sm:$0xff]
    %v2291 = vld [vmem:[#allocation14 + $0x130] sm:$0xff]
    %v2292 = vld [vmem:[#allocation14 + $0x138] sm:$0xff]
    %v2293 = vld [vmem:[#allocation14 + $0x140] sm:$0xff]
    %v2294 = vld [vmem:[#allocation14 + $0x148] sm:$0xff]
    %v2295 = vld [vmem:[#allocation14 + $0x150] sm:$0xff]
    %v2296 = vld [vmem:[#allocation14 + $0x158] sm:$0xff]
    %v2297 = vld [vmem:[#allocation14 + $0x160] sm:$0xff]
    %v2298 = vld [vmem:[#allocation14 + $0x168] sm:$0xff]
    %v2299 = vld [vmem:[#allocation14 + $0x170] sm:$0xff]
    %v2300 = vld [vmem:[#allocation14 + $0x178] sm:$0xff]
    %v2301 = vld [vmem:[#allocation14 + $0x180] sm:$0xff]
    %v2302 = vld [vmem:[#allocation14 + $0x188] sm:$0xff]
    %v2303 = vld [vmem:[#allocation14 + $0x190] sm:$0xff]
    %v2304 = vld [vmem:[#allocation14 + $0x198] sm:$0xff]
    %v2305 = vld [vmem:[#allocation14 + $0x1a0] sm:$0xff]
    %v2306 = vld [vmem:[#allocation14 + $0x1a8] sm:$0xff]
    %v2307 = vld [vmem:[#allocation14 + $0x1b0] sm:$0xff]
    %v2308 = vld [vmem:[#allocation14 + $0x1b8] sm:$0xff]
    %v2309 = vld [vmem:[#allocation14 + $0x1c0] sm:$0xff]
    %v2310 = vld [vmem:[#allocation14 + $0x1c8] sm:$0xff]
    %v2311 = vld [vmem:[#allocation14 + $0x1d0] sm:$0xff]
    %v2312 = vld [vmem:[#allocation14 + $0x1d8] sm:$0xff]
    %v2313 = vld [vmem:[#allocation14 + $0x1e0] sm:$0xff]
    %v2314 = vld [vmem:[#allocation14 + $0x1e8] sm:$0xff]
    %v2315 = vld [vmem:[#allocation14 + $0x1f0] sm:$0xff]
    %v2316 = vld [vmem:[#allocation14 + $0x1f8] sm:$0xff]
    %v2317 = vld [vmem:[#allocation14 + $0x200] sm:$0xff]
    %v2318 = vld [vmem:[#allocation14 + $0x208] sm:$0xff]
    %v2319 = vld [vmem:[#allocation14 + $0x210] sm:$0xff]
    %v2320 = vld [vmem:[#allocation14 + $0x218] sm:$0xff]
    %v2321 = vld [vmem:[#allocation14 + $0x220] sm:$0xff]
    %v2322 = vld [vmem:[#allocation14 + $0x228] sm:$0xff]
    %v2323 = vld [vmem:[#allocation14 + $0x230] sm:$0xff]
    %v2324 = vld [vmem:[#allocation14 + $0x238] sm:$0xff]
    %v2325 = vld [vmem:[#allocation14 + $0x240] sm:$0xff]
    %v2326 = vld [vmem:[#allocation14 + $0x248] sm:$0xff]
    %v2327 = vld [vmem:[#allocation14 + $0x250] sm:$0xff]
    %v2328 = vld [vmem:[#allocation14 + $0x258] sm:$0xff]
    %v2329 = vld [vmem:[#allocation14 + $0x260] sm:$0xff]
    %v2330 = vld [vmem:[#allocation14 + $0x268] sm:$0xff]
    %v2331 = vld [vmem:[#allocation14 + $0x270] sm:$0xff]
    %v2332 = vld [vmem:[#allocation14 + $0x278] sm:$0xff]
    %v2333 = vld [vmem:[#allocation14 + $0x280] sm:$0xff]
    %v2334 = vld [vmem:[#allocation14 + $0x288] sm:$0xff]
    %v2335 = vld [vmem:[#allocation14 + $0x290] sm:$0xff]
    %v2336 = vld [vmem:[#allocation14 + $0x298] sm:$0xff]
    %v2337 = vld [vmem:[#allocation14 + $0x2a0] sm:$0xff]
    %v2338 = vld [vmem:[#allocation14 + $0x2a8] sm:$0xff]
    %v2339 = vld [vmem:[#allocation14 + $0x2b0] sm:$0xff]
    %v2340 = vld [vmem:[#allocation14 + $0x2b8] sm:$0xff]
    %v2341 = vld [vmem:[#allocation14 + $0x2c0] sm:$0xff]
    %v2342 = vld [vmem:[#allocation14 + $0x2c8] sm:$0xff]
    %v2343 = vld [vmem:[#allocation14 + $0x2d0] sm:$0xff]
    %v2344 = vld [vmem:[#allocation14 + $0x2d8] sm:$0xff]
    %v2345 = vld [vmem:[#allocation14 + $0x2e0] sm:$0xff]
    %v2346 = vld [vmem:[#allocation14 + $0x2e8] sm:$0xff]
    %v2347 = vld [vmem:[#allocation14 + $0x2f0] sm:$0xff]
    %v2348 = vld [vmem:[#allocation14 + $0x2f8] sm:$0xff]
    %v2349 = vld [vmem:[#allocation14 + $0x300] sm:$0xff]
    %v2350 = vld [vmem:[#allocation14 + $0x308] sm:$0xff]
    %v2351 = vld [vmem:[#allocation14 + $0x310] sm:$0xff]
    %v2352 = vld [vmem:[#allocation14 + $0x318] sm:$0xff]
    %v2353 = vld [vmem:[#allocation14 + $0x320] sm:$0xff]
    %v2354 = vld [vmem:[#allocation14 + $0x328] sm:$0xff]
    %v2355 = vld [vmem:[#allocation14 + $0x330] sm:$0xff]
    %v2356 = vld [vmem:[#allocation14 + $0x338] sm:$0xff]
    %v2357 = vld [vmem:[#allocation14 + $0x340] sm:$0xff]
    %v2358 = vld [vmem:[#allocation14 + $0x348] sm:$0xff]
    %v2359 = vld [vmem:[#allocation14 + $0x350] sm:$0xff]
    %v2360 = vld [vmem:[#allocation14 + $0x358] sm:$0xff]
    %v2361 = vld [vmem:[#allocation14 + $0x360] sm:$0xff]
    %v2362 = vld [vmem:[#allocation14 + $0x368] sm:$0xff]
    %v2363 = vld [vmem:[#allocation14 + $0x370] sm:$0xff]
    %v2364 = vld [vmem:[#allocation14 + $0x378] sm:$0xff]
    %v2477 = vunpack.c.l.b16 %v2253
    %v2478 = vunpack.c.h.b16 %v2253
    %v2479 = vunpack.c.l.b16 %v2254
    %v2480 = vunpack.c.h.b16 %v2254
    %v2481 = vunpack.c.l.b16 %v2255
    %v2482 = vunpack.c.h.b16 %v2255
    %v2483 = vunpack.c.l.b16 %v2256
    %v2484 = vunpack.c.h.b16 %v2256
    %v2485 = vunpack.c.l.b16 %v2257
    %v2486 = vunpack.c.h.b16 %v2257
    %v2487 = vunpack.c.l.b16 %v2258
    %v2488 = vunpack.c.h.b16 %v2258
    %v2489 = vunpack.c.l.b16 %v2259
    %v2490 = vunpack.c.h.b16 %v2259
    %v2491 = vunpack.c.l.b16 %v2260
    %v2492 = vunpack.c.h.b16 %v2260
    %v2493 = vunpack.c.l.b16 %v2261
    %v2494 = vunpack.c.h.b16 %v2261
    %v2495 = vunpack.c.l.b16 %v2262
    %v2496 = vunpack.c.h.b16 %v2262
    %v2497 = vunpack.c.l.b16 %v2263
    %v2498 = vunpack.c.h.b16 %v2263
    %v2499 = vunpack.c.l.b16 %v2264
    %v2500 = vunpack.c.h.b16 %v2264
    %v2501 = vunpack.c.l.b16 %v2265
    %v2502 = vunpack.c.h.b16 %v2265
    %v2503 = vunpack.c.l.b16 %v2266
    %v2504 = vunpack.c.h.b16 %v2266
    %v2505 = vunpack.c.l.b16 %v2267
    %v2506 = vunpack.c.h.b16 %v2267
    %v2507 = vunpack.c.l.b16 %v2268
    %v2508 = vunpack.c.h.b16 %v2268
    %v2509 = vunpack.c.l.b16 %v2269
    %v2510 = vunpack.c.h.b16 %v2269
    %v2511 = vunpack.c.l.b16 %v2270
    %v2512 = vunpack.c.h.b16 %v2270
    %v2513 = vunpack.c.l.b16 %v2271
    %v2514 = vunpack.c.h.b16 %v2271
    %v2515 = vunpack.c.l.b16 %v2272
    %v2516 = vunpack.c.h.b16 %v2272
    %v2517 = vunpack.c.l.b16 %v2273
    %v2518 = vunpack.c.h.b16 %v2273
    %v2519 = vunpack.c.l.b16 %v2274
    %v2520 = vunpack.c.h.b16 %v2274
    %v2521 = vunpack.c.l.b16 %v2275
    %v2522 = vunpack.c.h.b16 %v2275
    %v2523 = vunpack.c.l.b16 %v2276
    %v2524 = vunpack.c.h.b16 %v2276
    %v2525 = vunpack.c.l.b16 %v2277
    %v2526 = vunpack.c.h.b16 %v2277
    %v2527 = vunpack.c.l.b16 %v2278
    %v2528 = vunpack.c.h.b16 %v2278
    %v2529 = vunpack.c.l.b16 %v2279
    %v2530 = vunpack.c.h.b16 %v2279
    %v2531 = vunpack.c.l.b16 %v2280
    %v2532 = vunpack.c.h.b16 %v2280
    %v2533 = vunpack.c.l.b16 %v2281
    %v2534 = vunpack.c.h.b16 %v2281
    %v2535 = vunpack.c.l.b16 %v2282
    %v2536 = vunpack.c.h.b16 %v2282
    %v2537 = vunpack.c.l.b16 %v2283
    %v2538 = vunpack.c.h.b16 %v2283
    %v2539 = vunpack.c.l.b16 %v2284
    %v2540 = vunpack.c.h.b16 %v2284
    %v2541 = vunpack.c.l.b16 %v2285
    %v2542 = vunpack.c.h.b16 %v2285
    %v2543 = vunpack.c.l.b16 %v2286
    %v2544 = vunpack.c.h.b16 %v2286
    %v2545 = vunpack.c.l.b16 %v2287
    %v2546 = vunpack.c.h.b16 %v2287
    %v2547 = vunpack.c.l.b16 %v2288
    %v2548 = vunpack.c.h.b16 %v2288
    %v2549 = vunpack.c.l.b16 %v2289
    %v2550 = vunpack.c.h.b16 %v2289
    %v2551 = vunpack.c.l.b16 %v2290
    %v2552 = vunpack.c.h.b16 %v2290
    %v2553 = vunpack.c.l.b16 %v2291
    %v2554 = vunpack.c.h.b16 %v2291
    %v2555 = vunpack.c.l.b16 %v2292
    %v2556 = vunpack.c.h.b16 %v2292
    %v2557 = vunpack.c.l.b16 %v2293
    %v2558 = vunpack.c.h.b16 %v2293
    %v2559 = vunpack.c.l.b16 %v2294
    %v2560 = vunpack.c.h.b16 %v2294
    %v2561 = vunpack.c.l.b16 %v2295
    %v2562 = vunpack.c.h.b16 %v2295
    %v2563 = vunpack.c.l.b16 %v2296
    %v2564 = vunpack.c.h.b16 %v2296
    %v2565 = vunpack.c.l.b16 %v2297
    %v2566 = vunpack.c.h.b16 %v2297
    %v2567 = vunpack.c.l.b16 %v2298
    %v2568 = vunpack.c.h.b16 %v2298
    %v2569 = vunpack.c.l.b16 %v2299
    %v2570 = vunpack.c.h.b16 %v2299
    %v2571 = vunpack.c.l.b16 %v2300
    %v2572 = vunpack.c.h.b16 %v2300
    %v2573 = vunpack.c.l.b16 %v2301
    %v2574 = vunpack.c.h.b16 %v2301
    %v2575 = vunpack.c.l.b16 %v2302
    %v2576 = vunpack.c.h.b16 %v2302
    %v2577 = vunpack.c.l.b16 %v2303
    %v2578 = vunpack.c.h.b16 %v2303
    %v2579 = vunpack.c.l.b16 %v2304
    %v2580 = vunpack.c.h.b16 %v2304
    %v2581 = vunpack.c.l.b16 %v2305
    %v2582 = vunpack.c.h.b16 %v2305
    %v2583 = vunpack.c.l.b16 %v2306
    %v2584 = vunpack.c.h.b16 %v2306
    %v2585 = vunpack.c.l.b16 %v2307
    %v2586 = vunpack.c.h.b16 %v2307
    %v2587 = vunpack.c.l.b16 %v2308
    %v2588 = vunpack.c.h.b16 %v2308
    %v2589 = vunpack.c.l.b16 %v2309
    %v2590 = vunpack.c.h.b16 %v2309
    %v2591 = vunpack.c.l.b16 %v2310
    %v2592 = vunpack.c.h.b16 %v2310
    %v2593 = vunpack.c.l.b16 %v2311
    %v2594 = vunpack.c.h.b16 %v2311
    %v2595 = vunpack.c.l.b16 %v2312
    %v2596 = vunpack.c.h.b16 %v2312
    %v2597 = vunpack.c.l.b16 %v2313
    %v2598 = vunpack.c.h.b16 %v2313
    %v2599 = vunpack.c.l.b16 %v2314
    %v2600 = vunpack.c.h.b16 %v2314
    %v2601 = vunpack.c.l.b16 %v2315
    %v2602 = vunpack.c.h.b16 %v2315
    %v2603 = vunpack.c.l.b16 %v2316
    %v2604 = vunpack.c.h.b16 %v2316
    %v2605 = vunpack.c.l.b16 %v2317
    %v2606 = vunpack.c.h.b16 %v2317
    %v2607 = vunpack.c.l.b16 %v2318
    %v2608 = vunpack.c.h.b16 %v2318
    %v2609 = vunpack.c.l.b16 %v2319
    %v2610 = vunpack.c.h.b16 %v2319
    %v2611 = vunpack.c.l.b16 %v2320
    %v2612 = vunpack.c.h.b16 %v2320
    %v2613 = vunpack.c.l.b16 %v2321
    %v2614 = vunpack.c.h.b16 %v2321
    %v2615 = vunpack.c.l.b16 %v2322
    %v2616 = vunpack.c.h.b16 %v2322
    %v2617 = vunpack.c.l.b16 %v2323
    %v2618 = vunpack.c.h.b16 %v2323
    %v2619 = vunpack.c.l.b16 %v2324
    %v2620 = vunpack.c.h.b16 %v2324
    %v2621 = vunpack.c.l.b16 %v2325
    %v2622 = vunpack.c.h.b16 %v2325
    %v2623 = vunpack.c.l.b16 %v2326
    %v2624 = vunpack.c.h.b16 %v2326
    %v2625 = vunpack.c.l.b16 %v2327
    %v2626 = vunpack.c.h.b16 %v2327
    %v2627 = vunpack.c.l.b16 %v2328
    %v2628 = vunpack.c.h.b16 %v2328
    %v2629 = vunpack.c.l.b16 %v2329
    %v2630 = vunpack.c.h.b16 %v2329
    %v2631 = vunpack.c.l.b16 %v2330
    %v2632 = vunpack.c.h.b16 %v2330
    %v2633 = vunpack.c.l.b16 %v2331
    %v2634 = vunpack.c.h.b16 %v2331
    %v2635 = vunpack.c.l.b16 %v2332
    %v2636 = vunpack.c.h.b16 %v2332
    %v2637 = vunpack.c.l.b16 %v2333
    %v2638 = vunpack.c.h.b16 %v2333
    %v2639 = vunpack.c.l.b16 %v2334
    %v2640 = vunpack.c.h.b16 %v2334
    %v2641 = vunpack.c.l.b16 %v2335
    %v2642 = vunpack.c.h.b16 %v2335
    %v2643 = vunpack.c.l.b16 %v2336
    %v2644 = vunpack.c.h.b16 %v2336
    %v2645 = vunpack.c.l.b16 %v2337
    %v2646 = vunpack.c.h.b16 %v2337
    %v2647 = vunpack.c.l.b16 %v2338
    %v2648 = vunpack.c.h.b16 %v2338
    %v2649 = vunpack.c.l.b16 %v2339
    %v2650 = vunpack.c.h.b16 %v2339
    %v2651 = vunpack.c.l.b16 %v2340
    %v2652 = vunpack.c.h.b16 %v2340
    %v2653 = vunpack.c.l.b16 %v2341
    %v2654 = vunpack.c.h.b16 %v2341
    %v2655 = vunpack.c.l.b16 %v2342
    %v2656 = vunpack.c.h.b16 %v2342
    %v2657 = vunpack.c.l.b16 %v2343
    %v2658 = vunpack.c.h.b16 %v2343
    %v2659 = vunpack.c.l.b16 %v2344
    %v2660 = vunpack.c.h.b16 %v2344
    %v2661 = vunpack.c.l.b16 %v2345
    %v2662 = vunpack.c.h.b16 %v2345
    %v2663 = vunpack.c.l.b16 %v2346
    %v2664 = vunpack.c.h.b16 %v2346
    %v2665 = vunpack.c.l.b16 %v2347
    %v2666 = vunpack.c.h.b16 %v2347
    %v2667 = vunpack.c.l.b16 %v2348
    %v2668 = vunpack.c.h.b16 %v2348
    %v2669 = vunpack.c.l.b16 %v2349
    %v2670 = vunpack.c.h.b16 %v2349
    %v2671 = vunpack.c.l.b16 %v2350
    %v2672 = vunpack.c.h.b16 %v2350
    %v2673 = vunpack.c.l.b16 %v2351
    %v2674 = vunpack.c.h.b16 %v2351
    %v2675 = vunpack.c.l.b16 %v2352
    %v2676 = vunpack.c.h.b16 %v2352
    %v2677 = vunpack.c.l.b16 %v2353
    %v2678 = vunpack.c.h.b16 %v2353
    %v2679 = vunpack.c.l.b16 %v2354
    %v2680 = vunpack.c.h.b16 %v2354
    %v2681 = vunpack.c.l.b16 %v2355
    %v2682 = vunpack.c.h.b16 %v2355
    %v2683 = vunpack.c.l.b16 %v2356
    %v2684 = vunpack.c.h.b16 %v2356
    %v2685 = vunpack.c.l.b16 %v2357
    %v2686 = vunpack.c.h.b16 %v2357
    %v2687 = vunpack.c.l.b16 %v2358
    %v2688 = vunpack.c.h.b16 %v2358
    %v2689 = vunpack.c.l.b16 %v2359
    %v2690 = vunpack.c.h.b16 %v2359
    %v2691 = vunpack.c.l.b16 %v2360
    %v2692 = vunpack.c.h.b16 %v2360
    %v2693 = vunpack.c.l.b16 %v2361
    %v2694 = vunpack.c.h.b16 %v2361
    %v2695 = vunpack.c.l.b16 %v2362
    %v2696 = vunpack.c.h.b16 %v2362
    %v2697 = vunpack.c.l.b16 %v2363
    %v2698 = vunpack.c.h.b16 %v2363
    %v2699 = vunpack.c.l.b16 %v2364
    %v2700 = vunpack.c.h.b16 %v2364
    %v2701 = vpack.c.b16 %v2481, %v2477
    %v2702 = vpack.c.b16 %v2482, %v2478
    %v2703 = vpack.c.b16 %v2483, %v2479
    %v2704 = vpack.c.b16 %v2484, %v2480
    %v2705 = vpack.c.b16 %v2489, %v2485
    %v2706 = vpack.c.b16 %v2490, %v2486
    %v2707 = vpack.c.b16 %v2491, %v2487
    %v2708 = vpack.c.b16 %v2492, %v2488
    %v2709 = vpack.c.b16 %v2497, %v2493
    %v2710 = vpack.c.b16 %v2498, %v2494
    %v2711 = vpack.c.b16 %v2499, %v2495
    %v2712 = vpack.c.b16 %v2500, %v2496
    %v2713 = vpack.c.b16 %v2505, %v2501
    %v2714 = vpack.c.b16 %v2506, %v2502
    %v2715 = vpack.c.b16 %v2507, %v2503
    %v2716 = vpack.c.b16 %v2508, %v2504
    %v2717 = vpack.c.b16 %v2513, %v2509
    %v2718 = vpack.c.b16 %v2514, %v2510
    %v2719 = vpack.c.b16 %v2515, %v2511
    %v2720 = vpack.c.b16 %v2516, %v2512
    %v2721 = vpack.c.b16 %v2521, %v2517
    %v2722 = vpack.c.b16 %v2522, %v2518
    %v2723 = vpack.c.b16 %v2523, %v2519
    %v2724 = vpack.c.b16 %v2524, %v2520
    %v2725 = vpack.c.b16 %v2529, %v2525
    %v2726 = vpack.c.b16 %v2530, %v2526
    %v2727 = vpack.c.b16 %v2531, %v2527
    %v2728 = vpack.c.b16 %v2532, %v2528
    %v2729 = vpack.c.b16 %v2537, %v2533
    %v2730 = vpack.c.b16 %v2538, %v2534
    %v2731 = vpack.c.b16 %v2539, %v2535
    %v2732 = vpack.c.b16 %v2540, %v2536
    %v2733 = vpack.c.b16 %v2545, %v2541
    %v2734 = vpack.c.b16 %v2546, %v2542
    %v2735 = vpack.c.b16 %v2547, %v2543
    %v2736 = vpack.c.b16 %v2548, %v2544
    %v2737 = vpack.c.b16 %v2553, %v2549
    %v2738 = vpack.c.b16 %v2554, %v2550
    %v2739 = vpack.c.b16 %v2555, %v2551
    %v2740 = vpack.c.b16 %v2556, %v2552
    %v2741 = vpack.c.b16 %v2561, %v2557
    %v2742 = vpack.c.b16 %v2562, %v2558
    %v2743 = vpack.c.b16 %v2563, %v2559
    %v2744 = vpack.c.b16 %v2564, %v2560
    %v2745 = vpack.c.b16 %v2569, %v2565
    %v2746 = vpack.c.b16 %v2570, %v2566
    %v2747 = vpack.c.b16 %v2571, %v2567
    %v2748 = vpack.c.b16 %v2572, %v2568
    %v2749 = vpack.c.b16 %v2577, %v2573
    %v2750 = vpack.c.b16 %v2578, %v2574
    %v2751 = vpack.c.b16 %v2579, %v2575
    %v2752 = vpack.c.b16 %v2580, %v2576
    %v2753 = vpack.c.b16 %v2585, %v2581
    %v2754 = vpack.c.b16 %v2586, %v2582
    %v2755 = vpack.c.b16 %v2587, %v2583
    %v2756 = vpack.c.b16 %v2588, %v2584
    %v2757 = vpack.c.b16 %v2593, %v2589
    %v2758 = vpack.c.b16 %v2594, %v2590
    %v2759 = vpack.c.b16 %v2595, %v2591
    %v2760 = vpack.c.b16 %v2596, %v2592
    %v2761 = vpack.c.b16 %v2601, %v2597
    %v2762 = vpack.c.b16 %v2602, %v2598
    %v2763 = vpack.c.b16 %v2603, %v2599
    %v2764 = vpack.c.b16 %v2604, %v2600
    %v2765 = vpack.c.b16 %v2609, %v2605
    %v2766 = vpack.c.b16 %v2610, %v2606
    %v2767 = vpack.c.b16 %v2611, %v2607
    %v2768 = vpack.c.b16 %v2612, %v2608
    %v2769 = vpack.c.b16 %v2617, %v2613
    %v2770 = vpack.c.b16 %v2618, %v2614
    %v2771 = vpack.c.b16 %v2619, %v2615
    %v2772 = vpack.c.b16 %v2620, %v2616
    %v2773 = vpack.c.b16 %v2625, %v2621
    %v2774 = vpack.c.b16 %v2626, %v2622
    %v2775 = vpack.c.b16 %v2627, %v2623
    %v2776 = vpack.c.b16 %v2628, %v2624
    %v2777 = vpack.c.b16 %v2633, %v2629
    %v2778 = vpack.c.b16 %v2634, %v2630
    %v2779 = vpack.c.b16 %v2635, %v2631
    %v2780 = vpack.c.b16 %v2636, %v2632
    %v2781 = vpack.c.b16 %v2641, %v2637
    %v2782 = vpack.c.b16 %v2642, %v2638
    %v2783 = vpack.c.b16 %v2643, %v2639
    %v2784 = vpack.c.b16 %v2644, %v2640
    %v2785 = vpack.c.b16 %v2649, %v2645
    %v2786 = vpack.c.b16 %v2650, %v2646
    %v2787 = vpack.c.b16 %v2651, %v2647
    %v2788 = vpack.c.b16 %v2652, %v2648
    %v2789 = vpack.c.b16 %v2657, %v2653
    %v2790 = vpack.c.b16 %v2658, %v2654
    %v2791 = vpack.c.b16 %v2659, %v2655
    %v2792 = vpack.c.b16 %v2660, %v2656
    %v2793 = vpack.c.b16 %v2665, %v2661
    %v2794 = vpack.c.b16 %v2666, %v2662
    %v2795 = vpack.c.b16 %v2667, %v2663
    %v2796 = vpack.c.b16 %v2668, %v2664
    %v2797 = vpack.c.b16 %v2673, %v2669
    %v2798 = vpack.c.b16 %v2674, %v2670
    %v2799 = vpack.c.b16 %v2675, %v2671
    %v2800 = vpack.c.b16 %v2676, %v2672
    %v2801 = vpack.c.b16 %v2681, %v2677
    %v2802 = vpack.c.b16 %v2682, %v2678
    %v2803 = vpack.c.b16 %v2683, %v2679
    %v2804 = vpack.c.b16 %v2684, %v2680
    %v2805 = vpack.c.b16 %v2689, %v2685
    %v2806 = vpack.c.b16 %v2690, %v2686
    %v2807 = vpack.c.b16 %v2691, %v2687
    %v2808 = vpack.c.b16 %v2692, %v2688
    %v2809 = vpack.c.b16 %v2697, %v2693
    %v2810 = vpack.c.b16 %v2698, %v2694
    %v2811 = vpack.c.b16 %v2699, %v2695
    %v2812 = vpack.c.b16 %v2700, %v2696
    %v2926 = vsel %vm1522, %v2252, 0
    %2928 = vmatprep.subr.bf16.mxu0 %v2702
    %2929 = vmatpush1.bf16.msra.mxu0 %v2701
    %2930 = vmatprep.subr.bf16.mxu0 %v2706
    %2931 = vmatpush1.bf16.msra.mxu0 %v2705
    %2932 = vmatprep.subr.bf16.mxu0 %v2710
    %2933 = vmatpush1.bf16.msra.mxu0 %v2709
    %2934 = vmatprep.subr.bf16.mxu0 %v2714
    %2935 = vmatpush1.bf16.msra.mxu0 %v2713
    %2936 = vmatprep.subr.bf16.mxu0 %v2718
    %2937 = vmatpush1.bf16.msra.mxu0 %v2717
    %2938 = vmatprep.subr.bf16.mxu0 %v2722
    %2939 = vmatpush1.bf16.msra.mxu0 %v2721
    %2940 = vmatprep.subr.bf16.mxu0 %v2726
    %2941 = vmatpush1.bf16.msra.mxu0 %v2725
    %2942 = vmatprep.subr.bf16.mxu0 %v2730
    %2943 = vmatpush1.bf16.msra.mxu0 %v2729
    %2944 = vmatprep.subr.bf16.mxu0 %v2734
    %2945 = vmatpush1.bf16.msra.mxu0 %v2733
    %2946 = vmatprep.subr.bf16.mxu0 %v2738
    %2947 = vmatpush1.bf16.msra.mxu0 %v2737
    %2948 = vmatprep.subr.bf16.mxu0 %v2742
    %2949 = vmatpush1.bf16.msra.mxu0 %v2741
    %2950 = vmatprep.subr.bf16.mxu0 %v2746
    %2951 = vmatpush1.bf16.msra.mxu0 %v2745
    %2952 = vmatprep.subr.bf16.mxu0 %v2750
    %2953 = vmatpush1.bf16.msra.mxu0 %v2749
    %2954 = vmatprep.subr.bf16.mxu0 %v2754
    %2955 = vmatpush1.bf16.msra.mxu0 %v2753
    %2956 = vmatprep.subr.bf16.mxu0 %v2758
    %2957 = vmatpush1.bf16.msra.mxu0 %v2757
    %2958 = vmatprep.subr.bf16.mxu0 %v2762
    %2959 = vmatpush1.bf16.msra.mxu0 %v2761
    %2960 = vmatprep.mubr.bf16.mxu0 %v2250
    %2961 = vmatmul.mubr.bf16.gmra.mrb[0].mxu0 %v2249
    %v2962 = vpop.f32.mrb[0].mxu0
    %v2963 = vadd.f32 0.0, %v2962
    %v2964 = vpop.f32.mrb[0].mxu0
    %v2965 = vadd.f32 0.0, %v2964
    %v2966 = vpop.f32.mrb[0].mxu0
    %v2967 = vpop.f32.mrb[0].mxu0
    %2968 = vdwg.mxu0
    %2969 = vmatprep.subr.bf16.mxu0 %v2766
    %2970 = vmatpush1.bf16.msra.mxu0 %v2765
    %2971 = vmatprep.subr.bf16.mxu0 %v2770
    %2972 = vmatpush1.bf16.msra.mxu0 %v2769
    %2973 = vmatprep.subr.bf16.mxu0 %v2774
    %2974 = vmatpush1.bf16.msra.mxu0 %v2773
    %2975 = vmatprep.subr.bf16.mxu0 %v2778
    %2976 = vmatpush1.bf16.msra.mxu0 %v2777
    %2977 = vmatprep.subr.bf16.mxu0 %v2782
    %2978 = vmatpush1.bf16.msra.mxu0 %v2781
    %2979 = vmatprep.subr.bf16.mxu0 %v2786
    %2980 = vmatpush1.bf16.msra.mxu0 %v2785
    %2981 = vmatprep.subr.bf16.mxu0 %v2790
    %2982 = vmatpush1.bf16.msra.mxu0 %v2789
    %2983 = vmatprep.subr.bf16.mxu0 %v2794
    %2984 = vmatpush1.bf16.msra.mxu0 %v2793
    %2985 = vmatprep.subr.bf16.mxu0 %v2798
    %2986 = vmatpush1.bf16.msra.mxu0 %v2797
    %2987 = vmatprep.subr.bf16.mxu0 %v2802
    %2988 = vmatpush1.bf16.msra.mxu0 %v2801
    %2989 = vmatprep.subr.bf16.mxu0 %v2806
    %2990 = vmatpush1.bf16.msra.mxu0 %v2805
    %2991 = vmatprep.subr.bf16.mxu0 %v2810
    %2992 = vmatpush1.bf16.msra.mxu0 %v2809
    %2993 = vmatprep.subr.bf16.mxu0 0
    %2994 = vmatpush1.bf16.msra.mxu0 0
    %2995 = vmatprep.subr.bf16.mxu0 0
    %2996 = vmatpush1.bf16.msra.mxu0 0
    %2997 = vmatprep.subr.bf16.mxu0 0
    %2998 = vmatpush1.bf16.msra.mxu0 0
    %2999 = vmatprep.subr.bf16.mxu0 0
    %3000 = vmatpush1.bf16.msra.mxu0 0
    %3001 = vmatprep.mubr.bf16.mxu0 %v2926
    %3002 = vmatmul.mubr.bf16.gmra.mrb[0].mxu0 %v2251
    %v3003 = vpop.f32.mrb[0].mxu0
    %v3004 = vadd.f32 %v2963, %v3003
    %v3005 = vpop.f32.mrb[0].mxu0
    %v3006 = vadd.f32 %v2965, %v3005
    %v3007 = vpop.f32.mrb[0].mxu0
    %v3008 = vpop.f32.mrb[0].mxu0
    %3009 = vdwg.mxu0
    %3010 = vmatprep.subr.bf16.mxu0 %v2704
    %3011 = vmatpush1.bf16.msra.mxu0 %v2703
    %3012 = vmatprep.subr.bf16.mxu0 %v2708
    %3013 = vmatpush1.bf16.msra.mxu0 %v2707
    %3014 = vmatprep.subr.bf16.mxu0 %v2712
    %3015 = vmatpush1.bf16.msra.mxu0 %v2711
    %3016 = vmatprep.subr.bf16.mxu0 %v2716
    %3017 = vmatpush1.bf16.msra.mxu0 %v2715
    %3018 = vmatprep.subr.bf16.mxu0 %v2720
    %3019 = vmatpush1.bf16.msra.mxu0 %v2719
    %3020 = vmatprep.subr.bf16.mxu0 %v2724
    %3021 = vmatpush1.bf16.msra.mxu0 %v2723
    %3022 = vmatprep.subr.bf16.mxu0 %v2728
    %3023 = vmatpush1.bf16.msra.mxu0 %v2727
    %3024 = vmatprep.subr.bf16.mxu0 %v2732
    %3025 = vmatpush1.bf16.msra.mxu0 %v2731
    %3026 = vmatprep.subr.bf16.mxu0 %v2736
    %3027 = vmatpush1.bf16.msra.mxu0 %v2735
    %3028 = vmatprep.subr.bf16.mxu0 %v2740
    %3029 = vmatpush1.bf16.msra.mxu0 %v2739
    %3030 = vmatprep.subr.bf16.mxu0 %v2744
    %3031 = vmatpush1.bf16.msra.mxu0 %v2743
    %3032 = vmatprep.subr.bf16.mxu0 %v2748
    %3033 = vmatpush1.bf16.msra.mxu0 %v2747
    %3034 = vmatprep.subr.bf16.mxu0 %v2752
    %3035 = vmatpush1.bf16.msra.mxu0 %v2751
    %3036 = vmatprep.subr.bf16.mxu0 %v2756
    %3037 = vmatpush1.bf16.msra.mxu0 %v2755
    %3038 = vmatprep.subr.bf16.mxu0 %v2760
    %3039 = vmatpush1.bf16.msra.mxu0 %v2759
    %3040 = vmatprep.subr.bf16.mxu0 %v2764
    %3041 = vmatpush1.bf16.msra.mxu0 %v2763
    %3042 = vmatprep.mubr.bf16.mxu0 %v2250
    %3043 = vmatmul.mubr.bf16.gmra.mrb[0].mxu0 %v2249
    %v3044 = vpop.f32.mrb[0].mxu0
    %v3045 = vadd.f32 0.0, %v3044
    %v3046 = vpop.f32.mrb[0].mxu0
    %v3047 = vadd.f32 0.0, %v3046
    %v3048 = vpop.f32.mrb[0].mxu0
    %v3049 = vpop.f32.mrb[0].mxu0
    %3050 = vdwg.mxu0
    %3051 = vmatprep.subr.bf16.mxu0 %v2768
    %3052 = vmatpush1.bf16.msra.mxu0 %v2767
    %3053 = vmatprep.subr.bf16.mxu0 %v2772
    %3054 = vmatpush1.bf16.msra.mxu0 %v2771
    %3055 = vmatprep.subr.bf16.mxu0 %v2776
    %3056 = vmatpush1.bf16.msra.mxu0 %v2775
    %3057 = vmatprep.subr.bf16.mxu0 %v2780
    %3058 = vmatpush1.bf16.msra.mxu0 %v2779
    %3059 = vmatprep.subr.bf16.mxu0 %v2784
    %3060 = vmatpush1.bf16.msra.mxu0 %v2783
    %3061 = vmatprep.subr.bf16.mxu0 %v2788
    %3062 = vmatpush1.bf16.msra.mxu0 %v2787
    %3063 = vmatprep.subr.bf16.mxu0 %v2792
    %3064 = vmatpush1.bf16.msra.mxu0 %v2791
    %3065 = vmatprep.subr.bf16.mxu0 %v2796
    %3066 = vmatpush1.bf16.msra.mxu0 %v2795
    %3067 = vmatprep.subr.bf16.mxu0 %v2800
    %3068 = vmatpush1.bf16.msra.mxu0 %v2799
    %3069 = vmatprep.subr.bf16.mxu0 %v2804
    %3070 = vmatpush1.bf16.msra.mxu0 %v2803
    %3071 = vmatprep.subr.bf16.mxu0 %v2808
    %3072 = vmatpush1.bf16.msra.mxu0 %v2807
    %3073 = vmatprep.subr.bf16.mxu0 %v2812
    %3074 = vmatpush1.bf16.msra.mxu0 %v2811
    %3075 = vmatprep.subr.bf16.mxu0 0
    %3076 = vmatpush1.bf16.msra.mxu0 0
    %3077 = vmatprep.subr.bf16.mxu0 0
    %3078 = vmatpush1.bf16.msra.mxu0 0
    %3079 = vmatprep.subr.bf16.mxu0 0
    %3080 = vmatpush1.bf16.msra.mxu0 0
    %3081 = vmatprep.subr.bf16.mxu0 0
    %3082 = vmatpush1.bf16.msra.mxu0 0
    %3083 = vmatprep.mubr.bf16.mxu0 %v2926
    %3084 = vmatmul.mubr.bf16.gmra.mrb[0].mxu0 %v2251
    %v3085 = vpop.f32.mrb[0].mxu0
    %v3086 = vadd.f32 %v3045, %v3085
    %v3087 = vpop.f32.mrb[0].mxu0
    %v3088 = vadd.f32 %v3047, %v3087
    %v3089 = vpop.f32.mrb[0].mxu0
    %v3090 = vpop.f32.mrb[0].mxu0
    %3091 = vdwg.mxu0
    %v3092 = vtanh.pop %v3004
    %v3093 = vtanh.pop %v3006
    %v3094 = vtanh.pop %v3086
    %v3095 = vtanh.pop %v3088
    %v3100 = vcombine.low %v3092, %v3093
    %v3101 = vcombine.low %v3094, %v3095
    %v3103 = vunpack.c.l.s4 1983009808
    %v3104 = vunpack.c.0.s8 %v3103
    %v3105 = vlaneseq
    %v3106 = vshrl.u32 %v3105, 7
    %v3107 = vsub.s32 %v3104, %v3106
    %v3108 = vrot.slane %v3100, %v3107
    %v3110 = vunpack.c.l.s4 1983009808
    %v3111 = vunpack.c.0.s8 %v3110
    %v3112 = vlaneseq
    %v3113 = vshrl.u32 %v3112, 7
    %v3114 = vsub.s32 %v3111, %v3113
    %v3115 = vrot.slane %v3101, %v3114
    %v3116 = vcombine.low %v3108, %v3115
    %3118 = vst [vmem:[#allocation16] sm:$0xff] %v3116
    // Predicated region
    $region90: #{tpu_custom_call.1} parent=1 // pred_check
      _
    $region91: #{tpu_custom_call.1} parent=1 // pred_check_branch
      %3120 = sbr.rel (0) target = $region93
    $region92: #{tpu_custom_call.1} parent=1 // pred_region
      %s3122 = ssub.s32 128, 128
      %3123 = vsyncadd [#allocation4], %s3122
      %s3125 = sshll.u32 [#allocation16], 4
      %s3126 = int_to_ptr.vmem [resolvable:$true] %s3125
      %3128 = dma.vmem_to_hbm [thread:$0]  %s3126, 128, %s14, [#allocation4]
    $region93: #{tpu_custom_call.1} parent=1 // pred_fallthru
      _
    // Predicated region
    $region94: #{tpu_custom_call.1} parent=1 // pred_check
      _
    $region95: #{tpu_custom_call.1} parent=1 // pred_check_branch
      %3130 = sbr.rel (0) target = $region97
    $region96: #{tpu_custom_call.1} parent=1 // pred_region
      %3131 = dma.done [#allocation4], 128
    $region97: #{tpu_custom_call.1} parent=1 // pred_fallthru
      _
    %3132 = vsyncpa [#allocation3], 1
    %3133 = vsyncpa [#allocation6], 1
    %3134 = vsyncpa [#allocation9], 1
    %3135 = vsyncpa [#allocation12], 1
    %3136 = vsyncpa [#allocation15], 1
    %3137 = vsyncpa [#allocation4], 1

</llo_original>
